<compile_context>
chip_gen: v6e
topology: v6e:2x2x1
jax: 0.10.0
libtpu: 0.0.40
codegen_flags: <defaults>
</compile_context>

<pallas_src>
import functools

import jax
import jax.numpy as jnp
import numpy as np
from jax.experimental import pallas as pl
from jax.experimental.pallas import tpu as pltpu

EPS = 1e-5
LANE = 128


def _round_up(v, m):
    return (v + m - 1) // m * m


# ---------------------------------------------------------------------------
# Fused DownBlock kernel: maxpool 2x2 -> nb_Conv x (3x3 conv + BN + ReLU)
# ---------------------------------------------------------------------------
def _down_block_kernel(x_ref, w_ref, scale_ref, shift_ref, o_ref,
                       buf_a, buf_b, *, H, W, Cin, Cp, n_layers):
    Ho, Wo = H // 2, W // 2

    # Zero the padded ping-pong activation buffers: the 1-pixel spatial halo
    # and the padded channels stay zero for every layer, replacing a
    # wrapper-side jnp.pad (and its HBM round trip).  Done every grid step so
    # each core's private scratch is always initialised (megacore-safe).
    buf_a[...] = jnp.zeros_like(buf_a)
    if n_layers > 1:
        buf_b[...] = jnp.zeros_like(buf_b)

    # ---- MaxPool2d(kernel=2, stride=2), fully in-kernel --------------------
    # The wrapper presented x as (H, Wo, 2*Cin): the two W-neighbours sit in
    # adjacent lane groups, so the W-pair max is a static lane slice and the
    # H-pair max is a layout-free major-dim reshape + reduce.
    x = x_ref[0]                                            # (H, Wo, 2*Cin)
    xw = jnp.maximum(x[:, :, :Cin], x[:, :, Cin:])          # (H, Wo, Cin)
    pooled = jnp.max(xw.reshape(Ho, 2, Wo, Cin), axis=1)    # (Ho, Wo, Cin)
    buf_a[1:Ho + 1, 1:Wo + 1, :Cin] = pooled.astype(buf_a.dtype)

    # ---- nb_Conv x (Conv3x3 + folded BatchNorm + ReLU) ---------------------
    # Activations never leave VMEM between layers.
    src, dst = buf_a, buf_b
    y = None
    for layer in range(n_layers):
        # Nine shifted windows of the padded activation, each a lane-dense
        # (Ho*Wo, Cp) operand, accumulated via K=Cp MXU dots in f32.
        acc = None
        for k in range(9):
            dy, dx = divmod(k, 3)
            win = src[dy:dy + Ho, dx:dx + Wo, :].reshape(Ho * Wo, Cp)
            wk = w_ref[layer, k * Cp:(k + 1) * Cp, :]        # (Cp, Cp) bf16
            d = jnp.dot(win.astype(jnp.bfloat16), wk,
                        preferred_element_type=jnp.float32)  # (Ho*Wo, Cp) f32
            acc = d if acc is None else acc + d
        # Folded conv-bias + BatchNorm (eval mode) + ReLU.
        y = jnp.maximum(acc * scale_ref[layer] + shift_ref[layer], 0.0)
        if layer + 1 < n_layers:
            dst[1:Ho + 1, 1:Wo + 1, :] = y.reshape(Ho, Wo, Cp)
            src, dst = dst, src

    # Lane-dense store: (Ho*Wo, Cp) slab, no reshape on the store path.
    o_ref[0] = y.astype(o_ref.dtype)


def down_block_forward(x_nchw, params):
    """x_nchw: (N, Cin, H, W); params: list of per-layer dicts."""
    N, Cin, H, W = x_nchw.shape
    assert H % 2 == 0 and W % 2 == 0, "MaxPool2d(2) path assumes even H, W"
    Ho, Wo = H // 2, W // 2
    n_layers = len(params)
    Cout = params[-1]["w"].shape[-1]
    # One lane-dense (multiple-of-128) channel width shared by every layer.
    Cp = _round_up(max([Cin] + [p["w"].shape[-1] for p in params]), LANE)

    # NCHW -> NHWC, then fold the W-pairs into the channel axis.  This reshape
    # preserves the linear memory order (bitcast) -> no gather, no extra HBM.
    x = jnp.transpose(x_nchw, (0, 2, 3, 1)).reshape(N, H, Wo, 2 * Cin)

    # Pack per-layer weights as (9*Cp, Cp) matrices (bf16); row block k*Cp
    # corresponds to tap (dy, dx) with k = dy*3 + dx.  Fold conv bias +
    # BatchNorm (eval mode) into one f32 scale/shift pair per layer.
    w_mats, scales, shifts = [], [], []
    for p in params:
        cin_l, cout_l = p["w"].shape[2], p["w"].shape[3]
        w_pad = jnp.zeros((3, 3, Cp, Cp), jnp.float32)
        w_pad = w_pad.at[:, :, :cin_l, :cout_l].set(p["w"])
        w_mats.append(w_pad.reshape(9 * Cp, Cp))
        scale = p["gamma"] / jnp.sqrt(p["var"] + EPS)
        shift = p["beta"] + (p["bias"] - p["mean"]) * scale
        scales.append(jnp.zeros((Cp,), jnp.float32).at[:cout_l].set(scale))
        shifts.append(jnp.zeros((Cp,), jnp.float32).at[:cout_l].set(shift))
    w_all = jnp.stack(w_mats).astype(jnp.bfloat16)        # (L, 9*Cp, Cp)
    s_all = jnp.stack(scales)[:, None, :]                 # (L, 1, Cp) f32
    b_all = jnp.stack(shifts)[:, None, :]                 # (L, 1, Cp) f32

    kernel = functools.partial(_down_block_kernel, H=H, W=W, Cin=Cin, Cp=Cp,
                               n_layers=n_layers)
    out = pl.pallas_call(
        kernel,
        out_shape=jax.ShapeDtypeStruct((N, Ho * Wo, Cp), x_nchw.dtype),
        grid=(N,),
        in_specs=[
            pl.BlockSpec((1, H, Wo, 2 * Cin), lambda n: (n, 0, 0, 0)),
            pl.BlockSpec((n_layers, 9 * Cp, Cp), lambda n: (0, 0, 0)),
            pl.BlockSpec((n_layers, 1, Cp), lambda n: (0, 0, 0)),
            pl.BlockSpec((n_layers, 1, Cp), lambda n: (0, 0, 0)),
        ],
        out_specs=pl.BlockSpec((1, Ho * Wo, Cp), lambda n: (n, 0, 0)),
        scratch_shapes=[
            pltpu.VMEM((Ho + 2, Wo + 2, Cp), jnp.float32),
            pltpu.VMEM((Ho + 2, Wo + 2, Cp), jnp.float32),
        ],
        compiler_params=pltpu.CompilerParams(
            dimension_semantics=("parallel",),
            vmem_limit_bytes=32 * 1024 * 1024,
        ),
    )(x, w_all, s_all, b_all)

    # Lane-padded (N, Ho*Wo, Cp) slab -> (N, Cout, Ho, Wo) (cheap XLA glue).
    out = out.reshape(N, Ho, Wo, Cp)[..., :Cout]
    return jnp.transpose(out, (0, 3, 1, 2))


# ---------------------------------------------------------------------------
# Deterministic parameter construction
# ---------------------------------------------------------------------------
def make_downblock_params(key, in_channels, out_channels, nb_conv):
    params = []
    cin = in_channels
    for _ in range(nb_conv):
        cout = out_channels
        key, kw, kb = jax.random.split(key, 3)
        fan_in = cin * 9
        params.append(dict(
            w=jax.random.normal(kw, (3, 3, cin, cout), jnp.float32) / np.sqrt(fan_in),
            bias=jax.random.normal(kb, (cout,), jnp.float32) * 0.1,
            gamma=jnp.ones((cout,), jnp.float32),
            beta=jnp.zeros((cout,), jnp.float32),
            mean=jnp.zeros((cout,), jnp.float32),
            var=jnp.ones((cout,), jnp.float32),
        ))
        cin = cout
    return params


# ---------------------------------------------------------------------------
# Pure-JAX references (for correctness check)
# ---------------------------------------------------------------------------
def ref_forward(x_nchw, params, matmul_dtype=jnp.float32):
    """matmul_dtype=bfloat16 mirrors the kernel's MXU operand rounding
    (accumulation is f32 either way)."""
    N, C, H, W = x_nchw.shape
    x = x_nchw.reshape(N, C, H // 2, 2, W // 2, 2).max(axis=(3, 5))
    for p in params:
        w_oihw = jnp.transpose(p["w"], (3, 2, 0, 1))
        y = jax.lax.conv_general_dilated(
            x.astype(matmul_dtype), w_oihw.astype(matmul_dtype), (1, 1), "SAME",
            dimension_numbers=("NCHW", "OIHW", "NCHW"),
            preferred_element_type=jnp.float32)
        y = y + p["bias"][None, :, None, None]
        scale = p["gamma"] / jnp.sqrt(p["var"] + EPS)
        y = (y - p["mean"][None, :, None, None]) * scale[None, :, None, None] \
            + p["beta"][None, :, None, None]
        x = jnp.maximum(y, 0.0)
    return x


if __name__ == "__main__":
    key = jax.random.PRNGKey(0)
    N, Cin, H, W = 2, 4, 16, 16
    Cout, nb_conv = 8, 2

    key, kx = jax.random.split(key)
    x = jax.random.normal(kx, (N, Cin, H, W), jnp.float32)
    params = make_downblock_params(key, Cin, Cout, nb_conv)

    out = jax.block_until_ready(jax.jit(down_block_forward)(x, params))
    assert out.shape == (N, Cout, H // 2, W // 2), out.shape

    # Tight check vs. a reference that rounds matmul operands to bf16 exactly
    # like the kernel (f32 accumulation) -> validates conv/pool/BN structure.
    ref_bf16 = jax.block_until_ready(ref_forward(x, params, jnp.bfloat16))
    if not np.allclose(np.asarray(out), np.asarray(ref_bf16), atol=1e-3, rtol=1e-3):
        raise AssertionError("Pallas DownBlock does not match bf16-operand reference")

    # Loose check vs. the true f32 semantics of the PyTorch module; the only
    # difference is the intentional bf16 MXU operand cast.
    ref_f32 = jax.block_until_ready(ref_forward(x, params, jnp.float32))
    if not np.allclose(np.asarray(out), np.asarray(ref_f32), atol=5e-2, rtol=5e-2):
        raise AssertionError("Pallas DownBlock deviates too far from f32 reference")

    print("KERNEL_OK")
</pallas_src>

<mosaic_0001>
module attributes {stable_mosaic.version = 11 : i64} {
  func.func @_down_block_kernel(%arg0: i32, %arg1: memref<1x16x8x8xf32, #tpu.memory_space<vmem>>, %arg2: memref<2x1152x128xbf16, #tpu.memory_space<vmem>>, %arg3: memref<2x1x128xf32, #tpu.memory_space<vmem>>, %arg4: memref<2x1x128xf32, #tpu.memory_space<vmem>>, %arg5: memref<1x64x128xf32, #tpu.memory_space<vmem>>, %arg6: memref<10x10x128xf32, #tpu.memory_space<vmem>>, %arg7: memref<10x10x128xf32, #tpu.memory_space<vmem>>) attributes {dimension_semantics = [#tpu.dimension_semantics<parallel>], iteration_bounds = array<i64: 2>, scalar_prefetch = 0 : i64, scratch_operands = 2 : i64, tpu.core_type = #tpu.core_type<tc>, window_params = [{transform_indices = @transform_0, window_bounds = array<i64: 1, 16, 8, 8>}, {pipeline_mode = #tpu.pipeline_mode<synchronous>, transform_indices = @transform_1, window_bounds = array<i64: 2, 1152, 128>}, {pipeline_mode = #tpu.pipeline_mode<synchronous>, transform_indices = @transform_2, window_bounds = array<i64: 2, 1, 128>}, {pipeline_mode = #tpu.pipeline_mode<synchronous>, transform_indices = @transform_3, window_bounds = array<i64: 2, 1, 128>}, {transform_indices = @transform_4, window_bounds = array<i64: 1, 64, 128>}]} {
    %cst = arith.constant 0.000000e+00 : f32
    %0 = vector.broadcast %cst : f32 to vector<10x10x128xf32>
    %c0 = arith.constant 0 : index
    %c0_0 = arith.constant 0 : index
    %c0_1 = arith.constant 0 : index
    %1 = vector.load %arg6[%c0, %c0_0, %c0_1] : memref<10x10x128xf32, #tpu.memory_space<vmem>>, vector<10x10x128xf32>
    tpu.vector_store %arg6[%c0, %c0_0, %c0_1], %0 {strides = array<i32>} : memref<10x10x128xf32, #tpu.memory_space<vmem>>, vector<10x10x128xf32>,
    %cst_2 = arith.constant 0.000000e+00 : f32
    %2 = vector.broadcast %cst_2 : f32 to vector<10x10x128xf32>
    %c0_3 = arith.constant 0 : index
    %c0_4 = arith.constant 0 : index
    %c0_5 = arith.constant 0 : index
    %3 = vector.load %arg7[%c0_3, %c0_4, %c0_5] : memref<10x10x128xf32, #tpu.memory_space<vmem>>, vector<10x10x128xf32>
    tpu.vector_store %arg7[%c0_3, %c0_4, %c0_5], %2 {strides = array<i32>} : memref<10x10x128xf32, #tpu.memory_space<vmem>>, vector<10x10x128xf32>,
    %c0_6 = arith.constant 0 : index
    %c0_7 = arith.constant 0 : index
    %c0_8 = arith.constant 0 : index
    %c0_9 = arith.constant 0 : index
    %4 = vector.load %arg1[%c0_6, %c0_7, %c0_8, %c0_9] : memref<1x16x8x8xf32, #tpu.memory_space<vmem>>, vector<1x16x8x8xf32>
    %5 = vector.shape_cast %4 : vector<1x16x8x8xf32> to vector<16x8x8xf32>
    %6 = vector.extract_strided_slice %5 {offsets = [0, 0, 0], sizes = [16, 8, 4], strides = [1, 1, 1]} : vector<16x8x8xf32> to vector<16x8x4xf32>
    %7 = vector.extract_strided_slice %5 {offsets = [0, 0, 4], sizes = [16, 8, 4], strides = [1, 1, 1]} : vector<16x8x8xf32> to vector<16x8x4xf32>
    %8 = arith.maximumf %6, %7 : vector<16x8x4xf32>
    %9 = vector.shape_cast %8 : vector<16x8x4xf32> to vector<8x2x8x4xf32>
    %cst_10 = arith.constant dense<0xFF800000> : vector<8x8x4xf32>
    %10 = vector.multi_reduction <maximumf>, %9, %cst_10 [1] : vector<8x2x8x4xf32> to vector<8x8x4xf32>
    %c1 = arith.constant 1 : index
    %c1_11 = arith.constant 1 : index
    %c0_12 = arith.constant 0 : index
    %11 = vector.load %arg6[%c1, %c1_11, %c0_12] : memref<10x10x128xf32, #tpu.memory_space<vmem>>, vector<8x8x4xf32>
    tpu.vector_store %arg6[%c1, %c1_11, %c0_12], %10 {strides = array<i32>} : memref<10x10x128xf32, #tpu.memory_space<vmem>>, vector<8x8x4xf32>,
    %c0_13 = arith.constant 0 : index
    %c0_14 = arith.constant 0 : index
    %c0_15 = arith.constant 0 : index
    %12 = vector.load %arg6[%c0_13, %c0_14, %c0_15] : memref<10x10x128xf32, #tpu.memory_space<vmem>>, vector<8x8x128xf32>
    %13 = vector.shape_cast %12 : vector<8x8x128xf32> to vector<64x128xf32>
    %c0_16 = arith.constant 0 : index
    %c0_17 = arith.constant 0 : index
    %c0_18 = arith.constant 0 : index
    %14 = vector.load %arg2[%c0_16, %c0_17, %c0_18] : memref<2x1152x128xbf16, #tpu.memory_space<vmem>>, vector<1x128x128xbf16>
    %15 = vector.shape_cast %14 : vector<1x128x128xbf16> to vector<128x128xbf16>
    %16 = arith.truncf %13 : vector<64x128xf32> to vector<64x128xbf16>
    %cst_19 = arith.constant dense<0.000000e+00> : vector<64x128xf32>
    %17 = tpu.matmul %16, %15, %cst_19 {dimension_numbers = #tpu.dot_dimension_numbers<[1], [0], [0], [1], [0, 0, 1, 1], [], []>} : vector<64x128xbf16>, vector<128x128xbf16>, vector<64x128xf32> -> vector<64x128xf32>
    %c0_20 = arith.constant 0 : index
    %c1_21 = arith.constant 1 : index
    %c0_22 = arith.constant 0 : index
    %18 = vector.load %arg6[%c0_20, %c1_21, %c0_22] : memref<10x10x128xf32, #tpu.memory_space<vmem>>, vector<8x8x128xf32>
    %19 = vector.shape_cast %18 : vector<8x8x128xf32> to vector<64x128xf32>
    %c0_23 = arith.constant 0 : index
    %c128 = arith.constant 128 : index
    %c0_24 = arith.constant 0 : index
    %20 = vector.load %arg2[%c0_23, %c128, %c0_24] : memref<2x1152x128xbf16, #tpu.memory_space<vmem>>, vector<1x128x128xbf16>
    %21 = vector.shape_cast %20 : vector<1x128x128xbf16> to vector<128x128xbf16>
    %22 = arith.truncf %19 : vector<64x128xf32> to vector<64x128xbf16>
    %cst_25 = arith.constant dense<0.000000e+00> : vector<64x128xf32>
    %23 = tpu.matmul %22, %21, %cst_25 {dimension_numbers = #tpu.dot_dimension_numbers<[1], [0], [0], [1], [0, 0, 1, 1], [], []>} : vector<64x128xbf16>, vector<128x128xbf16>, vector<64x128xf32> -> vector<64x128xf32>
    %24 = arith.addf %17, %23 : vector<64x128xf32>
    %c0_26 = arith.constant 0 : index
    %c2 = arith.constant 2 : index
    %c0_27 = arith.constant 0 : index
    %25 = vector.load %arg6[%c0_26, %c2, %c0_27] : memref<10x10x128xf32, #tpu.memory_space<vmem>>, vector<8x8x128xf32>
    %26 = vector.shape_cast %25 : vector<8x8x128xf32> to vector<64x128xf32>
    %c0_28 = arith.constant 0 : index
    %c256 = arith.constant 256 : index
    %c0_29 = arith.constant 0 : index
    %27 = vector.load %arg2[%c0_28, %c256, %c0_29] : memref<2x1152x128xbf16, #tpu.memory_space<vmem>>, vector<1x128x128xbf16>
    %28 = vector.shape_cast %27 : vector<1x128x128xbf16> to vector<128x128xbf16>
    %29 = arith.truncf %26 : vector<64x128xf32> to vector<64x128xbf16>
    %cst_30 = arith.constant dense<0.000000e+00> : vector<64x128xf32>
    %30 = tpu.matmul %29, %28, %cst_30 {dimension_numbers = #tpu.dot_dimension_numbers<[1], [0], [0], [1], [0, 0, 1, 1], [], []>} : vector<64x128xbf16>, vector<128x128xbf16>, vector<64x128xf32> -> vector<64x128xf32>
    %31 = arith.addf %24, %30 : vector<64x128xf32>
    %c1_31 = arith.constant 1 : index
    %c0_32 = arith.constant 0 : index
    %c0_33 = arith.constant 0 : index
    %32 = vector.load %arg6[%c1_31, %c0_32, %c0_33] : memref<10x10x128xf32, #tpu.memory_space<vmem>>, vector<8x8x128xf32>
    %33 = vector.shape_cast %32 : vector<8x8x128xf32> to vector<64x128xf32>
    %c0_34 = arith.constant 0 : index
    %c384 = arith.constant 384 : index
    %c0_35 = arith.constant 0 : index
    %34 = vector.load %arg2[%c0_34, %c384, %c0_35] : memref<2x1152x128xbf16, #tpu.memory_space<vmem>>, vector<1x128x128xbf16>
    %35 = vector.shape_cast %34 : vector<1x128x128xbf16> to vector<128x128xbf16>
    %36 = arith.truncf %33 : vector<64x128xf32> to vector<64x128xbf16>
    %cst_36 = arith.constant dense<0.000000e+00> : vector<64x128xf32>
    %37 = tpu.matmul %36, %35, %cst_36 {dimension_numbers = #tpu.dot_dimension_numbers<[1], [0], [0], [1], [0, 0, 1, 1], [], []>} : vector<64x128xbf16>, vector<128x128xbf16>, vector<64x128xf32> -> vector<64x128xf32>
    %38 = arith.addf %31, %37 : vector<64x128xf32>
    %c1_37 = arith.constant 1 : index
    %c1_38 = arith.constant 1 : index
    %c0_39 = arith.constant 0 : index
    %39 = vector.load %arg6[%c1_37, %c1_38, %c0_39] : memref<10x10x128xf32, #tpu.memory_space<vmem>>, vector<8x8x128xf32>
    %40 = vector.shape_cast %39 : vector<8x8x128xf32> to vector<64x128xf32>
    %c0_40 = arith.constant 0 : index
    %c512 = arith.constant 512 : index
    %c0_41 = arith.constant 0 : index
    %41 = vector.load %arg2[%c0_40, %c512, %c0_41] : memref<2x1152x128xbf16, #tpu.memory_space<vmem>>, vector<1x128x128xbf16>
    %42 = vector.shape_cast %41 : vector<1x128x128xbf16> to vector<128x128xbf16>
    %43 = arith.truncf %40 : vector<64x128xf32> to vector<64x128xbf16>
    %cst_42 = arith.constant dense<0.000000e+00> : vector<64x128xf32>
    %44 = tpu.matmul %43, %42, %cst_42 {dimension_numbers = #tpu.dot_dimension_numbers<[1], [0], [0], [1], [0, 0, 1, 1], [], []>} : vector<64x128xbf16>, vector<128x128xbf16>, vector<64x128xf32> -> vector<64x128xf32>
    %45 = arith.addf %38, %44 : vector<64x128xf32>
    %c1_43 = arith.constant 1 : index
    %c2_44 = arith.constant 2 : index
    %c0_45 = arith.constant 0 : index
    %46 = vector.load %arg6[%c1_43, %c2_44, %c0_45] : memref<10x10x128xf32, #tpu.memory_space<vmem>>, vector<8x8x128xf32>
    %47 = vector.shape_cast %46 : vector<8x8x128xf32> to vector<64x128xf32>
    %c0_46 = arith.constant 0 : index
    %c640 = arith.constant 640 : index
    %c0_47 = arith.constant 0 : index
    %48 = vector.load %arg2[%c0_46, %c640, %c0_47] : memref<2x1152x128xbf16, #tpu.memory_space<vmem>>, vector<1x128x128xbf16>
    %49 = vector.shape_cast %48 : vector<1x128x128xbf16> to vector<128x128xbf16>
    %50 = arith.truncf %47 : vector<64x128xf32> to vector<64x128xbf16>
    %cst_48 = arith.constant dense<0.000000e+00> : vector<64x128xf32>
    %51 = tpu.matmul %50, %49, %cst_48 {dimension_numbers = #tpu.dot_dimension_numbers<[1], [0], [0], [1], [0, 0, 1, 1], [], []>} : vector<64x128xbf16>, vector<128x128xbf16>, vector<64x128xf32> -> vector<64x128xf32>
    %52 = arith.addf %45, %51 : vector<64x128xf32>
    %c2_49 = arith.constant 2 : index
    %c0_50 = arith.constant 0 : index
    %c0_51 = arith.constant 0 : index
    %53 = vector.load %arg6[%c2_49, %c0_50, %c0_51] : memref<10x10x128xf32, #tpu.memory_space<vmem>>, vector<8x8x128xf32>
    %54 = vector.shape_cast %53 : vector<8x8x128xf32> to vector<64x128xf32>
    %c0_52 = arith.constant 0 : index
    %c768 = arith.constant 768 : index
    %c0_53 = arith.constant 0 : index
    %55 = vector.load %arg2[%c0_52, %c768, %c0_53] : memref<2x1152x128xbf16, #tpu.memory_space<vmem>>, vector<1x128x128xbf16>
    %56 = vector.shape_cast %55 : vector<1x128x128xbf16> to vector<128x128xbf16>
    %57 = arith.truncf %54 : vector<64x128xf32> to vector<64x128xbf16>
    %cst_54 = arith.constant dense<0.000000e+00> : vector<64x128xf32>
    %58 = tpu.matmul %57, %56, %cst_54 {dimension_numbers = #tpu.dot_dimension_numbers<[1], [0], [0], [1], [0, 0, 1, 1], [], []>} : vector<64x128xbf16>, vector<128x128xbf16>, vector<64x128xf32> -> vector<64x128xf32>
    %59 = arith.addf %52, %58 : vector<64x128xf32>
    %c2_55 = arith.constant 2 : index
    %c1_56 = arith.constant 1 : index
    %c0_57 = arith.constant 0 : index
    %60 = vector.load %arg6[%c2_55, %c1_56, %c0_57] : memref<10x10x128xf32, #tpu.memory_space<vmem>>, vector<8x8x128xf32>
    %61 = vector.shape_cast %60 : vector<8x8x128xf32> to vector<64x128xf32>
    %c0_58 = arith.constant 0 : index
    %c896 = arith.constant 896 : index
    %c0_59 = arith.constant 0 : index
    %62 = vector.load %arg2[%c0_58, %c896, %c0_59] : memref<2x1152x128xbf16, #tpu.memory_space<vmem>>, vector<1x128x128xbf16>
    %63 = vector.shape_cast %62 : vector<1x128x128xbf16> to vector<128x128xbf16>
    %64 = arith.truncf %61 : vector<64x128xf32> to vector<64x128xbf16>
    %cst_60 = arith.constant dense<0.000000e+00> : vector<64x128xf32>
    %65 = tpu.matmul %64, %63, %cst_60 {dimension_numbers = #tpu.dot_dimension_numbers<[1], [0], [0], [1], [0, 0, 1, 1], [], []>} : vector<64x128xbf16>, vector<128x128xbf16>, vector<64x128xf32> -> vector<64x128xf32>
    %66 = arith.addf %59, %65 : vector<64x128xf32>
    %c2_61 = arith.constant 2 : index
    %c2_62 = arith.constant 2 : index
    %c0_63 = arith.constant 0 : index
    %67 = vector.load %arg6[%c2_61, %c2_62, %c0_63] : memref<10x10x128xf32, #tpu.memory_space<vmem>>, vector<8x8x128xf32>
    %68 = vector.shape_cast %67 : vector<8x8x128xf32> to vector<64x128xf32>
    %c0_64 = arith.constant 0 : index
    %c1024 = arith.constant 1024 : index
    %c0_65 = arith.constant 0 : index
    %69 = vector.load %arg2[%c0_64, %c1024, %c0_65] : memref<2x1152x128xbf16, #tpu.memory_space<vmem>>, vector<1x128x128xbf16>
    %70 = vector.shape_cast %69 : vector<1x128x128xbf16> to vector<128x128xbf16>
    %71 = arith.truncf %68 : vector<64x128xf32> to vector<64x128xbf16>
    %cst_66 = arith.constant dense<0.000000e+00> : vector<64x128xf32>
    %72 = tpu.matmul %71, %70, %cst_66 {dimension_numbers = #tpu.dot_dimension_numbers<[1], [0], [0], [1], [0, 0, 1, 1], [], []>} : vector<64x128xbf16>, vector<128x128xbf16>, vector<64x128xf32> -> vector<64x128xf32>
    %73 = arith.addf %66, %72 : vector<64x128xf32>
    %c0_67 = arith.constant 0 : index
    %c0_68 = arith.constant 0 : index
    %c0_69 = arith.constant 0 : index
    %74 = vector.load %arg3[%c0_67, %c0_68, %c0_69] : memref<2x1x128xf32, #tpu.memory_space<vmem>>, vector<1x1x128xf32>
    %75 = vector.shape_cast %74 : vector<1x1x128xf32> to vector<1x128xf32>
    %76 = vector.broadcast %75 : vector<1x128xf32> to vector<64x128xf32>
    %77 = arith.mulf %73, %76 : vector<64x128xf32>
    %c0_70 = arith.constant 0 : index
    %c0_71 = arith.constant 0 : index
    %c0_72 = arith.constant 0 : index
    %78 = vector.load %arg4[%c0_70, %c0_71, %c0_72] : memref<2x1x128xf32, #tpu.memory_space<vmem>>, vector<1x1x128xf32>
    %79 = vector.shape_cast %78 : vector<1x1x128xf32> to vector<1x128xf32>
    %80 = vector.broadcast %79 : vector<1x128xf32> to vector<64x128xf32>
    %81 = arith.addf %77, %80 : vector<64x128xf32>
    %cst_73 = arith.constant 0.000000e+00 : f32
    %82 = vector.broadcast %cst_73 : f32 to vector<64x128xf32>
    %83 = arith.maximumf %81, %82 : vector<64x128xf32>
    %84 = vector.shape_cast %83 : vector<64x128xf32> to vector<8x8x128xf32>
    %c1_74 = arith.constant 1 : index
    %c1_75 = arith.constant 1 : index
    %c0_76 = arith.constant 0 : index
    %85 = vector.load %arg7[%c1_74, %c1_75, %c0_76] : memref<10x10x128xf32, #tpu.memory_space<vmem>>, vector<8x8x128xf32>
    tpu.vector_store %arg7[%c1_74, %c1_75, %c0_76], %84 {strides = array<i32>} : memref<10x10x128xf32, #tpu.memory_space<vmem>>, vector<8x8x128xf32>,
    %c0_77 = arith.constant 0 : index
    %c0_78 = arith.constant 0 : index
    %c0_79 = arith.constant 0 : index
    %86 = vector.load %arg7[%c0_77, %c0_78, %c0_79] : memref<10x10x128xf32, #tpu.memory_space<vmem>>, vector<8x8x128xf32>
    %87 = vector.shape_cast %86 : vector<8x8x128xf32> to vector<64x128xf32>
    %c1_80 = arith.constant 1 : index
    %c0_81 = arith.constant 0 : index
    %c0_82 = arith.constant 0 : index
    %88 = vector.load %arg2[%c1_80, %c0_81, %c0_82] : memref<2x1152x128xbf16, #tpu.memory_space<vmem>>, vector<1x128x128xbf16>
    %89 = vector.shape_cast %88 : vector<1x128x128xbf16> to vector<128x128xbf16>
    %90 = arith.truncf %87 : vector<64x128xf32> to vector<64x128xbf16>
    %cst_83 = arith.constant dense<0.000000e+00> : vector<64x128xf32>
    %91 = tpu.matmul %90, %89, %cst_83 {dimension_numbers = #tpu.dot_dimension_numbers<[1], [0], [0], [1], [0, 0, 1, 1], [], []>} : vector<64x128xbf16>, vector<128x128xbf16>, vector<64x128xf32> -> vector<64x128xf32>
    %c0_84 = arith.constant 0 : index
    %c1_85 = arith.constant 1 : index
    %c0_86 = arith.constant 0 : index
    %92 = vector.load %arg7[%c0_84, %c1_85, %c0_86] : memref<10x10x128xf32, #tpu.memory_space<vmem>>, vector<8x8x128xf32>
    %93 = vector.shape_cast %92 : vector<8x8x128xf32> to vector<64x128xf32>
    %c1_87 = arith.constant 1 : index
    %c128_88 = arith.constant 128 : index
    %c0_89 = arith.constant 0 : index
    %94 = vector.load %arg2[%c1_87, %c128_88, %c0_89] : memref<2x1152x128xbf16, #tpu.memory_space<vmem>>, vector<1x128x128xbf16>
    %95 = vector.shape_cast %94 : vector<1x128x128xbf16> to vector<128x128xbf16>
    %96 = arith.truncf %93 : vector<64x128xf32> to vector<64x128xbf16>
    %cst_90 = arith.constant dense<0.000000e+00> : vector<64x128xf32>
    %97 = tpu.matmul %96, %95, %cst_90 {dimension_numbers = #tpu.dot_dimension_numbers<[1], [0], [0], [1], [0, 0, 1, 1], [], []>} : vector<64x128xbf16>, vector<128x128xbf16>, vector<64x128xf32> -> vector<64x128xf32>
    %98 = arith.addf %91, %97 : vector<64x128xf32>
    %c0_91 = arith.constant 0 : index
    %c2_92 = arith.constant 2 : index
    %c0_93 = arith.constant 0 : index
    %99 = vector.load %arg7[%c0_91, %c2_92, %c0_93] : memref<10x10x128xf32, #tpu.memory_space<vmem>>, vector<8x8x128xf32>
    %100 = vector.shape_cast %99 : vector<8x8x128xf32> to vector<64x128xf32>
    %c1_94 = arith.constant 1 : index
    %c256_95 = arith.constant 256 : index
    %c0_96 = arith.constant 0 : index
    %101 = vector.load %arg2[%c1_94, %c256_95, %c0_96] : memref<2x1152x128xbf16, #tpu.memory_space<vmem>>, vector<1x128x128xbf16>
    %102 = vector.shape_cast %101 : vector<1x128x128xbf16> to vector<128x128xbf16>
    %103 = arith.truncf %100 : vector<64x128xf32> to vector<64x128xbf16>
    %cst_97 = arith.constant dense<0.000000e+00> : vector<64x128xf32>
    %104 = tpu.matmul %103, %102, %cst_97 {dimension_numbers = #tpu.dot_dimension_numbers<[1], [0], [0], [1], [0, 0, 1, 1], [], []>} : vector<64x128xbf16>, vector<128x128xbf16>, vector<64x128xf32> -> vector<64x128xf32>
    %105 = arith.addf %98, %104 : vector<64x128xf32>
    %c1_98 = arith.constant 1 : index
    %c0_99 = arith.constant 0 : index
    %c0_100 = arith.constant 0 : index
    %106 = vector.load %arg7[%c1_98, %c0_99, %c0_100] : memref<10x10x128xf32, #tpu.memory_space<vmem>>, vector<8x8x128xf32>
    %107 = vector.shape_cast %106 : vector<8x8x128xf32> to vector<64x128xf32>
    %c1_101 = arith.constant 1 : index
    %c384_102 = arith.constant 384 : index
    %c0_103 = arith.constant 0 : index
    %108 = vector.load %arg2[%c1_101, %c384_102, %c0_103] : memref<2x1152x128xbf16, #tpu.memory_space<vmem>>, vector<1x128x128xbf16>
    %109 = vector.shape_cast %108 : vector<1x128x128xbf16> to vector<128x128xbf16>
    %110 = arith.truncf %107 : vector<64x128xf32> to vector<64x128xbf16>
    %cst_104 = arith.constant dense<0.000000e+00> : vector<64x128xf32>
    %111 = tpu.matmul %110, %109, %cst_104 {dimension_numbers = #tpu.dot_dimension_numbers<[1], [0], [0], [1], [0, 0, 1, 1], [], []>} : vector<64x128xbf16>, vector<128x128xbf16>, vector<64x128xf32> -> vector<64x128xf32>
    %112 = arith.addf %105, %111 : vector<64x128xf32>
    %c1_105 = arith.constant 1 : index
    %c1_106 = arith.constant 1 : index
    %c0_107 = arith.constant 0 : index
    %113 = vector.load %arg7[%c1_105, %c1_106, %c0_107] : memref<10x10x128xf32, #tpu.memory_space<vmem>>, vector<8x8x128xf32>
    %114 = vector.shape_cast %113 : vector<8x8x128xf32> to vector<64x128xf32>
    %c1_108 = arith.constant 1 : index
    %c512_109 = arith.constant 512 : index
    %c0_110 = arith.constant 0 : index
    %115 = vector.load %arg2[%c1_108, %c512_109, %c0_110] : memref<2x1152x128xbf16, #tpu.memory_space<vmem>>, vector<1x128x128xbf16>
    %116 = vector.shape_cast %115 : vector<1x128x128xbf16> to vector<128x128xbf16>
    %117 = arith.truncf %114 : vector<64x128xf32> to vector<64x128xbf16>
    %cst_111 = arith.constant dense<0.000000e+00> : vector<64x128xf32>
    %118 = tpu.matmul %117, %116, %cst_111 {dimension_numbers = #tpu.dot_dimension_numbers<[1], [0], [0], [1], [0, 0, 1, 1], [], []>} : vector<64x128xbf16>, vector<128x128xbf16>, vector<64x128xf32> -> vector<64x128xf32>
    %119 = arith.addf %112, %118 : vector<64x128xf32>
    %c1_112 = arith.constant 1 : index
    %c2_113 = arith.constant 2 : index
    %c0_114 = arith.constant 0 : index
    %120 = vector.load %arg7[%c1_112, %c2_113, %c0_114] : memref<10x10x128xf32, #tpu.memory_space<vmem>>, vector<8x8x128xf32>
    %121 = vector.shape_cast %120 : vector<8x8x128xf32> to vector<64x128xf32>
    %c1_115 = arith.constant 1 : index
    %c640_116 = arith.constant 640 : index
    %c0_117 = arith.constant 0 : index
    %122 = vector.load %arg2[%c1_115, %c640_116, %c0_117] : memref<2x1152x128xbf16, #tpu.memory_space<vmem>>, vector<1x128x128xbf16>
    %123 = vector.shape_cast %122 : vector<1x128x128xbf16> to vector<128x128xbf16>
    %124 = arith.truncf %121 : vector<64x128xf32> to vector<64x128xbf16>
    %cst_118 = arith.constant dense<0.000000e+00> : vector<64x128xf32>
    %125 = tpu.matmul %124, %123, %cst_118 {dimension_numbers = #tpu.dot_dimension_numbers<[1], [0], [0], [1], [0, 0, 1, 1], [], []>} : vector<64x128xbf16>, vector<128x128xbf16>, vector<64x128xf32> -> vector<64x128xf32>
    %126 = arith.addf %119, %125 : vector<64x128xf32>
    %c2_119 = arith.constant 2 : index
    %c0_120 = arith.constant 0 : index
    %c0_121 = arith.constant 0 : index
    %127 = vector.load %arg7[%c2_119, %c0_120, %c0_121] : memref<10x10x128xf32, #tpu.memory_space<vmem>>, vector<8x8x128xf32>
    %128 = vector.shape_cast %127 : vector<8x8x128xf32> to vector<64x128xf32>
    %c1_122 = arith.constant 1 : index
    %c768_123 = arith.constant 768 : index
    %c0_124 = arith.constant 0 : index
    %129 = vector.load %arg2[%c1_122, %c768_123, %c0_124] : memref<2x1152x128xbf16, #tpu.memory_space<vmem>>, vector<1x128x128xbf16>
    %130 = vector.shape_cast %129 : vector<1x128x128xbf16> to vector<128x128xbf16>
    %131 = arith.truncf %128 : vector<64x128xf32> to vector<64x128xbf16>
    %cst_125 = arith.constant dense<0.000000e+00> : vector<64x128xf32>
    %132 = tpu.matmul %131, %130, %cst_125 {dimension_numbers = #tpu.dot_dimension_numbers<[1], [0], [0], [1], [0, 0, 1, 1], [], []>} : vector<64x128xbf16>, vector<128x128xbf16>, vector<64x128xf32> -> vector<64x128xf32>
    %133 = arith.addf %126, %132 : vector<64x128xf32>
    %c2_126 = arith.constant 2 : index
    %c1_127 = arith.constant 1 : index
    %c0_128 = arith.constant 0 : index
    %134 = vector.load %arg7[%c2_126, %c1_127, %c0_128] : memref<10x10x128xf32, #tpu.memory_space<vmem>>, vector<8x8x128xf32>
    %135 = vector.shape_cast %134 : vector<8x8x128xf32> to vector<64x128xf32>
    %c1_129 = arith.constant 1 : index
    %c896_130 = arith.constant 896 : index
    %c0_131 = arith.constant 0 : index
    %136 = vector.load %arg2[%c1_129, %c896_130, %c0_131] : memref<2x1152x128xbf16, #tpu.memory_space<vmem>>, vector<1x128x128xbf16>
    %137 = vector.shape_cast %136 : vector<1x128x128xbf16> to vector<128x128xbf16>
    %138 = arith.truncf %135 : vector<64x128xf32> to vector<64x128xbf16>
    %cst_132 = arith.constant dense<0.000000e+00> : vector<64x128xf32>
    %139 = tpu.matmul %138, %137, %cst_132 {dimension_numbers = #tpu.dot_dimension_numbers<[1], [0], [0], [1], [0, 0, 1, 1], [], []>} : vector<64x128xbf16>, vector<128x128xbf16>, vector<64x128xf32> -> vector<64x128xf32>
    %140 = arith.addf %133, %139 : vector<64x128xf32>
    %c2_133 = arith.constant 2 : index
    %c2_134 = arith.constant 2 : index
    %c0_135 = arith.constant 0 : index
    %141 = vector.load %arg7[%c2_133, %c2_134, %c0_135] : memref<10x10x128xf32, #tpu.memory_space<vmem>>, vector<8x8x128xf32>
    %142 = vector.shape_cast %141 : vector<8x8x128xf32> to vector<64x128xf32>
    %c1_136 = arith.constant 1 : index
    %c1024_137 = arith.constant 1024 : index
    %c0_138 = arith.constant 0 : index
    %143 = vector.load %arg2[%c1_136, %c1024_137, %c0_138] : memref<2x1152x128xbf16, #tpu.memory_space<vmem>>, vector<1x128x128xbf16>
    %144 = vector.shape_cast %143 : vector<1x128x128xbf16> to vector<128x128xbf16>
    %145 = arith.truncf %142 : vector<64x128xf32> to vector<64x128xbf16>
    %cst_139 = arith.constant dense<0.000000e+00> : vector<64x128xf32>
    %146 = tpu.matmul %145, %144, %cst_139 {dimension_numbers = #tpu.dot_dimension_numbers<[1], [0], [0], [1], [0, 0, 1, 1], [], []>} : vector<64x128xbf16>, vector<128x128xbf16>, vector<64x128xf32> -> vector<64x128xf32>
    %147 = arith.addf %140, %146 : vector<64x128xf32>
    %c1_140 = arith.constant 1 : index
    %c0_141 = arith.constant 0 : index
    %c0_142 = arith.constant 0 : index
    %148 = vector.load %arg3[%c1_140, %c0_141, %c0_142] : memref<2x1x128xf32, #tpu.memory_space<vmem>>, vector<1x1x128xf32>
    %149 = vector.shape_cast %148 : vector<1x1x128xf32> to vector<1x128xf32>
    %150 = vector.broadcast %149 : vector<1x128xf32> to vector<64x128xf32>
    %151 = arith.mulf %147, %150 : vector<64x128xf32>
    %c1_143 = arith.constant 1 : index
    %c0_144 = arith.constant 0 : index
    %c0_145 = arith.constant 0 : index
    %152 = vector.load %arg4[%c1_143, %c0_144, %c0_145] : memref<2x1x128xf32, #tpu.memory_space<vmem>>, vector<1x1x128xf32>
    %153 = vector.shape_cast %152 : vector<1x1x128xf32> to vector<1x128xf32>
    %154 = vector.broadcast %153 : vector<1x128xf32> to vector<64x128xf32>
    %155 = arith.addf %151, %154 : vector<64x128xf32>
    %cst_146 = arith.constant 0.000000e+00 : f32
    %156 = vector.broadcast %cst_146 : f32 to vector<64x128xf32>
    %157 = arith.maximumf %155, %156 : vector<64x128xf32>
    %c0_147 = arith.constant 0 : index
    %c0_148 = arith.constant 0 : index
    %c0_149 = arith.constant 0 : index
    %158 = vector.load %arg5[%c0_147, %c0_148, %c0_149] : memref<1x64x128xf32, #tpu.memory_space<vmem>>, vector<1x64x128xf32>
    %159 = vector.shape_cast %158 : vector<1x64x128xf32> to vector<64x128xf32>
    %160 = vector.shape_cast %157 : vector<64x128xf32> to vector<1x64x128xf32>
    tpu.vector_store %arg5[%c0_147, %c0_148, %c0_149], %160 {strides = array<i32>} : memref<1x64x128xf32, #tpu.memory_space<vmem>>, vector<1x64x128xf32>,
    return
  }
  func.func @transform_0(%arg0: i32) -> (i32, i32, i32, i32) {
    %c0_i32 = arith.constant 0 : i32
    %c0_i32_0 = arith.constant 0 : i32
    %c0_i32_1 = arith.constant 0 : i32
    %c0_i32_2 = arith.constant 0 : i32
    return %arg0, %c0_i32, %c0_i32_0, %c0_i32_1 : i32, i32, i32, i32
  }
  func.func @transform_1(%arg0: i32) -> (i32, i32, i32) {
    %c0_i32 = arith.constant 0 : i32
    %c0_i32_0 = arith.constant 0 : i32
    %c0_i32_1 = arith.constant 0 : i32
    %c0_i32_2 = arith.constant 0 : i32
    return %c0_i32, %c0_i32_0, %c0_i32_1 : i32, i32, i32
  }
  func.func @transform_2(%arg0: i32) -> (i32, i32, i32) {
    %c0_i32 = arith.constant 0 : i32
    %c0_i32_0 = arith.constant 0 : i32
    %c0_i32_1 = arith.constant 0 : i32
    %c0_i32_2 = arith.constant 0 : i32
    return %c0_i32, %c0_i32_0, %c0_i32_1 : i32, i32, i32
  }
  func.func @transform_3(%arg0: i32) -> (i32, i32, i32) {
    %c0_i32 = arith.constant 0 : i32
    %c0_i32_0 = arith.constant 0 : i32
    %c0_i32_1 = arith.constant 0 : i32
    %c0_i32_2 = arith.constant 0 : i32
    return %c0_i32, %c0_i32_0, %c0_i32_1 : i32, i32, i32
  }
  func.func @transform_4(%arg0: i32) -> (i32, i32, i32) {
    %c0_i32 = arith.constant 0 : i32
    %c0_i32_0 = arith.constant 0 : i32
    %c0_i32_1 = arith.constant 0 : i32
    return %arg0, %c0_i32, %c0_i32_0 : i32, i32, i32
  }
}

</mosaic_0001>

<llo_original>
// kernel: down_block_forward.1
$region0: #{down_block_forward.1}
  #allocation0 [shape = 'u32[]', space=smem, size = 0x4, offset = 0x4, fixed_abs, tag = 'smem constant byte address 0x4 - core index']
  #allocation1 [shape = 'u32[144,128]{1,0:T(1,128)}', space=vmem, size = 0x12000, scoped, tag = 'internal scratch']
  #allocation2 [shape = 'f32[10,10,128]{2,1,0:T(8,128)}', space=vmem, size = 0x14000, scoped, tag = 'scratch operand']
  #allocation3 [shape = 'f32[10,10,128]{2,1,0:T(8,128)}', space=vmem, size = 0x14000, scoped, tag = 'scratch operand']
  %s0 = inlined_call_operand.vmem [shape: f32[2,16,8,8], index: 0, kind: input, shape index: {}]
  %s1 = inlined_call_operand.vmem [shape: bf16[2,1152,128], index: 1, kind: input, shape index: {}]
  %s2 = inlined_call_operand.vmem [shape: f32[2,1,128], index: 2, kind: input, shape index: {}]
  %s3 = inlined_call_operand.vmem [shape: f32[2,1,128], index: 3, kind: input, shape index: {}]
  %s4 = inlined_call_operand.vmem [shape: f32[2,64,128], index: 4, kind: output, shape index: {}]
  %s5 = sld [smem:[#allocation0]]
  $region49: #{down_block_forward.1} parent=0
    _
  %s7 = ssub.s32 1, %s5
  %s8 = scalar_select 0, %s7, %s5
  loop: start=0, step=1, limit=4
  $region2: #{down_block_forward.1} parent=0 // loop_pre_header
    _
  $region3: #{down_block_forward.1} parent=0 // loop_header
    %s10 = sphi 0, %s14
    %p11 = scmp.ge.s32.totalorder %s10, 4
    %s20 = sphi 0, %s22
    %s23 = sphi 0, %s20
    %s24 = sphi 0, %s23
    %s40 = sphi 0, %s24
    %s44 = sphi 0, %s44
    %s46 = sphi 0, %s44
    %s47 = sphi 0, %s46
    %s61 = sphi 0, %s47
    %s65 = sphi 0, %s65
    %s67 = sphi 0, %s65
    %s68 = sphi 0, %s67
    %s82 = sphi 0, %s68
    %s86 = sphi 0, %s86
    %s88 = sphi 0, %s86
    %s89 = sphi 0, %s88
    %s103 = sphi 0, %s89
    %s109 = sphi 0, %s111
    %s112 = sphi 0, %s109
    %s113 = sphi 0, %s112
    %s129 = sphi 0, %s113
  $region4: #{down_block_forward.1} parent=0 // loop_header_branch
    %13 = sbr.rel (%p11) target = $region8
  $region5: #{down_block_forward.1} parent=0 // loop_body
    %s15 = ssub.s32 %s10, 1
    %s16 = ssub.s32 %s10, 2
    %s17 = sadd.s32 %s10, 1
    %s18 = ssub.s32 %s10, %s17
    %p19 = scmp.eq.s32.totalorder %s18, 0
    %s21 = sadd.s32 %s20, 1
    %s22 = scalar_select %p19, %s20, %s21
    %p25 = pneg %p19
    %p26 = scmp.eq.s32.totalorder %s10, 1
    %p27 = por %p25, %p26
    %p28 = scmp.ne.s32.totalorder %s20, %s23
    %p29 = scmp.eq.s32.totalorder %s10, 0
    %p30 = por %p28, %p29
    %p31 = scmp.ne.s32.totalorder %s20, %s23
    %p32 = scmp.eq.s32.totalorder %s15, 1
    %p33 = por %p31, %p32
    %p34 = scmp.ne.s32.totalorder %s23, %s24
    %p35 = scmp.eq.s32.totalorder %s15, 0
    %p36 = por %p34, %p35
    %p37 = scmp.ne.s32.totalorder %s23, %s24
    %p38 = scmp.eq.s32.totalorder %s16, 1
    %p39 = por %p37, %p38
    %p41 = scmp.ne.s32.totalorder %s24, %s40
    %p42 = scmp.eq.s32.totalorder %s16, 0
    %p43 = por %p41, %p42
    %s45 = sadd.s32 %s44, 1
    %p48 = scmp.eq.s32.totalorder %s10, 1
    %p49 = scmp.ne.s32.totalorder %s44, %s46
    %p50 = scmp.eq.s32.totalorder %s10, 0
    %p51 = por %p49, %p50
    %p52 = scmp.ne.s32.totalorder %s44, %s46
    %p53 = scmp.eq.s32.totalorder %s15, 1
    %p54 = por %p52, %p53
    %p55 = scmp.ne.s32.totalorder %s46, %s47
    %p56 = scmp.eq.s32.totalorder %s15, 0
    %p57 = por %p55, %p56
    %p58 = scmp.ne.s32.totalorder %s46, %s47
    %p59 = scmp.eq.s32.totalorder %s16, 1
    %p60 = por %p58, %p59
    %p62 = scmp.ne.s32.totalorder %s47, %s61
    %p63 = scmp.eq.s32.totalorder %s16, 0
    %p64 = por %p62, %p63
    %s66 = sadd.s32 %s65, 1
    %p69 = scmp.eq.s32.totalorder %s10, 1
    %p70 = scmp.ne.s32.totalorder %s65, %s67
    %p71 = scmp.eq.s32.totalorder %s10, 0
    %p72 = por %p70, %p71
    %p73 = scmp.ne.s32.totalorder %s65, %s67
    %p74 = scmp.eq.s32.totalorder %s15, 1
    %p75 = por %p73, %p74
    %p76 = scmp.ne.s32.totalorder %s67, %s68
    %p77 = scmp.eq.s32.totalorder %s15, 0
    %p78 = por %p76, %p77
    %p79 = scmp.ne.s32.totalorder %s67, %s68
    %p80 = scmp.eq.s32.totalorder %s16, 1
    %p81 = por %p79, %p80
    %p83 = scmp.ne.s32.totalorder %s68, %s82
    %p84 = scmp.eq.s32.totalorder %s16, 0
    %p85 = por %p83, %p84
    %s87 = sadd.s32 %s86, 1
    %p90 = scmp.eq.s32.totalorder %s10, 1
    %p91 = scmp.ne.s32.totalorder %s86, %s88
    %p92 = scmp.eq.s32.totalorder %s10, 0
    %p93 = por %p91, %p92
    %p94 = scmp.ne.s32.totalorder %s86, %s88
    %p95 = scmp.eq.s32.totalorder %s15, 1
    %p96 = por %p94, %p95
    %p97 = scmp.ne.s32.totalorder %s88, %s89
    %p98 = scmp.eq.s32.totalorder %s15, 0
    %p99 = por %p97, %p98
    %p100 = scmp.ne.s32.totalorder %s88, %s89
    %p101 = scmp.eq.s32.totalorder %s16, 1
    %p102 = por %p100, %p101
    %p104 = scmp.ne.s32.totalorder %s89, %s103
    %p105 = scmp.eq.s32.totalorder %s16, 0
    %p106 = por %p104, %p105
    %s107 = ssub.s32 %s10, %s17
    %p108 = scmp.eq.s32.totalorder %s107, 0
    %s110 = sadd.s32 %s109, 1
    %s111 = scalar_select %p108, %s109, %s110
    %p114 = pneg %p108
    %p115 = scmp.eq.s32.totalorder %s10, 1
    %p116 = por %p114, %p115
    %p117 = scmp.ne.s32.totalorder %s109, %s112
    %p118 = scmp.eq.s32.totalorder %s10, 0
    %p119 = por %p117, %p118
    %p120 = scmp.ne.s32.totalorder %s109, %s112
    %p121 = scmp.eq.s32.totalorder %s15, 1
    %p122 = por %p120, %p121
    %p123 = scmp.ne.s32.totalorder %s112, %s113
    %p124 = scmp.eq.s32.totalorder %s15, 0
    %p125 = por %p123, %p124
    %p126 = scmp.ne.s32.totalorder %s112, %s113
    %p127 = scmp.eq.s32.totalorder %s16, 1
    %p128 = por %p126, %p127
    %p130 = scmp.ne.s32.totalorder %s113, %s129
    %p131 = scmp.eq.s32.totalorder %s16, 0
    %p132 = por %p130, %p131
    %p133 = scmp.le.s32.totalorder 1, %s10
    %p134 = scmp.lt.s32.totalorder %s10, 3
    %p135 = pnand %p133, %p134
    %p136 = pneg %p135
    // Predicated region
    $region9: #{down_block_forward.1} parent=5 // pred_check
      _
    $region10: #{down_block_forward.1} parent=5 // pred_check_branch
      %138 = sbr.rel (%p135) target = $region12
    $region11: #{down_block_forward.1} parent=5 // pred_region
      %s139 = ssub.s32 %s10, 1
      // Predicated region
      $region13: #{down_block_forward.1} parent=11 // pred_check
        %p140 = pneg %p57
      $region14: #{down_block_forward.1} parent=11 // pred_check_branch
        %142 = sbr.rel (%p140) target = $region16
      $region15: #{down_block_forward.1} parent=11 // pred_region
        _
      $region16: #{down_block_forward.1} parent=11 // pred_fallthru
        _
      // Predicated region
      $region17: #{down_block_forward.1} parent=11 // pred_check
        %p143 = pneg %p78
      $region18: #{down_block_forward.1} parent=11 // pred_check_branch
        %145 = sbr.rel (%p143) target = $region20
      $region19: #{down_block_forward.1} parent=11 // pred_region
        _
      $region20: #{down_block_forward.1} parent=11 // pred_fallthru
        _
      // Predicated region
      $region21: #{down_block_forward.1} parent=11 // pred_check
        %p146 = pneg %p99
      $region22: #{down_block_forward.1} parent=11 // pred_check_branch
        %148 = sbr.rel (%p146) target = $region24
      $region23: #{down_block_forward.1} parent=11 // pred_region
        _
      $region24: #{down_block_forward.1} parent=11 // pred_fallthru
        _
    $region12: #{down_block_forward.1} parent=5 // pred_fallthru
      _
    %p149 = scmp.lt.s32.totalorder %s10, 2
    // Predicated region
    $region25: #{down_block_forward.1} parent=5 // pred_check
      %p150 = pneg %p149
    $region26: #{down_block_forward.1} parent=5 // pred_check_branch
      %152 = sbr.rel (%p150) target = $region28
    $region27: #{down_block_forward.1} parent=5 // pred_region
      // Predicated region
      $region29: #{down_block_forward.1} parent=27 // pred_check
        %p153 = pneg %p30
      $region30: #{down_block_forward.1} parent=27 // pred_check_branch
        %155 = sbr.rel (%p153) target = $region32
      $region31: #{down_block_forward.1} parent=27 // pred_region
        %p156 = scmp.lt.s32.totalorder %s10, 1
        %s157 = scalar_select %p156, %s10, 1
        %s158 = smul.addr %s157, 16
        %s159 = smul.addr %s158, 8
        %s160 = scalar_lea.vmem %s0, %s159
      $region32: #{down_block_forward.1} parent=27 // pred_fallthru
        _
    $region28: #{down_block_forward.1} parent=5 // pred_fallthru
      _
    %p161 = scmp.le.s32.totalorder 1, %s10
    %p162 = scmp.lt.s32.totalorder %s10, 3
    %p163 = pnand %p161, %p162
    %p164 = pneg %p163
    // Predicated region
    $region33: #{down_block_forward.1} parent=5 // pred_check
      _
    $region34: #{down_block_forward.1} parent=5 // pred_check_branch
      %166 = sbr.rel (%p163) target = $region36
    $region35: #{down_block_forward.1} parent=5 // pred_region
      %s167 = ssub.s32 %s10, 1
      %p168 = scmp.lt.s32.totalorder %s15, 1
      %s169 = scalar_select %p168, %s15, 1
      %s170 = smul.addr %s169, 16
      %s171 = smul.addr %s170, 8
      %s172 = scalar_lea.vmem %s0, %s171
      %p173 = pneg %p36
      %p174 = pneg %p33
      %p175 = pneg %p57
      %p176 = pneg %p54
      %p177 = pneg %p78
      %p178 = pneg %p75
      %p179 = pneg %p99
      %p180 = pneg %p96
      %p181 = pneg %p125
      %p182 = pneg %p122
      %p183 = scmp.lt.s32.totalorder %s15, 1
      %s184 = scalar_select %p183, %s15, 1
      %s185 = smul.addr %s184, 8
      %s186 = smul.addr %s185, 8
      %s187 = scalar_lea.vmem %s4, %s186
      %p188 = scmp.lt.s32.totalorder %s15, 1
      %s189 = scalar_select %p188, %s15, 1
      %s190 = smul.addr %s189, 16
      %s191 = smul.addr %s190, 8
      %s192 = scalar_lea.vmem %s0, %s191
      %p193 = scmp.lt.s32.totalorder %s15, 1
      %s194 = scalar_select %p193, %s15, 1
      %s195 = smul.addr %s194, 8
      %s196 = smul.addr %s195, 8
      %s197 = scalar_lea.vmem %s4, %s196
      %199 = vst [vmem:[#allocation2] sm:$0xff] 0.0
      %200 = vst [vmem:[#allocation2 + $0x8] sm:$0x3] 0.0
      %201 = vst [vmem:[#allocation2 + $0x10] sm:$0xff] 0.0
      %202 = vst [vmem:[#allocation2 + $0x18] sm:$0x3] 0.0
      %203 = vst [vmem:[#allocation2 + $0x20] sm:$0xff] 0.0
      %204 = vst [vmem:[#allocation2 + $0x28] sm:$0x3] 0.0
      %205 = vst [vmem:[#allocation2 + $0x30] sm:$0xff] 0.0
      %206 = vst [vmem:[#allocation2 + $0x38] sm:$0x3] 0.0
      %207 = vst [vmem:[#allocation2 + $0x40] sm:$0xff] 0.0
      %208 = vst [vmem:[#allocation2 + $0x48] sm:$0x3] 0.0
      %209 = vst [vmem:[#allocation2 + $0x50] sm:$0xff] 0.0
      %210 = vst [vmem:[#allocation2 + $0x58] sm:$0x3] 0.0
      %211 = vst [vmem:[#allocation2 + $0x60] sm:$0xff] 0.0
      %212 = vst [vmem:[#allocation2 + $0x68] sm:$0x3] 0.0
      %213 = vst [vmem:[#allocation2 + $0x70] sm:$0xff] 0.0
      %214 = vst [vmem:[#allocation2 + $0x78] sm:$0x3] 0.0
      %215 = vst [vmem:[#allocation2 + $0x80] sm:$0xff] 0.0
      %216 = vst [vmem:[#allocation2 + $0x88] sm:$0x3] 0.0
      %217 = vst [vmem:[#allocation2 + $0x90] sm:$0xff] 0.0
      %218 = vst [vmem:[#allocation2 + $0x98] sm:$0x3] 0.0
      %219 = vst [vmem:[#allocation3] sm:$0xff] 0.0
      %220 = vst [vmem:[#allocation3 + $0x8] sm:$0x3] 0.0
      %221 = vst [vmem:[#allocation3 + $0x10] sm:$0xff] 0.0
      %222 = vst [vmem:[#allocation3 + $0x18] sm:$0x3] 0.0
      %223 = vst [vmem:[#allocation3 + $0x20] sm:$0xff] 0.0
      %224 = vst [vmem:[#allocation3 + $0x28] sm:$0x3] 0.0
      %225 = vst [vmem:[#allocation3 + $0x30] sm:$0xff] 0.0
      %226 = vst [vmem:[#allocation3 + $0x38] sm:$0x3] 0.0
      %227 = vst [vmem:[#allocation3 + $0x40] sm:$0xff] 0.0
      %228 = vst [vmem:[#allocation3 + $0x48] sm:$0x3] 0.0
      %229 = vst [vmem:[#allocation3 + $0x50] sm:$0xff] 0.0
      %230 = vst [vmem:[#allocation3 + $0x58] sm:$0x3] 0.0
      %231 = vst [vmem:[#allocation3 + $0x60] sm:$0xff] 0.0
      %232 = vst [vmem:[#allocation3 + $0x68] sm:$0x3] 0.0
      %233 = vst [vmem:[#allocation3 + $0x70] sm:$0xff] 0.0
      %234 = vst [vmem:[#allocation3 + $0x78] sm:$0x3] 0.0
      %235 = vst [vmem:[#allocation3 + $0x80] sm:$0xff] 0.0
      %236 = vst [vmem:[#allocation3 + $0x88] sm:$0x3] 0.0
      %237 = vst [vmem:[#allocation3 + $0x90] sm:$0xff] 0.0
      %238 = vst [vmem:[#allocation3 + $0x98] sm:$0x3] 0.0
      %v239 = vld [vmem:[%s192] sm:$0xff]
      %v240 = vld [vmem:[%s192 + $0x8] sm:$0xff]
      %v241 = vld [vmem:[%s192 + $0x10] sm:$0xff]
      %v242 = vld [vmem:[%s192 + $0x18] sm:$0xff]
      %v243 = vld [vmem:[%s192 + $0x20] sm:$0xff]
      %v244 = vld [vmem:[%s192 + $0x28] sm:$0xff]
      %v245 = vld [vmem:[%s192 + $0x30] sm:$0xff]
      %v246 = vld [vmem:[%s192 + $0x38] sm:$0xff]
      %v247 = vld [vmem:[%s192 + $0x40] sm:$0xff]
      %v248 = vld [vmem:[%s192 + $0x48] sm:$0xff]
      %v249 = vld [vmem:[%s192 + $0x50] sm:$0xff]
      %v250 = vld [vmem:[%s192 + $0x58] sm:$0xff]
      %v251 = vld [vmem:[%s192 + $0x60] sm:$0xff]
      %v252 = vld [vmem:[%s192 + $0x68] sm:$0xff]
      %v253 = vld [vmem:[%s192 + $0x70] sm:$0xff]
      %v254 = vld [vmem:[%s192 + $0x78] sm:$0xff]
      %271 = vrot.lane.b32.xlu0 %v239, 124
      %v272 = vpop.permute.xlu0 %271
      %273 = vrot.lane.b32.xlu0 %v240, 124
      %v274 = vpop.permute.xlu0 %273
      %275 = vrot.lane.b32.xlu0 %v241, 124
      %v276 = vpop.permute.xlu0 %275
      %277 = vrot.lane.b32.xlu0 %v242, 124
      %v278 = vpop.permute.xlu0 %277
      %279 = vrot.lane.b32.xlu0 %v243, 124
      %v280 = vpop.permute.xlu0 %279
      %281 = vrot.lane.b32.xlu0 %v244, 124
      %v282 = vpop.permute.xlu0 %281
      %283 = vrot.lane.b32.xlu0 %v245, 124
      %v284 = vpop.permute.xlu0 %283
      %285 = vrot.lane.b32.xlu0 %v246, 124
      %v286 = vpop.permute.xlu0 %285
      %287 = vrot.lane.b32.xlu0 %v247, 124
      %v288 = vpop.permute.xlu0 %287
      %289 = vrot.lane.b32.xlu0 %v248, 124
      %v290 = vpop.permute.xlu0 %289
      %291 = vrot.lane.b32.xlu0 %v249, 124
      %v292 = vpop.permute.xlu0 %291
      %293 = vrot.lane.b32.xlu0 %v250, 124
      %v294 = vpop.permute.xlu0 %293
      %295 = vrot.lane.b32.xlu0 %v251, 124
      %v296 = vpop.permute.xlu0 %295
      %297 = vrot.lane.b32.xlu0 %v252, 124
      %v298 = vpop.permute.xlu0 %297
      %299 = vrot.lane.b32.xlu0 %v253, 124
      %v300 = vpop.permute.xlu0 %299
      %301 = vrot.lane.b32.xlu0 %v254, 124
      %v302 = vpop.permute.xlu0 %301
      %v319 = vmax.f32 %v239, %v272
      %v320 = vmax.f32 %v240, %v274
      %v321 = vmax.f32 %v241, %v276
      %v322 = vmax.f32 %v242, %v278
      %v323 = vmax.f32 %v243, %v280
      %v324 = vmax.f32 %v244, %v282
      %v325 = vmax.f32 %v245, %v284
      %v326 = vmax.f32 %v246, %v286
      %v327 = vmax.f32 %v247, %v288
      %v328 = vmax.f32 %v248, %v290
      %v329 = vmax.f32 %v249, %v292
      %v330 = vmax.f32 %v250, %v294
      %v331 = vmax.f32 %v251, %v296
      %v332 = vmax.f32 %v252, %v298
      %v333 = vmax.f32 %v253, %v300
      %v334 = vmax.f32 %v254, %v302
      %vm335 = vcmask 31744
      %v336 = vsel %vm335, %v319, -inf
      %v337 = vsel %vm335, %v320, -inf
      %v338 = vmax.f32 %v336, %v337
      %v339 = vsel %vm335, %v321, -inf
      %v340 = vsel %vm335, %v322, -inf
      %v341 = vmax.f32 %v339, %v340
      %v342 = vsel %vm335, %v323, -inf
      %v343 = vsel %vm335, %v324, -inf
      %v344 = vmax.f32 %v342, %v343
      %v345 = vsel %vm335, %v325, -inf
      %v346 = vsel %vm335, %v326, -inf
      %v347 = vmax.f32 %v345, %v346
      %v348 = vsel %vm335, %v327, -inf
      %v349 = vsel %vm335, %v328, -inf
      %v350 = vmax.f32 %v348, %v349
      %v351 = vsel %vm335, %v329, -inf
      %v352 = vsel %vm335, %v330, -inf
      %v353 = vmax.f32 %v351, %v352
      %v354 = vsel %vm335, %v331, -inf
      %v355 = vsel %vm335, %v332, -inf
      %v356 = vmax.f32 %v354, %v355
      %v357 = vsel %vm335, %v333, -inf
      %v358 = vsel %vm335, %v334, -inf
      %v359 = vmax.f32 %v357, %v358
      %s360 = scalar_lea.vmem [#allocation2], 16
      %361 = vst.msk [vmem:[%s360 + $0x1] sm:$0xff] %vm335, %v338
      %362 = vst.msk [vmem:[%s360 + $0x11] sm:$0xff] %vm335, %v341
      %363 = vst.msk [vmem:[%s360 + $0x21] sm:$0xff] %vm335, %v344
      %364 = vst.msk [vmem:[%s360 + $0x31] sm:$0xff] %vm335, %v347
      %365 = vst.msk [vmem:[%s360 + $0x41] sm:$0xff] %vm335, %v350
      %366 = vst.msk [vmem:[%s360 + $0x51] sm:$0xff] %vm335, %v353
      %367 = vst.msk [vmem:[%s360 + $0x61] sm:$0xff] %vm335, %v356
      %368 = vst.msk [vmem:[%s360 + $0x71] sm:$0xff] %vm335, %v359
      %v369 = vld [vmem:[#allocation2] sm:$0xff]
      %v370 = vld [vmem:[#allocation2 + $0x10] sm:$0xff]
      %v371 = vld [vmem:[#allocation2 + $0x20] sm:$0xff]
      %v372 = vld [vmem:[#allocation2 + $0x30] sm:$0xff]
      %v373 = vld [vmem:[#allocation2 + $0x40] sm:$0xff]
      %v374 = vld [vmem:[#allocation2 + $0x50] sm:$0xff]
      %v375 = vld [vmem:[#allocation2 + $0x60] sm:$0xff]
      %v376 = vld [vmem:[#allocation2 + $0x70] sm:$0xff]
      %v377 = vld [vmem:[%s1] sm:$0xf]
      %v378 = vld [vmem:[%s1 + $0x4] sm:$0xf]
      %v379 = vld [vmem:[%s1 + $0x8] sm:$0xf]
      %v380 = vld [vmem:[%s1 + $0xc] sm:$0xf]
      %v381 = vld [vmem:[%s1 + $0x10] sm:$0xf]
      %v382 = vld [vmem:[%s1 + $0x14] sm:$0xf]
      %v383 = vld [vmem:[%s1 + $0x18] sm:$0xf]
      %v384 = vld [vmem:[%s1 + $0x1c] sm:$0xf]
      %v385 = vld [vmem:[%s1 + $0x20] sm:$0xf]
      %v386 = vld [vmem:[%s1 + $0x24] sm:$0xf]
      %v387 = vld [vmem:[%s1 + $0x28] sm:$0xf]
      %v388 = vld [vmem:[%s1 + $0x2c] sm:$0xf]
      %v389 = vld [vmem:[%s1 + $0x30] sm:$0xf]
      %v390 = vld [vmem:[%s1 + $0x34] sm:$0xf]
      %v391 = vld [vmem:[%s1 + $0x38] sm:$0xf]
      %v392 = vld [vmem:[%s1 + $0x3c] sm:$0xf]
      %v393 = vpack.c.bf16 %v370, %v369
      %v394 = vpack.c.bf16 %v372, %v371
      %v395 = vpack.c.bf16 %v374, %v373
      %v396 = vpack.c.bf16 %v376, %v375
      %v397 = vld [vmem:[#allocation2 + $0x1] sm:$0xff]
      %v398 = vld [vmem:[#allocation2 + $0x11] sm:$0xff]
      %v399 = vld [vmem:[#allocation2 + $0x21] sm:$0xff]
      %v400 = vld [vmem:[#allocation2 + $0x31] sm:$0xff]
      %v401 = vld [vmem:[#allocation2 + $0x41] sm:$0xff]
      %v402 = vld [vmem:[#allocation2 + $0x51] sm:$0xff]
      %v403 = vld [vmem:[#allocation2 + $0x61] sm:$0xff]
      %v404 = vld [vmem:[#allocation2 + $0x71] sm:$0xff]
      %v405 = vld [vmem:[%s1 + $0x40] sm:$0xf]
      %v406 = vld [vmem:[%s1 + $0x44] sm:$0xf]
      %v407 = vld [vmem:[%s1 + $0x48] sm:$0xf]
      %v408 = vld [vmem:[%s1 + $0x4c] sm:$0xf]
      %v409 = vld [vmem:[%s1 + $0x50] sm:$0xf]
      %v410 = vld [vmem:[%s1 + $0x54] sm:$0xf]
      %v411 = vld [vmem:[%s1 + $0x58] sm:$0xf]
      %v412 = vld [vmem:[%s1 + $0x5c] sm:$0xf]
      %v413 = vld [vmem:[%s1 + $0x60] sm:$0xf]
      %v414 = vld [vmem:[%s1 + $0x64] sm:$0xf]
      %v415 = vld [vmem:[%s1 + $0x68] sm:$0xf]
      %v416 = vld [vmem:[%s1 + $0x6c] sm:$0xf]
      %v417 = vld [vmem:[%s1 + $0x70] sm:$0xf]
      %v418 = vld [vmem:[%s1 + $0x74] sm:$0xf]
      %v419 = vld [vmem:[%s1 + $0x78] sm:$0xf]
      %v420 = vld [vmem:[%s1 + $0x7c] sm:$0xf]
      %v421 = vpack.c.bf16 %v398, %v397
      %v422 = vpack.c.bf16 %v400, %v399
      %v423 = vpack.c.bf16 %v402, %v401
      %v424 = vpack.c.bf16 %v404, %v403
      %v441 = vunpack.c.l.b16 %v405
      %v442 = vunpack.c.l.b16 %v406
      %v443 = vunpack.c.l.b16 %v407
      %v444 = vunpack.c.l.b16 %v408
      %v445 = vunpack.c.l.b16 %v409
      %v446 = vunpack.c.l.b16 %v410
      %v447 = vunpack.c.l.b16 %v411
      %v448 = vunpack.c.l.b16 %v412
      %v449 = vunpack.c.l.b16 %v413
      %v450 = vunpack.c.l.b16 %v414
      %v451 = vunpack.c.l.b16 %v415
      %v452 = vunpack.c.l.b16 %v416
      %v453 = vunpack.c.l.b16 %v417
      %v454 = vunpack.c.l.b16 %v418
      %v455 = vunpack.c.l.b16 %v419
      %v456 = vunpack.c.l.b16 %v420
      %v457 = vpack.c.b16 %v442, %v441
      %v458 = vpack.c.b16 %v444, %v443
      %v459 = vpack.c.b16 %v446, %v445
      %v460 = vpack.c.b16 %v448, %v447
      %v461 = vpack.c.b16 %v450, %v449
      %v462 = vpack.c.b16 %v452, %v451
      %v463 = vpack.c.b16 %v454, %v453
      %v464 = vpack.c.b16 %v456, %v455
      %473 = vmatprep.subr.bf16.mxu0 0
      %474 = vmatpush1.bf16.msra.mxu0 %v464
      %475 = vmatprep.subr.bf16.mxu0 0
      %476 = vmatpush1.bf16.msra.mxu0 %v463
      %477 = vmatprep.subr.bf16.mxu0 0
      %478 = vmatpush1.bf16.msra.mxu0 %v462
      %479 = vmatprep.subr.bf16.mxu0 0
      %480 = vmatpush1.bf16.msra.mxu0 %v461
      %481 = vmatprep.subr.bf16.mxu0 0
      %482 = vmatpush1.bf16.msra.mxu0 %v460
      %483 = vmatprep.subr.bf16.mxu0 0
      %484 = vmatpush1.bf16.msra.mxu0 %v459
      %485 = vmatprep.subr.bf16.mxu0 0
      %486 = vmatpush1.bf16.msra.mxu0 %v458
      %487 = vmatprep.subr.bf16.mxu0 0
      %488 = vmatpush1.bf16.msra.mxu0 %v457
      %489 = vmatprep.subr.bf16.mxu0 0
      %490 = vmatpush2.bf16.msra.mxu0 0
      %491 = vmatprep.subr.bf16.mxu0 0
      %492 = vmatpush2.bf16.msra.mxu0 0
      %493 = vmatprep.subr.bf16.mxu0 0
      %494 = vmatpush2.bf16.msra.mxu0 0
      %495 = vmatprep.subr.bf16.mxu0 0
      %496 = vmatpush2.bf16.msra.mxu0 0
      %497 = vmatprep.subr.bf16.mxu0 0
      %498 = vmatpush2.bf16.msra.mxu0 0
      %499 = vmatprep.subr.bf16.mxu0 0
      %500 = vmatpush2.bf16.msra.mxu0 0
      %501 = vmatprep.subr.bf16.mxu0 0
      %502 = vmatpush2.bf16.msra.mxu0 0
      %503 = vmatprep.subr.bf16.mxu0 0
      %504 = vmatpush2.bf16.msra.mxu0 0
      %505 = vmatprep.mubr.bf16.mxu0 0
      %506 = vmatmul.mubr.bf16.gmra.mxu0 %v421
      %v507 = vpop.f32.mrf.mxu0
      %v508 = vadd.f32 0.0, %v507
      %v509 = vpop.f32.mrf.mxu0
      %v510 = vpop.f32.mrf.mxu0
      %v511 = vadd.f32 0.0, %v510
      %v512 = vpop.f32.mrf.mxu0
      %513 = vmatprep.mubr.bf16.mxu0 0
      %514 = vmatmul.mubr.bf16.gmra.mxu0 %v422
      %v515 = vpop.f32.mrf.mxu0
      %v516 = vadd.f32 0.0, %v515
      %v517 = vpop.f32.mrf.mxu0
      %v518 = vpop.f32.mrf.mxu0
      %v519 = vadd.f32 0.0, %v518
      %v520 = vpop.f32.mrf.mxu0
      %521 = vmatprep.mubr.bf16.mxu0 0
      %522 = vmatmul.mubr.bf16.gmra.mxu0 %v423
      %v523 = vpop.f32.mrf.mxu0
      %v524 = vadd.f32 0.0, %v523
      %v525 = vpop.f32.mrf.mxu0
      %v526 = vpop.f32.mrf.mxu0
      %v527 = vadd.f32 0.0, %v526
      %v528 = vpop.f32.mrf.mxu0
      %529 = vmatprep.mubr.bf16.mxu0 0
      %530 = vmatmul.mubr.bf16.gmra.mxu0 %v424
      %v531 = vpop.f32.mrf.mxu0
      %v532 = vadd.f32 0.0, %v531
      %v533 = vpop.f32.mrf.mxu0
      %v534 = vpop.f32.mrf.mxu0
      %v535 = vadd.f32 0.0, %v534
      %v536 = vpop.f32.mrf.mxu0
      %537 = vdwg.mxu0
      %v554 = vunpack.c.l.b16 %v377
      %v555 = vunpack.c.l.b16 %v378
      %v556 = vunpack.c.l.b16 %v379
      %v557 = vunpack.c.l.b16 %v380
      %v558 = vunpack.c.l.b16 %v381
      %v559 = vunpack.c.l.b16 %v382
      %v560 = vunpack.c.l.b16 %v383
      %v561 = vunpack.c.l.b16 %v384
      %v562 = vunpack.c.l.b16 %v385
      %v563 = vunpack.c.l.b16 %v386
      %v564 = vunpack.c.l.b16 %v387
      %v565 = vunpack.c.l.b16 %v388
      %v566 = vunpack.c.l.b16 %v389
      %v567 = vunpack.c.l.b16 %v390
      %v568 = vunpack.c.l.b16 %v391
      %v569 = vunpack.c.l.b16 %v392
      %v570 = vpack.c.b16 %v555, %v554
      %v571 = vpack.c.b16 %v557, %v556
      %v572 = vpack.c.b16 %v559, %v558
      %v573 = vpack.c.b16 %v561, %v560
      %v574 = vpack.c.b16 %v563, %v562
      %v575 = vpack.c.b16 %v565, %v564
      %v576 = vpack.c.b16 %v567, %v566
      %v577 = vpack.c.b16 %v569, %v568
      %586 = vmatprep.subr.bf16.mxu0 0
      %587 = vmatpush1.bf16.msra.mxu0 %v577
      %588 = vmatprep.subr.bf16.mxu0 0
      %589 = vmatpush1.bf16.msra.mxu0 %v576
      %590 = vmatprep.subr.bf16.mxu0 0
      %591 = vmatpush1.bf16.msra.mxu0 %v575
      %592 = vmatprep.subr.bf16.mxu0 0
      %593 = vmatpush1.bf16.msra.mxu0 %v574
      %594 = vmatprep.subr.bf16.mxu0 0
      %595 = vmatpush1.bf16.msra.mxu0 %v573
      %596 = vmatprep.subr.bf16.mxu0 0
      %597 = vmatpush1.bf16.msra.mxu0 %v572
      %598 = vmatprep.subr.bf16.mxu0 0
      %599 = vmatpush1.bf16.msra.mxu0 %v571
      %600 = vmatprep.subr.bf16.mxu0 0
      %601 = vmatpush1.bf16.msra.mxu0 %v570
      %602 = vmatprep.subr.bf16.mxu0 0
      %603 = vmatpush2.bf16.msra.mxu0 0
      %604 = vmatprep.subr.bf16.mxu0 0
      %605 = vmatpush2.bf16.msra.mxu0 0
      %606 = vmatprep.subr.bf16.mxu0 0
      %607 = vmatpush2.bf16.msra.mxu0 0
      %608 = vmatprep.subr.bf16.mxu0 0
      %609 = vmatpush2.bf16.msra.mxu0 0
      %610 = vmatprep.subr.bf16.mxu0 0
      %611 = vmatpush2.bf16.msra.mxu0 0
      %612 = vmatprep.subr.bf16.mxu0 0
      %613 = vmatpush2.bf16.msra.mxu0 0
      %614 = vmatprep.subr.bf16.mxu0 0
      %615 = vmatpush2.bf16.msra.mxu0 0
      %616 = vmatprep.subr.bf16.mxu0 0
      %617 = vmatpush2.bf16.msra.mxu0 0
      %618 = vmatprep.mubr.bf16.mxu0 0
      %619 = vmatmul.mubr.bf16.gmra.mxu0 %v393
      %v620 = vpop.f32.mrf.mxu0
      %v621 = vadd.f32 %v508, %v620
      %v622 = vpop.f32.mrf.mxu0
      %v623 = vpop.f32.mrf.mxu0
      %v624 = vadd.f32 %v511, %v623
      %v625 = vpop.f32.mrf.mxu0
      %626 = vmatprep.mubr.bf16.mxu0 0
      %627 = vmatmul.mubr.bf16.gmra.mxu0 %v394
      %v628 = vpop.f32.mrf.mxu0
      %v629 = vadd.f32 %v516, %v628
      %v630 = vpop.f32.mrf.mxu0
      %v631 = vpop.f32.mrf.mxu0
      %v632 = vadd.f32 %v519, %v631
      %v633 = vpop.f32.mrf.mxu0
      %634 = vmatprep.mubr.bf16.mxu0 0
      %635 = vmatmul.mubr.bf16.gmra.mxu0 %v395
      %v636 = vpop.f32.mrf.mxu0
      %v637 = vadd.f32 %v524, %v636
      %v638 = vpop.f32.mrf.mxu0
      %v639 = vpop.f32.mrf.mxu0
      %v640 = vadd.f32 %v527, %v639
      %v641 = vpop.f32.mrf.mxu0
      %642 = vmatprep.mubr.bf16.mxu0 0
      %643 = vmatmul.mubr.bf16.gmra.mxu0 %v396
      %v644 = vpop.f32.mrf.mxu0
      %v645 = vadd.f32 %v532, %v644
      %v646 = vpop.f32.mrf.mxu0
      %v647 = vpop.f32.mrf.mxu0
      %v648 = vadd.f32 %v535, %v647
      %v649 = vpop.f32.mrf.mxu0
      %650 = vdwg.mxu0
      %v651 = vld [vmem:[#allocation2 + $0x2] sm:$0xff]
      %v652 = vld [vmem:[#allocation2 + $0x12] sm:$0xff]
      %v653 = vld [vmem:[#allocation2 + $0x22] sm:$0xff]
      %v654 = vld [vmem:[#allocation2 + $0x32] sm:$0xff]
      %v655 = vld [vmem:[#allocation2 + $0x42] sm:$0xff]
      %v656 = vld [vmem:[#allocation2 + $0x52] sm:$0xff]
      %v657 = vld [vmem:[#allocation2 + $0x62] sm:$0xff]
      %v658 = vld [vmem:[#allocation2 + $0x72] sm:$0xff]
      %v659 = vld [vmem:[%s1 + $0x80] sm:$0xf]
      %v660 = vld [vmem:[%s1 + $0x84] sm:$0xf]
      %v661 = vld [vmem:[%s1 + $0x88] sm:$0xf]
      %v662 = vld [vmem:[%s1 + $0x8c] sm:$0xf]
      %v663 = vld [vmem:[%s1 + $0x90] sm:$0xf]
      %v664 = vld [vmem:[%s1 + $0x94] sm:$0xf]
      %v665 = vld [vmem:[%s1 + $0x98] sm:$0xf]
      %v666 = vld [vmem:[%s1 + $0x9c] sm:$0xf]
      %v667 = vld [vmem:[%s1 + $0xa0] sm:$0xf]
      %v668 = vld [vmem:[%s1 + $0xa4] sm:$0xf]
      %v669 = vld [vmem:[%s1 + $0xa8] sm:$0xf]
      %v670 = vld [vmem:[%s1 + $0xac] sm:$0xf]
      %v671 = vld [vmem:[%s1 + $0xb0] sm:$0xf]
      %v672 = vld [vmem:[%s1 + $0xb4] sm:$0xf]
      %v673 = vld [vmem:[%s1 + $0xb8] sm:$0xf]
      %v674 = vld [vmem:[%s1 + $0xbc] sm:$0xf]
      %v675 = vpack.c.bf16 %v652, %v651
      %v676 = vpack.c.bf16 %v654, %v653
      %v677 = vpack.c.bf16 %v656, %v655
      %v678 = vpack.c.bf16 %v658, %v657
      %v695 = vunpack.c.l.b16 %v659
      %v696 = vunpack.c.l.b16 %v660
      %v697 = vunpack.c.l.b16 %v661
      %v698 = vunpack.c.l.b16 %v662
      %v699 = vunpack.c.l.b16 %v663
      %v700 = vunpack.c.l.b16 %v664
      %v701 = vunpack.c.l.b16 %v665
      %v702 = vunpack.c.l.b16 %v666
      %v703 = vunpack.c.l.b16 %v667
      %v704 = vunpack.c.l.b16 %v668
      %v705 = vunpack.c.l.b16 %v669
      %v706 = vunpack.c.l.b16 %v670
      %v707 = vunpack.c.l.b16 %v671
      %v708 = vunpack.c.l.b16 %v672
      %v709 = vunpack.c.l.b16 %v673
      %v710 = vunpack.c.l.b16 %v674
      %v711 = vpack.c.b16 %v696, %v695
      %v712 = vpack.c.b16 %v698, %v697
      %v713 = vpack.c.b16 %v700, %v699
      %v714 = vpack.c.b16 %v702, %v701
      %v715 = vpack.c.b16 %v704, %v703
      %v716 = vpack.c.b16 %v706, %v705
      %v717 = vpack.c.b16 %v708, %v707
      %v718 = vpack.c.b16 %v710, %v709
      %727 = vmatprep.subr.bf16.mxu0 0
      %728 = vmatpush1.bf16.msra.mxu0 %v718
      %729 = vmatprep.subr.bf16.mxu0 0
      %730 = vmatpush1.bf16.msra.mxu0 %v717
      %731 = vmatprep.subr.bf16.mxu0 0
      %732 = vmatpush1.bf16.msra.mxu0 %v716
      %733 = vmatprep.subr.bf16.mxu0 0
      %734 = vmatpush1.bf16.msra.mxu0 %v715
      %735 = vmatprep.subr.bf16.mxu0 0
      %736 = vmatpush1.bf16.msra.mxu0 %v714
      %737 = vmatprep.subr.bf16.mxu0 0
      %738 = vmatpush1.bf16.msra.mxu0 %v713
      %739 = vmatprep.subr.bf16.mxu0 0
      %740 = vmatpush1.bf16.msra.mxu0 %v712
      %741 = vmatprep.subr.bf16.mxu0 0
      %742 = vmatpush1.bf16.msra.mxu0 %v711
      %743 = vmatprep.subr.bf16.mxu0 0
      %744 = vmatpush2.bf16.msra.mxu0 0
      %745 = vmatprep.subr.bf16.mxu0 0
      %746 = vmatpush2.bf16.msra.mxu0 0
      %747 = vmatprep.subr.bf16.mxu0 0
      %748 = vmatpush2.bf16.msra.mxu0 0
      %749 = vmatprep.subr.bf16.mxu0 0
      %750 = vmatpush2.bf16.msra.mxu0 0
      %751 = vmatprep.subr.bf16.mxu0 0
      %752 = vmatpush2.bf16.msra.mxu0 0
      %753 = vmatprep.subr.bf16.mxu0 0
      %754 = vmatpush2.bf16.msra.mxu0 0
      %755 = vmatprep.subr.bf16.mxu0 0
      %756 = vmatpush2.bf16.msra.mxu0 0
      %757 = vmatprep.subr.bf16.mxu0 0
      %758 = vmatpush2.bf16.msra.mxu0 0
      %759 = vmatprep.mubr.bf16.mxu0 0
      %760 = vmatmul.mubr.bf16.gmra.mxu0 %v675
      %v761 = vpop.f32.mrf.mxu0
      %v762 = vadd.f32 0.0, %v761
      %v763 = vpop.f32.mrf.mxu0
      %v764 = vpop.f32.mrf.mxu0
      %v765 = vadd.f32 0.0, %v764
      %v766 = vpop.f32.mrf.mxu0
      %767 = vmatprep.mubr.bf16.mxu0 0
      %768 = vmatmul.mubr.bf16.gmra.mxu0 %v676
      %v769 = vpop.f32.mrf.mxu0
      %v770 = vadd.f32 0.0, %v769
      %v771 = vpop.f32.mrf.mxu0
      %v772 = vpop.f32.mrf.mxu0
      %v773 = vadd.f32 0.0, %v772
      %v774 = vpop.f32.mrf.mxu0
      %775 = vmatprep.mubr.bf16.mxu0 0
      %776 = vmatmul.mubr.bf16.gmra.mxu0 %v677
      %v777 = vpop.f32.mrf.mxu0
      %v778 = vadd.f32 0.0, %v777
      %v779 = vpop.f32.mrf.mxu0
      %v780 = vpop.f32.mrf.mxu0
      %v781 = vadd.f32 0.0, %v780
      %v782 = vpop.f32.mrf.mxu0
      %783 = vmatprep.mubr.bf16.mxu0 0
      %784 = vmatmul.mubr.bf16.gmra.mxu0 %v678
      %v785 = vpop.f32.mrf.mxu0
      %v786 = vadd.f32 0.0, %v785
      %v787 = vpop.f32.mrf.mxu0
      %v788 = vpop.f32.mrf.mxu0
      %v789 = vadd.f32 0.0, %v788
      %v790 = vpop.f32.mrf.mxu0
      %791 = vdwg.mxu0
      %v792 = vadd.f32 %v621, %v762
      %v793 = vadd.f32 %v624, %v765
      %v794 = vadd.f32 %v629, %v770
      %v795 = vadd.f32 %v632, %v773
      %v796 = vadd.f32 %v637, %v778
      %v797 = vadd.f32 %v640, %v781
      %v798 = vadd.f32 %v645, %v786
      %v799 = vadd.f32 %v648, %v789
      %v800 = vld [vmem:[%s360] sm:$0xff]
      %v801 = vld [vmem:[%s360 + $0x10] sm:$0xff]
      %v802 = vld [vmem:[%s360 + $0x20] sm:$0xff]
      %v803 = vld [vmem:[%s360 + $0x30] sm:$0xff]
      %v804 = vld [vmem:[%s360 + $0x40] sm:$0xff]
      %v805 = vld [vmem:[%s360 + $0x50] sm:$0xff]
      %v806 = vld [vmem:[%s360 + $0x60] sm:$0xff]
      %v807 = vld [vmem:[%s360 + $0x70] sm:$0xff]
      %v808 = vld [vmem:[%s1 + $0xc0] sm:$0xf]
      %v809 = vld [vmem:[%s1 + $0xc4] sm:$0xf]
      %v810 = vld [vmem:[%s1 + $0xc8] sm:$0xf]
      %v811 = vld [vmem:[%s1 + $0xcc] sm:$0xf]
      %v812 = vld [vmem:[%s1 + $0xd0] sm:$0xf]
      %v813 = vld [vmem:[%s1 + $0xd4] sm:$0xf]
      %v814 = vld [vmem:[%s1 + $0xd8] sm:$0xf]
      %v815 = vld [vmem:[%s1 + $0xdc] sm:$0xf]
      %v816 = vld [vmem:[%s1 + $0xe0] sm:$0xf]
      %v817 = vld [vmem:[%s1 + $0xe4] sm:$0xf]
      %v818 = vld [vmem:[%s1 + $0xe8] sm:$0xf]
      %v819 = vld [vmem:[%s1 + $0xec] sm:$0xf]
      %v820 = vld [vmem:[%s1 + $0xf0] sm:$0xf]
      %v821 = vld [vmem:[%s1 + $0xf4] sm:$0xf]
      %v822 = vld [vmem:[%s1 + $0xf8] sm:$0xf]
      %v823 = vld [vmem:[%s1 + $0xfc] sm:$0xf]
      %v824 = vpack.c.bf16 %v801, %v800
      %v825 = vpack.c.bf16 %v803, %v802
      %v826 = vpack.c.bf16 %v805, %v804
      %v827 = vpack.c.bf16 %v807, %v806
      %v844 = vunpack.c.l.b16 %v808
      %v845 = vunpack.c.l.b16 %v809
      %v846 = vunpack.c.l.b16 %v810
      %v847 = vunpack.c.l.b16 %v811
      %v848 = vunpack.c.l.b16 %v812
      %v849 = vunpack.c.l.b16 %v813
      %v850 = vunpack.c.l.b16 %v814
      %v851 = vunpack.c.l.b16 %v815
      %v852 = vunpack.c.l.b16 %v816
      %v853 = vunpack.c.l.b16 %v817
      %v854 = vunpack.c.l.b16 %v818
      %v855 = vunpack.c.l.b16 %v819
      %v856 = vunpack.c.l.b16 %v820
      %v857 = vunpack.c.l.b16 %v821
      %v858 = vunpack.c.l.b16 %v822
      %v859 = vunpack.c.l.b16 %v823
      %v860 = vpack.c.b16 %v845, %v844
      %v861 = vpack.c.b16 %v847, %v846
      %v862 = vpack.c.b16 %v849, %v848
      %v863 = vpack.c.b16 %v851, %v850
      %v864 = vpack.c.b16 %v853, %v852
      %v865 = vpack.c.b16 %v855, %v854
      %v866 = vpack.c.b16 %v857, %v856
      %v867 = vpack.c.b16 %v859, %v858
      %876 = vmatprep.subr.bf16.mxu0 0
      %877 = vmatpush1.bf16.msra.mxu0 %v867
      %878 = vmatprep.subr.bf16.mxu0 0
      %879 = vmatpush1.bf16.msra.mxu0 %v866
      %880 = vmatprep.subr.bf16.mxu0 0
      %881 = vmatpush1.bf16.msra.mxu0 %v865
      %882 = vmatprep.subr.bf16.mxu0 0
      %883 = vmatpush1.bf16.msra.mxu0 %v864
      %884 = vmatprep.subr.bf16.mxu0 0
      %885 = vmatpush1.bf16.msra.mxu0 %v863
      %886 = vmatprep.subr.bf16.mxu0 0
      %887 = vmatpush1.bf16.msra.mxu0 %v862
      %888 = vmatprep.subr.bf16.mxu0 0
      %889 = vmatpush1.bf16.msra.mxu0 %v861
      %890 = vmatprep.subr.bf16.mxu0 0
      %891 = vmatpush1.bf16.msra.mxu0 %v860
      %892 = vmatprep.subr.bf16.mxu0 0
      %893 = vmatpush2.bf16.msra.mxu0 0
      %894 = vmatprep.subr.bf16.mxu0 0
      %895 = vmatpush2.bf16.msra.mxu0 0
      %896 = vmatprep.subr.bf16.mxu0 0
      %897 = vmatpush2.bf16.msra.mxu0 0
      %898 = vmatprep.subr.bf16.mxu0 0
      %899 = vmatpush2.bf16.msra.mxu0 0
      %900 = vmatprep.subr.bf16.mxu0 0
      %901 = vmatpush2.bf16.msra.mxu0 0
      %902 = vmatprep.subr.bf16.mxu0 0
      %903 = vmatpush2.bf16.msra.mxu0 0
      %904 = vmatprep.subr.bf16.mxu0 0
      %905 = vmatpush2.bf16.msra.mxu0 0
      %906 = vmatprep.subr.bf16.mxu0 0
      %907 = vmatpush2.bf16.msra.mxu0 0
      %908 = vmatprep.mubr.bf16.mxu0 0
      %909 = vmatmul.mubr.bf16.gmra.mxu0 %v824
      %v910 = vpop.f32.mrf.mxu0
      %v911 = vadd.f32 0.0, %v910
      %v912 = vpop.f32.mrf.mxu0
      %v913 = vpop.f32.mrf.mxu0
      %v914 = vadd.f32 0.0, %v913
      %v915 = vpop.f32.mrf.mxu0
      %916 = vmatprep.mubr.bf16.mxu0 0
      %917 = vmatmul.mubr.bf16.gmra.mxu0 %v825
      %v918 = vpop.f32.mrf.mxu0
      %v919 = vadd.f32 0.0, %v918
      %v920 = vpop.f32.mrf.mxu0
      %v921 = vpop.f32.mrf.mxu0
      %v922 = vadd.f32 0.0, %v921
      %v923 = vpop.f32.mrf.mxu0
      %924 = vmatprep.mubr.bf16.mxu0 0
      %925 = vmatmul.mubr.bf16.gmra.mxu0 %v826
      %v926 = vpop.f32.mrf.mxu0
      %v927 = vadd.f32 0.0, %v926
      %v928 = vpop.f32.mrf.mxu0
      %v929 = vpop.f32.mrf.mxu0
      %v930 = vadd.f32 0.0, %v929
      %v931 = vpop.f32.mrf.mxu0
      %932 = vmatprep.mubr.bf16.mxu0 0
      %933 = vmatmul.mubr.bf16.gmra.mxu0 %v827
      %v934 = vpop.f32.mrf.mxu0
      %v935 = vadd.f32 0.0, %v934
      %v936 = vpop.f32.mrf.mxu0
      %v937 = vpop.f32.mrf.mxu0
      %v938 = vadd.f32 0.0, %v937
      %v939 = vpop.f32.mrf.mxu0
      %940 = vdwg.mxu0
      %v941 = vadd.f32 %v792, %v911
      %v942 = vadd.f32 %v793, %v914
      %v943 = vadd.f32 %v794, %v919
      %v944 = vadd.f32 %v795, %v922
      %v945 = vadd.f32 %v796, %v927
      %v946 = vadd.f32 %v797, %v930
      %v947 = vadd.f32 %v798, %v935
      %v948 = vadd.f32 %v799, %v938
      %v949 = vld [vmem:[%s360 + $0x1] sm:$0xff]
      %v950 = vld [vmem:[%s360 + $0x11] sm:$0xff]
      %v951 = vld [vmem:[%s360 + $0x21] sm:$0xff]
      %v952 = vld [vmem:[%s360 + $0x31] sm:$0xff]
      %v953 = vld [vmem:[%s360 + $0x41] sm:$0xff]
      %v954 = vld [vmem:[%s360 + $0x51] sm:$0xff]
      %v955 = vld [vmem:[%s360 + $0x61] sm:$0xff]
      %v956 = vld [vmem:[%s360 + $0x71] sm:$0xff]
      %v957 = vld [vmem:[%s1 + $0x100] sm:$0xf]
      %v958 = vld [vmem:[%s1 + $0x104] sm:$0xf]
      %v959 = vld [vmem:[%s1 + $0x108] sm:$0xf]
      %v960 = vld [vmem:[%s1 + $0x10c] sm:$0xf]
      %v961 = vld [vmem:[%s1 + $0x110] sm:$0xf]
      %v962 = vld [vmem:[%s1 + $0x114] sm:$0xf]
      %v963 = vld [vmem:[%s1 + $0x118] sm:$0xf]
      %v964 = vld [vmem:[%s1 + $0x11c] sm:$0xf]
      %v965 = vld [vmem:[%s1 + $0x120] sm:$0xf]
      %v966 = vld [vmem:[%s1 + $0x124] sm:$0xf]
      %v967 = vld [vmem:[%s1 + $0x128] sm:$0xf]
      %v968 = vld [vmem:[%s1 + $0x12c] sm:$0xf]
      %v969 = vld [vmem:[%s1 + $0x130] sm:$0xf]
      %v970 = vld [vmem:[%s1 + $0x134] sm:$0xf]
      %v971 = vld [vmem:[%s1 + $0x138] sm:$0xf]
      %v972 = vld [vmem:[%s1 + $0x13c] sm:$0xf]
      %v973 = vpack.c.bf16 %v950, %v949
      %v974 = vpack.c.bf16 %v952, %v951
      %v975 = vpack.c.bf16 %v954, %v953
      %v976 = vpack.c.bf16 %v956, %v955
      %v993 = vunpack.c.l.b16 %v957
      %v994 = vunpack.c.l.b16 %v958
      %v995 = vunpack.c.l.b16 %v959
      %v996 = vunpack.c.l.b16 %v960
      %v997 = vunpack.c.l.b16 %v961
      %v998 = vunpack.c.l.b16 %v962
      %v999 = vunpack.c.l.b16 %v963
      %v1000 = vunpack.c.l.b16 %v964
      %v1001 = vunpack.c.l.b16 %v965
      %v1002 = vunpack.c.l.b16 %v966
      %v1003 = vunpack.c.l.b16 %v967
      %v1004 = vunpack.c.l.b16 %v968
      %v1005 = vunpack.c.l.b16 %v969
      %v1006 = vunpack.c.l.b16 %v970
      %v1007 = vunpack.c.l.b16 %v971
      %v1008 = vunpack.c.l.b16 %v972
      %v1009 = vpack.c.b16 %v994, %v993
      %v1010 = vpack.c.b16 %v996, %v995
      %v1011 = vpack.c.b16 %v998, %v997
      %v1012 = vpack.c.b16 %v1000, %v999
      %v1013 = vpack.c.b16 %v1002, %v1001
      %v1014 = vpack.c.b16 %v1004, %v1003
      %v1015 = vpack.c.b16 %v1006, %v1005
      %v1016 = vpack.c.b16 %v1008, %v1007
      %1025 = vmatprep.subr.bf16.mxu0 0
      %1026 = vmatpush1.bf16.msra.mxu0 %v1016
      %1027 = vmatprep.subr.bf16.mxu0 0
      %1028 = vmatpush1.bf16.msra.mxu0 %v1015
      %1029 = vmatprep.subr.bf16.mxu0 0
      %1030 = vmatpush1.bf16.msra.mxu0 %v1014
      %1031 = vmatprep.subr.bf16.mxu0 0
      %1032 = vmatpush1.bf16.msra.mxu0 %v1013
      %1033 = vmatprep.subr.bf16.mxu0 0
      %1034 = vmatpush1.bf16.msra.mxu0 %v1012
      %1035 = vmatprep.subr.bf16.mxu0 0
      %1036 = vmatpush1.bf16.msra.mxu0 %v1011
      %1037 = vmatprep.subr.bf16.mxu0 0
      %1038 = vmatpush1.bf16.msra.mxu0 %v1010
      %1039 = vmatprep.subr.bf16.mxu0 0
      %1040 = vmatpush1.bf16.msra.mxu0 %v1009
      %1041 = vmatprep.subr.bf16.mxu0 0
      %1042 = vmatpush2.bf16.msra.mxu0 0
      %1043 = vmatprep.subr.bf16.mxu0 0
      %1044 = vmatpush2.bf16.msra.mxu0 0
      %1045 = vmatprep.subr.bf16.mxu0 0
      %1046 = vmatpush2.bf16.msra.mxu0 0
      %1047 = vmatprep.subr.bf16.mxu0 0
      %1048 = vmatpush2.bf16.msra.mxu0 0
      %1049 = vmatprep.subr.bf16.mxu0 0
      %1050 = vmatpush2.bf16.msra.mxu0 0
      %1051 = vmatprep.subr.bf16.mxu0 0
      %1052 = vmatpush2.bf16.msra.mxu0 0
      %1053 = vmatprep.subr.bf16.mxu0 0
      %1054 = vmatpush2.bf16.msra.mxu0 0
      %1055 = vmatprep.subr.bf16.mxu0 0
      %1056 = vmatpush2.bf16.msra.mxu0 0
      %1057 = vmatprep.mubr.bf16.mxu0 0
      %1058 = vmatmul.mubr.bf16.gmra.mxu0 %v973
      %v1059 = vpop.f32.mrf.mxu0
      %v1060 = vadd.f32 0.0, %v1059
      %v1061 = vpop.f32.mrf.mxu0
      %v1062 = vpop.f32.mrf.mxu0
      %v1063 = vadd.f32 0.0, %v1062
      %v1064 = vpop.f32.mrf.mxu0
      %1065 = vmatprep.mubr.bf16.mxu0 0
      %1066 = vmatmul.mubr.bf16.gmra.mxu0 %v974
      %v1067 = vpop.f32.mrf.mxu0
      %v1068 = vadd.f32 0.0, %v1067
      %v1069 = vpop.f32.mrf.mxu0
      %v1070 = vpop.f32.mrf.mxu0
      %v1071 = vadd.f32 0.0, %v1070
      %v1072 = vpop.f32.mrf.mxu0
      %1073 = vmatprep.mubr.bf16.mxu0 0
      %1074 = vmatmul.mubr.bf16.gmra.mxu0 %v975
      %v1075 = vpop.f32.mrf.mxu0
      %v1076 = vadd.f32 0.0, %v1075
      %v1077 = vpop.f32.mrf.mxu0
      %v1078 = vpop.f32.mrf.mxu0
      %v1079 = vadd.f32 0.0, %v1078
      %v1080 = vpop.f32.mrf.mxu0
      %1081 = vmatprep.mubr.bf16.mxu0 0
      %1082 = vmatmul.mubr.bf16.gmra.mxu0 %v976
      %v1083 = vpop.f32.mrf.mxu0
      %v1084 = vadd.f32 0.0, %v1083
      %v1085 = vpop.f32.mrf.mxu0
      %v1086 = vpop.f32.mrf.mxu0
      %v1087 = vadd.f32 0.0, %v1086
      %v1088 = vpop.f32.mrf.mxu0
      %1089 = vdwg.mxu0
      %v1090 = vadd.f32 %v941, %v1060
      %v1091 = vadd.f32 %v942, %v1063
      %v1092 = vadd.f32 %v943, %v1068
      %v1093 = vadd.f32 %v944, %v1071
      %v1094 = vadd.f32 %v945, %v1076
      %v1095 = vadd.f32 %v946, %v1079
      %v1096 = vadd.f32 %v947, %v1084
      %v1097 = vadd.f32 %v948, %v1087
      %v1098 = vld [vmem:[%s360 + $0x2] sm:$0xff]
      %v1099 = vld [vmem:[%s360 + $0x12] sm:$0xff]
      %v1100 = vld [vmem:[%s360 + $0x22] sm:$0xff]
      %v1101 = vld [vmem:[%s360 + $0x32] sm:$0xff]
      %v1102 = vld [vmem:[%s360 + $0x42] sm:$0xff]
      %v1103 = vld [vmem:[%s360 + $0x52] sm:$0xff]
      %v1104 = vld [vmem:[%s360 + $0x62] sm:$0xff]
      %v1105 = vld [vmem:[%s360 + $0x72] sm:$0xff]
      %v1106 = vld [vmem:[%s1 + $0x140] sm:$0xf]
      %v1107 = vld [vmem:[%s1 + $0x144] sm:$0xf]
      %v1108 = vld [vmem:[%s1 + $0x148] sm:$0xf]
      %v1109 = vld [vmem:[%s1 + $0x14c] sm:$0xf]
      %v1110 = vld [vmem:[%s1 + $0x150] sm:$0xf]
      %v1111 = vld [vmem:[%s1 + $0x154] sm:$0xf]
      %v1112 = vld [vmem:[%s1 + $0x158] sm:$0xf]
      %v1113 = vld [vmem:[%s1 + $0x15c] sm:$0xf]
      %v1114 = vld [vmem:[%s1 + $0x160] sm:$0xf]
      %v1115 = vld [vmem:[%s1 + $0x164] sm:$0xf]
      %v1116 = vld [vmem:[%s1 + $0x168] sm:$0xf]
      %v1117 = vld [vmem:[%s1 + $0x16c] sm:$0xf]
      %v1118 = vld [vmem:[%s1 + $0x170] sm:$0xf]
      %v1119 = vld [vmem:[%s1 + $0x174] sm:$0xf]
      %v1120 = vld [vmem:[%s1 + $0x178] sm:$0xf]
      %v1121 = vld [vmem:[%s1 + $0x17c] sm:$0xf]
      %v1122 = vpack.c.bf16 %v1099, %v1098
      %v1123 = vpack.c.bf16 %v1101, %v1100
      %v1124 = vpack.c.bf16 %v1103, %v1102
      %v1125 = vpack.c.bf16 %v1105, %v1104
      %v1142 = vunpack.c.l.b16 %v1106
      %v1143 = vunpack.c.l.b16 %v1107
      %v1144 = vunpack.c.l.b16 %v1108
      %v1145 = vunpack.c.l.b16 %v1109
      %v1146 = vunpack.c.l.b16 %v1110
      %v1147 = vunpack.c.l.b16 %v1111
      %v1148 = vunpack.c.l.b16 %v1112
      %v1149 = vunpack.c.l.b16 %v1113
      %v1150 = vunpack.c.l.b16 %v1114
      %v1151 = vunpack.c.l.b16 %v1115
      %v1152 = vunpack.c.l.b16 %v1116
      %v1153 = vunpack.c.l.b16 %v1117
      %v1154 = vunpack.c.l.b16 %v1118
      %v1155 = vunpack.c.l.b16 %v1119
      %v1156 = vunpack.c.l.b16 %v1120
      %v1157 = vunpack.c.l.b16 %v1121
      %v1158 = vpack.c.b16 %v1143, %v1142
      %v1159 = vpack.c.b16 %v1145, %v1144
      %v1160 = vpack.c.b16 %v1147, %v1146
      %v1161 = vpack.c.b16 %v1149, %v1148
      %v1162 = vpack.c.b16 %v1151, %v1150
      %v1163 = vpack.c.b16 %v1153, %v1152
      %v1164 = vpack.c.b16 %v1155, %v1154
      %v1165 = vpack.c.b16 %v1157, %v1156
      %1174 = vmatprep.subr.bf16.mxu0 0
      %1175 = vmatpush1.bf16.msra.mxu0 %v1165
      %1176 = vmatprep.subr.bf16.mxu0 0
      %1177 = vmatpush1.bf16.msra.mxu0 %v1164
      %1178 = vmatprep.subr.bf16.mxu0 0
      %1179 = vmatpush1.bf16.msra.mxu0 %v1163
      %1180 = vmatprep.subr.bf16.mxu0 0
      %1181 = vmatpush1.bf16.msra.mxu0 %v1162
      %1182 = vmatprep.subr.bf16.mxu0 0
      %1183 = vmatpush1.bf16.msra.mxu0 %v1161
      %1184 = vmatprep.subr.bf16.mxu0 0
      %1185 = vmatpush1.bf16.msra.mxu0 %v1160
      %1186 = vmatprep.subr.bf16.mxu0 0
      %1187 = vmatpush1.bf16.msra.mxu0 %v1159
      %1188 = vmatprep.subr.bf16.mxu0 0
      %1189 = vmatpush1.bf16.msra.mxu0 %v1158
      %1190 = vmatprep.subr.bf16.mxu0 0
      %1191 = vmatpush2.bf16.msra.mxu0 0
      %1192 = vmatprep.subr.bf16.mxu0 0
      %1193 = vmatpush2.bf16.msra.mxu0 0
      %1194 = vmatprep.subr.bf16.mxu0 0
      %1195 = vmatpush2.bf16.msra.mxu0 0
      %1196 = vmatprep.subr.bf16.mxu0 0
      %1197 = vmatpush2.bf16.msra.mxu0 0
      %1198 = vmatprep.subr.bf16.mxu0 0
      %1199 = vmatpush2.bf16.msra.mxu0 0
      %1200 = vmatprep.subr.bf16.mxu0 0
      %1201 = vmatpush2.bf16.msra.mxu0 0
      %1202 = vmatprep.subr.bf16.mxu0 0
      %1203 = vmatpush2.bf16.msra.mxu0 0
      %1204 = vmatprep.subr.bf16.mxu0 0
      %1205 = vmatpush2.bf16.msra.mxu0 0
      %1206 = vmatprep.mubr.bf16.mxu0 0
      %1207 = vmatmul.mubr.bf16.gmra.mxu0 %v1122
      %v1208 = vpop.f32.mrf.mxu0
      %v1209 = vadd.f32 0.0, %v1208
      %v1210 = vpop.f32.mrf.mxu0
      %v1211 = vpop.f32.mrf.mxu0
      %v1212 = vadd.f32 0.0, %v1211
      %v1213 = vpop.f32.mrf.mxu0
      %1214 = vmatprep.mubr.bf16.mxu0 0
      %1215 = vmatmul.mubr.bf16.gmra.mxu0 %v1123
      %v1216 = vpop.f32.mrf.mxu0
      %v1217 = vadd.f32 0.0, %v1216
      %v1218 = vpop.f32.mrf.mxu0
      %v1219 = vpop.f32.mrf.mxu0
      %v1220 = vadd.f32 0.0, %v1219
      %v1221 = vpop.f32.mrf.mxu0
      %1222 = vmatprep.mubr.bf16.mxu0 0
      %1223 = vmatmul.mubr.bf16.gmra.mxu0 %v1124
      %v1224 = vpop.f32.mrf.mxu0
      %v1225 = vadd.f32 0.0, %v1224
      %v1226 = vpop.f32.mrf.mxu0
      %v1227 = vpop.f32.mrf.mxu0
      %v1228 = vadd.f32 0.0, %v1227
      %v1229 = vpop.f32.mrf.mxu0
      %1230 = vmatprep.mubr.bf16.mxu0 0
      %1231 = vmatmul.mubr.bf16.gmra.mxu0 %v1125
      %v1232 = vpop.f32.mrf.mxu0
      %v1233 = vadd.f32 0.0, %v1232
      %v1234 = vpop.f32.mrf.mxu0
      %v1235 = vpop.f32.mrf.mxu0
      %v1236 = vadd.f32 0.0, %v1235
      %v1237 = vpop.f32.mrf.mxu0
      %1238 = vdwg.mxu0
      %v1239 = vadd.f32 %v1090, %v1209
      %v1240 = vadd.f32 %v1091, %v1212
      %v1241 = vadd.f32 %v1092, %v1217
      %v1242 = vadd.f32 %v1093, %v1220
      %v1243 = vadd.f32 %v1094, %v1225
      %v1244 = vadd.f32 %v1095, %v1228
      %v1245 = vadd.f32 %v1096, %v1233
      %v1246 = vadd.f32 %v1097, %v1236
      %s1247 = scalar_lea.vmem [#allocation2], 32
      %v1248 = vld [vmem:[%s1247] sm:$0xff]
      %v1249 = vld [vmem:[%s1247 + $0x10] sm:$0xff]
      %v1250 = vld [vmem:[%s1247 + $0x20] sm:$0xff]
      %v1251 = vld [vmem:[%s1247 + $0x30] sm:$0xff]
      %v1252 = vld [vmem:[%s1247 + $0x40] sm:$0xff]
      %v1253 = vld [vmem:[%s1247 + $0x50] sm:$0xff]
      %v1254 = vld [vmem:[%s1247 + $0x60] sm:$0xff]
      %v1255 = vld [vmem:[%s1247 + $0x70] sm:$0xff]
      %v1256 = vld [vmem:[%s1 + $0x180] sm:$0xf]
      %v1257 = vld [vmem:[%s1 + $0x184] sm:$0xf]
      %v1258 = vld [vmem:[%s1 + $0x188] sm:$0xf]
      %v1259 = vld [vmem:[%s1 + $0x18c] sm:$0xf]
      %v1260 = vld [vmem:[%s1 + $0x190] sm:$0xf]
      %v1261 = vld [vmem:[%s1 + $0x194] sm:$0xf]
      %v1262 = vld [vmem:[%s1 + $0x198] sm:$0xf]
      %v1263 = vld [vmem:[%s1 + $0x19c] sm:$0xf]
      %v1264 = vld [vmem:[%s1 + $0x1a0] sm:$0xf]
      %v1265 = vld [vmem:[%s1 + $0x1a4] sm:$0xf]
      %v1266 = vld [vmem:[%s1 + $0x1a8] sm:$0xf]
      %v1267 = vld [vmem:[%s1 + $0x1ac] sm:$0xf]
      %v1268 = vld [vmem:[%s1 + $0x1b0] sm:$0xf]
      %v1269 = vld [vmem:[%s1 + $0x1b4] sm:$0xf]
      %v1270 = vld [vmem:[%s1 + $0x1b8] sm:$0xf]
      %v1271 = vld [vmem:[%s1 + $0x1bc] sm:$0xf]
      %v1272 = vpack.c.bf16 %v1249, %v1248
      %v1273 = vpack.c.bf16 %v1251, %v1250
      %v1274 = vpack.c.bf16 %v1253, %v1252
      %v1275 = vpack.c.bf16 %v1255, %v1254
      %v1292 = vunpack.c.l.b16 %v1256
      %v1293 = vunpack.c.l.b16 %v1257
      %v1294 = vunpack.c.l.b16 %v1258
      %v1295 = vunpack.c.l.b16 %v1259
      %v1296 = vunpack.c.l.b16 %v1260
      %v1297 = vunpack.c.l.b16 %v1261
      %v1298 = vunpack.c.l.b16 %v1262
      %v1299 = vunpack.c.l.b16 %v1263
      %v1300 = vunpack.c.l.b16 %v1264
      %v1301 = vunpack.c.l.b16 %v1265
      %v1302 = vunpack.c.l.b16 %v1266
      %v1303 = vunpack.c.l.b16 %v1267
      %v1304 = vunpack.c.l.b16 %v1268
      %v1305 = vunpack.c.l.b16 %v1269
      %v1306 = vunpack.c.l.b16 %v1270
      %v1307 = vunpack.c.l.b16 %v1271
      %v1308 = vpack.c.b16 %v1293, %v1292
      %v1309 = vpack.c.b16 %v1295, %v1294
      %v1310 = vpack.c.b16 %v1297, %v1296
      %v1311 = vpack.c.b16 %v1299, %v1298
      %v1312 = vpack.c.b16 %v1301, %v1300
      %v1313 = vpack.c.b16 %v1303, %v1302
      %v1314 = vpack.c.b16 %v1305, %v1304
      %v1315 = vpack.c.b16 %v1307, %v1306
      %1324 = vmatprep.subr.bf16.mxu0 0
      %1325 = vmatpush1.bf16.msra.mxu0 %v1315
      %1326 = vmatprep.subr.bf16.mxu0 0
      %1327 = vmatpush1.bf16.msra.mxu0 %v1314
      %1328 = vmatprep.subr.bf16.mxu0 0
      %1329 = vmatpush1.bf16.msra.mxu0 %v1313
      %1330 = vmatprep.subr.bf16.mxu0 0
      %1331 = vmatpush1.bf16.msra.mxu0 %v1312
      %1332 = vmatprep.subr.bf16.mxu0 0
      %1333 = vmatpush1.bf16.msra.mxu0 %v1311
      %1334 = vmatprep.subr.bf16.mxu0 0
      %1335 = vmatpush1.bf16.msra.mxu0 %v1310
      %1336 = vmatprep.subr.bf16.mxu0 0
      %1337 = vmatpush1.bf16.msra.mxu0 %v1309
      %1338 = vmatprep.subr.bf16.mxu0 0
      %1339 = vmatpush1.bf16.msra.mxu0 %v1308
      %1340 = vmatprep.subr.bf16.mxu0 0
      %1341 = vmatpush2.bf16.msra.mxu0 0
      %1342 = vmatprep.subr.bf16.mxu0 0
      %1343 = vmatpush2.bf16.msra.mxu0 0
      %1344 = vmatprep.subr.bf16.mxu0 0
      %1345 = vmatpush2.bf16.msra.mxu0 0
      %1346 = vmatprep.subr.bf16.mxu0 0
      %1347 = vmatpush2.bf16.msra.mxu0 0
      %1348 = vmatprep.subr.bf16.mxu0 0
      %1349 = vmatpush2.bf16.msra.mxu0 0
      %1350 = vmatprep.subr.bf16.mxu0 0
      %1351 = vmatpush2.bf16.msra.mxu0 0
      %1352 = vmatprep.subr.bf16.mxu0 0
      %1353 = vmatpush2.bf16.msra.mxu0 0
      %1354 = vmatprep.subr.bf16.mxu0 0
      %1355 = vmatpush2.bf16.msra.mxu0 0
      %1356 = vmatprep.mubr.bf16.mxu0 0
      %1357 = vmatmul.mubr.bf16.gmra.mxu0 %v1272
      %v1358 = vpop.f32.mrf.mxu0
      %v1359 = vadd.f32 0.0, %v1358
      %v1360 = vpop.f32.mrf.mxu0
      %v1361 = vpop.f32.mrf.mxu0
      %v1362 = vadd.f32 0.0, %v1361
      %v1363 = vpop.f32.mrf.mxu0
      %1364 = vmatprep.mubr.bf16.mxu0 0
      %1365 = vmatmul.mubr.bf16.gmra.mxu0 %v1273
      %v1366 = vpop.f32.mrf.mxu0
      %v1367 = vadd.f32 0.0, %v1366
      %v1368 = vpop.f32.mrf.mxu0
      %v1369 = vpop.f32.mrf.mxu0
      %v1370 = vadd.f32 0.0, %v1369
      %v1371 = vpop.f32.mrf.mxu0
      %1372 = vmatprep.mubr.bf16.mxu0 0
      %1373 = vmatmul.mubr.bf16.gmra.mxu0 %v1274
      %v1374 = vpop.f32.mrf.mxu0
      %v1375 = vadd.f32 0.0, %v1374
      %v1376 = vpop.f32.mrf.mxu0
      %v1377 = vpop.f32.mrf.mxu0
      %v1378 = vadd.f32 0.0, %v1377
      %v1379 = vpop.f32.mrf.mxu0
      %1380 = vmatprep.mubr.bf16.mxu0 0
      %1381 = vmatmul.mubr.bf16.gmra.mxu0 %v1275
      %v1382 = vpop.f32.mrf.mxu0
      %v1383 = vadd.f32 0.0, %v1382
      %v1384 = vpop.f32.mrf.mxu0
      %v1385 = vpop.f32.mrf.mxu0
      %v1386 = vadd.f32 0.0, %v1385
      %v1387 = vpop.f32.mrf.mxu0
      %1388 = vdwg.mxu0
      %v1389 = vadd.f32 %v1239, %v1359
      %v1390 = vadd.f32 %v1240, %v1362
      %v1391 = vadd.f32 %v1241, %v1367
      %v1392 = vadd.f32 %v1242, %v1370
      %v1393 = vadd.f32 %v1243, %v1375
      %v1394 = vadd.f32 %v1244, %v1378
      %v1395 = vadd.f32 %v1245, %v1383
      %v1396 = vadd.f32 %v1246, %v1386
      %v1397 = vld [vmem:[%s1247 + $0x1] sm:$0xff]
      %v1398 = vld [vmem:[%s1247 + $0x11] sm:$0xff]
      %v1399 = vld [vmem:[%s1247 + $0x21] sm:$0xff]
      %v1400 = vld [vmem:[%s1247 + $0x31] sm:$0xff]
      %v1401 = vld [vmem:[%s1247 + $0x41] sm:$0xff]
      %v1402 = vld [vmem:[%s1247 + $0x51] sm:$0xff]
      %v1403 = vld [vmem:[%s1247 + $0x61] sm:$0xff]
      %v1404 = vld [vmem:[%s1247 + $0x71] sm:$0xff]
      %v1405 = vld [vmem:[%s1 + $0x1c0] sm:$0xf]
      %v1406 = vld [vmem:[%s1 + $0x1c4] sm:$0xf]
      %v1407 = vld [vmem:[%s1 + $0x1c8] sm:$0xf]
      %v1408 = vld [vmem:[%s1 + $0x1cc] sm:$0xf]
      %v1409 = vld [vmem:[%s1 + $0x1d0] sm:$0xf]
      %v1410 = vld [vmem:[%s1 + $0x1d4] sm:$0xf]
      %v1411 = vld [vmem:[%s1 + $0x1d8] sm:$0xf]
      %v1412 = vld [vmem:[%s1 + $0x1dc] sm:$0xf]
      %v1413 = vld [vmem:[%s1 + $0x1e0] sm:$0xf]
      %v1414 = vld [vmem:[%s1 + $0x1e4] sm:$0xf]
      %v1415 = vld [vmem:[%s1 + $0x1e8] sm:$0xf]
      %v1416 = vld [vmem:[%s1 + $0x1ec] sm:$0xf]
      %v1417 = vld [vmem:[%s1 + $0x1f0] sm:$0xf]
      %v1418 = vld [vmem:[%s1 + $0x1f4] sm:$0xf]
      %v1419 = vld [vmem:[%s1 + $0x1f8] sm:$0xf]
      %v1420 = vld [vmem:[%s1 + $0x1fc] sm:$0xf]
      %v1421 = vpack.c.bf16 %v1398, %v1397
      %v1422 = vpack.c.bf16 %v1400, %v1399
      %v1423 = vpack.c.bf16 %v1402, %v1401
      %v1424 = vpack.c.bf16 %v1404, %v1403
      %v1441 = vunpack.c.l.b16 %v1405
      %v1442 = vunpack.c.l.b16 %v1406
      %v1443 = vunpack.c.l.b16 %v1407
      %v1444 = vunpack.c.l.b16 %v1408
      %v1445 = vunpack.c.l.b16 %v1409
      %v1446 = vunpack.c.l.b16 %v1410
      %v1447 = vunpack.c.l.b16 %v1411
      %v1448 = vunpack.c.l.b16 %v1412
      %v1449 = vunpack.c.l.b16 %v1413
      %v1450 = vunpack.c.l.b16 %v1414
      %v1451 = vunpack.c.l.b16 %v1415
      %v1452 = vunpack.c.l.b16 %v1416
      %v1453 = vunpack.c.l.b16 %v1417
      %v1454 = vunpack.c.l.b16 %v1418
      %v1455 = vunpack.c.l.b16 %v1419
      %v1456 = vunpack.c.l.b16 %v1420
      %v1457 = vpack.c.b16 %v1442, %v1441
      %v1458 = vpack.c.b16 %v1444, %v1443
      %v1459 = vpack.c.b16 %v1446, %v1445
      %v1460 = vpack.c.b16 %v1448, %v1447
      %v1461 = vpack.c.b16 %v1450, %v1449
      %v1462 = vpack.c.b16 %v1452, %v1451
      %v1463 = vpack.c.b16 %v1454, %v1453
      %v1464 = vpack.c.b16 %v1456, %v1455
      %1473 = vmatprep.subr.bf16.mxu0 0
      %1474 = vmatpush1.bf16.msra.mxu0 %v1464
      %1475 = vmatprep.subr.bf16.mxu0 0
      %1476 = vmatpush1.bf16.msra.mxu0 %v1463
      %1477 = vmatprep.subr.bf16.mxu0 0
      %1478 = vmatpush1.bf16.msra.mxu0 %v1462
      %1479 = vmatprep.subr.bf16.mxu0 0
      %1480 = vmatpush1.bf16.msra.mxu0 %v1461
      %1481 = vmatprep.subr.bf16.mxu0 0
      %1482 = vmatpush1.bf16.msra.mxu0 %v1460
      %1483 = vmatprep.subr.bf16.mxu0 0
      %1484 = vmatpush1.bf16.msra.mxu0 %v1459
      %1485 = vmatprep.subr.bf16.mxu0 0
      %1486 = vmatpush1.bf16.msra.mxu0 %v1458
      %1487 = vmatprep.subr.bf16.mxu0 0
      %1488 = vmatpush1.bf16.msra.mxu0 %v1457
      %1489 = vmatprep.subr.bf16.mxu0 0
      %1490 = vmatpush2.bf16.msra.mxu0 0
      %1491 = vmatprep.subr.bf16.mxu0 0
      %1492 = vmatpush2.bf16.msra.mxu0 0
      %1493 = vmatprep.subr.bf16.mxu0 0
      %1494 = vmatpush2.bf16.msra.mxu0 0
      %1495 = vmatprep.subr.bf16.mxu0 0
      %1496 = vmatpush2.bf16.msra.mxu0 0
      %1497 = vmatprep.subr.bf16.mxu0 0
      %1498 = vmatpush2.bf16.msra.mxu0 0
      %1499 = vmatprep.subr.bf16.mxu0 0
      %1500 = vmatpush2.bf16.msra.mxu0 0
      %1501 = vmatprep.subr.bf16.mxu0 0
      %1502 = vmatpush2.bf16.msra.mxu0 0
      %1503 = vmatprep.subr.bf16.mxu0 0
      %1504 = vmatpush2.bf16.msra.mxu0 0
      %1505 = vmatprep.mubr.bf16.mxu0 0
      %1506 = vmatmul.mubr.bf16.gmra.mxu0 %v1421
      %v1507 = vpop.f32.mrf.mxu0
      %v1508 = vadd.f32 0.0, %v1507
      %v1509 = vpop.f32.mrf.mxu0
      %v1510 = vpop.f32.mrf.mxu0
      %v1511 = vadd.f32 0.0, %v1510
      %v1512 = vpop.f32.mrf.mxu0
      %1513 = vmatprep.mubr.bf16.mxu0 0
      %1514 = vmatmul.mubr.bf16.gmra.mxu0 %v1422
      %v1515 = vpop.f32.mrf.mxu0
      %v1516 = vadd.f32 0.0, %v1515
      %v1517 = vpop.f32.mrf.mxu0
      %v1518 = vpop.f32.mrf.mxu0
      %v1519 = vadd.f32 0.0, %v1518
      %v1520 = vpop.f32.mrf.mxu0
      %1521 = vmatprep.mubr.bf16.mxu0 0
      %1522 = vmatmul.mubr.bf16.gmra.mxu0 %v1423
      %v1523 = vpop.f32.mrf.mxu0
      %v1524 = vadd.f32 0.0, %v1523
      %v1525 = vpop.f32.mrf.mxu0
      %v1526 = vpop.f32.mrf.mxu0
      %v1527 = vadd.f32 0.0, %v1526
      %v1528 = vpop.f32.mrf.mxu0
      %1529 = vmatprep.mubr.bf16.mxu0 0
      %1530 = vmatmul.mubr.bf16.gmra.mxu0 %v1424
      %v1531 = vpop.f32.mrf.mxu0
      %v1532 = vadd.f32 0.0, %v1531
      %v1533 = vpop.f32.mrf.mxu0
      %v1534 = vpop.f32.mrf.mxu0
      %v1535 = vadd.f32 0.0, %v1534
      %v1536 = vpop.f32.mrf.mxu0
      %1537 = vdwg.mxu0
      %v1538 = vadd.f32 %v1389, %v1508
      %v1539 = vadd.f32 %v1390, %v1511
      %v1540 = vadd.f32 %v1391, %v1516
      %v1541 = vadd.f32 %v1392, %v1519
      %v1542 = vadd.f32 %v1393, %v1524
      %v1543 = vadd.f32 %v1394, %v1527
      %v1544 = vadd.f32 %v1395, %v1532
      %v1545 = vadd.f32 %v1396, %v1535
      %v1546 = vld [vmem:[%s1247 + $0x2] sm:$0xff]
      %v1547 = vld [vmem:[%s1247 + $0x12] sm:$0xff]
      %v1548 = vld [vmem:[%s1247 + $0x22] sm:$0xff]
      %v1549 = vld [vmem:[%s1247 + $0x32] sm:$0xff]
      %v1550 = vld [vmem:[%s1247 + $0x42] sm:$0xff]
      %v1551 = vld [vmem:[%s1247 + $0x52] sm:$0xff]
      %v1552 = vld [vmem:[%s1247 + $0x62] sm:$0xff]
      %v1553 = vld [vmem:[%s1247 + $0x72] sm:$0xff]
      %v1554 = vld [vmem:[%s1 + $0x200] sm:$0xf]
      %v1555 = vld [vmem:[%s1 + $0x204] sm:$0xf]
      %v1556 = vld [vmem:[%s1 + $0x208] sm:$0xf]
      %v1557 = vld [vmem:[%s1 + $0x20c] sm:$0xf]
      %v1558 = vld [vmem:[%s1 + $0x210] sm:$0xf]
      %v1559 = vld [vmem:[%s1 + $0x214] sm:$0xf]
      %v1560 = vld [vmem:[%s1 + $0x218] sm:$0xf]
      %v1561 = vld [vmem:[%s1 + $0x21c] sm:$0xf]
      %v1562 = vld [vmem:[%s1 + $0x220] sm:$0xf]
      %v1563 = vld [vmem:[%s1 + $0x224] sm:$0xf]
      %v1564 = vld [vmem:[%s1 + $0x228] sm:$0xf]
      %v1565 = vld [vmem:[%s1 + $0x22c] sm:$0xf]
      %v1566 = vld [vmem:[%s1 + $0x230] sm:$0xf]
      %v1567 = vld [vmem:[%s1 + $0x234] sm:$0xf]
      %v1568 = vld [vmem:[%s1 + $0x238] sm:$0xf]
      %v1569 = vld [vmem:[%s1 + $0x23c] sm:$0xf]
      %v1570 = vpack.c.bf16 %v1547, %v1546
      %v1571 = vpack.c.bf16 %v1549, %v1548
      %v1572 = vpack.c.bf16 %v1551, %v1550
      %v1573 = vpack.c.bf16 %v1553, %v1552
      %v1590 = vunpack.c.l.b16 %v1554
      %v1591 = vunpack.c.l.b16 %v1555
      %v1592 = vunpack.c.l.b16 %v1556
      %v1593 = vunpack.c.l.b16 %v1557
      %v1594 = vunpack.c.l.b16 %v1558
      %v1595 = vunpack.c.l.b16 %v1559
      %v1596 = vunpack.c.l.b16 %v1560
      %v1597 = vunpack.c.l.b16 %v1561
      %v1598 = vunpack.c.l.b16 %v1562
      %v1599 = vunpack.c.l.b16 %v1563
      %v1600 = vunpack.c.l.b16 %v1564
      %v1601 = vunpack.c.l.b16 %v1565
      %v1602 = vunpack.c.l.b16 %v1566
      %v1603 = vunpack.c.l.b16 %v1567
      %v1604 = vunpack.c.l.b16 %v1568
      %v1605 = vunpack.c.l.b16 %v1569
      %v1606 = vpack.c.b16 %v1591, %v1590
      %v1607 = vpack.c.b16 %v1593, %v1592
      %v1608 = vpack.c.b16 %v1595, %v1594
      %v1609 = vpack.c.b16 %v1597, %v1596
      %v1610 = vpack.c.b16 %v1599, %v1598
      %v1611 = vpack.c.b16 %v1601, %v1600
      %v1612 = vpack.c.b16 %v1603, %v1602
      %v1613 = vpack.c.b16 %v1605, %v1604
      %1622 = vmatprep.subr.bf16.mxu0 0
      %1623 = vmatpush1.bf16.msra.mxu0 %v1613
      %1624 = vmatprep.subr.bf16.mxu0 0
      %1625 = vmatpush1.bf16.msra.mxu0 %v1612
      %1626 = vmatprep.subr.bf16.mxu0 0
      %1627 = vmatpush1.bf16.msra.mxu0 %v1611
      %1628 = vmatprep.subr.bf16.mxu0 0
      %1629 = vmatpush1.bf16.msra.mxu0 %v1610
      %1630 = vmatprep.subr.bf16.mxu0 0
      %1631 = vmatpush1.bf16.msra.mxu0 %v1609
      %1632 = vmatprep.subr.bf16.mxu0 0
      %1633 = vmatpush1.bf16.msra.mxu0 %v1608
      %1634 = vmatprep.subr.bf16.mxu0 0
      %1635 = vmatpush1.bf16.msra.mxu0 %v1607
      %1636 = vmatprep.subr.bf16.mxu0 0
      %1637 = vmatpush1.bf16.msra.mxu0 %v1606
      %1638 = vmatprep.subr.bf16.mxu0 0
      %1639 = vmatpush2.bf16.msra.mxu0 0
      %1640 = vmatprep.subr.bf16.mxu0 0
      %1641 = vmatpush2.bf16.msra.mxu0 0
      %1642 = vmatprep.subr.bf16.mxu0 0
      %1643 = vmatpush2.bf16.msra.mxu0 0
      %1644 = vmatprep.subr.bf16.mxu0 0
      %1645 = vmatpush2.bf16.msra.mxu0 0
      %1646 = vmatprep.subr.bf16.mxu0 0
      %1647 = vmatpush2.bf16.msra.mxu0 0
      %1648 = vmatprep.subr.bf16.mxu0 0
      %1649 = vmatpush2.bf16.msra.mxu0 0
      %1650 = vmatprep.subr.bf16.mxu0 0
      %1651 = vmatpush2.bf16.msra.mxu0 0
      %1652 = vmatprep.subr.bf16.mxu0 0
      %1653 = vmatpush2.bf16.msra.mxu0 0
      %1654 = vmatprep.mubr.bf16.mxu0 0
      %1655 = vmatmul.mubr.bf16.gmra.mxu0 %v1570
      %v1656 = vpop.f32.mrf.mxu0
      %v1657 = vadd.f32 0.0, %v1656
      %v1658 = vpop.f32.mrf.mxu0
      %v1659 = vpop.f32.mrf.mxu0
      %v1660 = vadd.f32 0.0, %v1659
      %v1661 = vpop.f32.mrf.mxu0
      %1662 = vmatprep.mubr.bf16.mxu0 0
      %1663 = vmatmul.mubr.bf16.gmra.mxu0 %v1571
      %v1664 = vpop.f32.mrf.mxu0
      %v1665 = vadd.f32 0.0, %v1664
      %v1666 = vpop.f32.mrf.mxu0
      %v1667 = vpop.f32.mrf.mxu0
      %v1668 = vadd.f32 0.0, %v1667
      %v1669 = vpop.f32.mrf.mxu0
      %1670 = vmatprep.mubr.bf16.mxu0 0
      %1671 = vmatmul.mubr.bf16.gmra.mxu0 %v1572
      %v1672 = vpop.f32.mrf.mxu0
      %v1673 = vadd.f32 0.0, %v1672
      %v1674 = vpop.f32.mrf.mxu0
      %v1675 = vpop.f32.mrf.mxu0
      %v1676 = vadd.f32 0.0, %v1675
      %v1677 = vpop.f32.mrf.mxu0
      %1678 = vmatprep.mubr.bf16.mxu0 0
      %1679 = vmatmul.mubr.bf16.gmra.mxu0 %v1573
      %v1680 = vpop.f32.mrf.mxu0
      %v1681 = vadd.f32 0.0, %v1680
      %v1682 = vpop.f32.mrf.mxu0
      %v1683 = vpop.f32.mrf.mxu0
      %v1684 = vadd.f32 0.0, %v1683
      %v1685 = vpop.f32.mrf.mxu0
      %1686 = vdwg.mxu0
      %v1687 = vadd.f32 %v1538, %v1657
      %v1688 = vadd.f32 %v1539, %v1660
      %v1689 = vadd.f32 %v1540, %v1665
      %v1690 = vadd.f32 %v1541, %v1668
      %v1691 = vadd.f32 %v1542, %v1673
      %v1692 = vadd.f32 %v1543, %v1676
      %v1693 = vadd.f32 %v1544, %v1681
      %v1694 = vadd.f32 %v1545, %v1684
      %v1695 = vld [vmem:[%s2] sm:$0x1]
      %v1697 = vlaneseq
      %v1698 = vshrl.u32 %v1697, 7
      %v1699 = vsub.s32 0, %v1698
      %v1700 = vrot.slane %v1695, %v1699
      %v1702 = vmul.f32 %v1687, %v1700
      %v1703 = vmul.f32 %v1688, %v1700
      %v1704 = vmul.f32 %v1689, %v1700
      %v1705 = vmul.f32 %v1690, %v1700
      %v1706 = vmul.f32 %v1691, %v1700
      %v1707 = vmul.f32 %v1692, %v1700
      %v1708 = vmul.f32 %v1693, %v1700
      %v1709 = vmul.f32 %v1694, %v1700
      %v1710 = vld [vmem:[%s3] sm:$0x1]
      %v1712 = vlaneseq
      %v1713 = vshrl.u32 %v1712, 7
      %v1714 = vsub.s32 0, %v1713
      %v1715 = vrot.slane %v1710, %v1714
      %v1717 = vadd.f32 %v1702, %v1715
      %v1718 = vadd.f32 %v1703, %v1715
      %v1719 = vadd.f32 %v1704, %v1715
      %v1720 = vadd.f32 %v1705, %v1715
      %v1721 = vadd.f32 %v1706, %v1715
      %v1722 = vadd.f32 %v1707, %v1715
      %v1723 = vadd.f32 %v1708, %v1715
      %v1724 = vadd.f32 %v1709, %v1715
      %v1725 = vmax.f32 %v1717, 0.0
      %v1726 = vmax.f32 %v1718, 0.0
      %v1727 = vmax.f32 %v1719, 0.0
      %v1728 = vmax.f32 %v1720, 0.0
      %v1729 = vmax.f32 %v1721, 0.0
      %v1730 = vmax.f32 %v1722, 0.0
      %v1731 = vmax.f32 %v1723, 0.0
      %v1732 = vmax.f32 %v1724, 0.0
      %s1733 = scalar_lea.vmem [#allocation3], 16
      %1734 = vst [vmem:[%s1733 + $0x1] sm:$0xff] %v1725
      %1735 = vst [vmem:[%s1733 + $0x11] sm:$0xff] %v1726
      %1736 = vst [vmem:[%s1733 + $0x21] sm:$0xff] %v1727
      %1737 = vst [vmem:[%s1733 + $0x31] sm:$0xff] %v1728
      %1738 = vst [vmem:[%s1733 + $0x41] sm:$0xff] %v1729
      %1739 = vst [vmem:[%s1733 + $0x51] sm:$0xff] %v1730
      %1740 = vst [vmem:[%s1733 + $0x61] sm:$0xff] %v1731
      %1741 = vst [vmem:[%s1733 + $0x71] sm:$0xff] %v1732
      %v1742 = vld [vmem:[#allocation3] sm:$0xff]
      %v1743 = vld [vmem:[#allocation3 + $0x10] sm:$0xff]
      %v1744 = vld [vmem:[#allocation3 + $0x20] sm:$0xff]
      %v1745 = vld [vmem:[#allocation3 + $0x30] sm:$0xff]
      %v1746 = vld [vmem:[#allocation3 + $0x40] sm:$0xff]
      %v1747 = vld [vmem:[#allocation3 + $0x50] sm:$0xff]
      %v1748 = vld [vmem:[#allocation3 + $0x60] sm:$0xff]
      %v1749 = vld [vmem:[#allocation3 + $0x70] sm:$0xff]
      %s1750 = scalar_lea.vmem %s1, 576
      %v1751 = vld [vmem:[%s1750] sm:$0xf]
      %v1752 = vld [vmem:[%s1750 + $0x4] sm:$0xf]
      %v1753 = vld [vmem:[%s1750 + $0x8] sm:$0xf]
      %v1754 = vld [vmem:[%s1750 + $0xc] sm:$0xf]
      %v1755 = vld [vmem:[%s1750 + $0x10] sm:$0xf]
      %v1756 = vld [vmem:[%s1750 + $0x14] sm:$0xf]
      %v1757 = vld [vmem:[%s1750 + $0x18] sm:$0xf]
      %v1758 = vld [vmem:[%s1750 + $0x1c] sm:$0xf]
      %v1759 = vld [vmem:[%s1750 + $0x20] sm:$0xf]
      %v1760 = vld [vmem:[%s1750 + $0x24] sm:$0xf]
      %v1761 = vld [vmem:[%s1750 + $0x28] sm:$0xf]
      %v1762 = vld [vmem:[%s1750 + $0x2c] sm:$0xf]
      %v1763 = vld [vmem:[%s1750 + $0x30] sm:$0xf]
      %v1764 = vld [vmem:[%s1750 + $0x34] sm:$0xf]
      %v1765 = vld [vmem:[%s1750 + $0x38] sm:$0xf]
      %v1766 = vld [vmem:[%s1750 + $0x3c] sm:$0xf]
      %v1767 = vpack.c.bf16 %v1743, %v1742
      %v1768 = vpack.c.bf16 %v1745, %v1744
      %v1769 = vpack.c.bf16 %v1747, %v1746
      %v1770 = vpack.c.bf16 %v1749, %v1748
      %v1771 = vld [vmem:[#allocation3 + $0x1] sm:$0xff]
      %v1772 = vld [vmem:[#allocation3 + $0x11] sm:$0xff]
      %v1773 = vld [vmem:[#allocation3 + $0x21] sm:$0xff]
      %v1774 = vld [vmem:[#allocation3 + $0x31] sm:$0xff]
      %v1775 = vld [vmem:[#allocation3 + $0x41] sm:$0xff]
      %v1776 = vld [vmem:[#allocation3 + $0x51] sm:$0xff]
      %v1777 = vld [vmem:[#allocation3 + $0x61] sm:$0xff]
      %v1778 = vld [vmem:[#allocation3 + $0x71] sm:$0xff]
      %v1779 = vld [vmem:[%s1750 + $0x40] sm:$0xf]
      %v1780 = vld [vmem:[%s1750 + $0x44] sm:$0xf]
      %v1781 = vld [vmem:[%s1750 + $0x48] sm:$0xf]
      %v1782 = vld [vmem:[%s1750 + $0x4c] sm:$0xf]
      %v1783 = vld [vmem:[%s1750 + $0x50] sm:$0xf]
      %v1784 = vld [vmem:[%s1750 + $0x54] sm:$0xf]
      %v1785 = vld [vmem:[%s1750 + $0x58] sm:$0xf]
      %v1786 = vld [vmem:[%s1750 + $0x5c] sm:$0xf]
      %v1787 = vld [vmem:[%s1750 + $0x60] sm:$0xf]
      %v1788 = vld [vmem:[%s1750 + $0x64] sm:$0xf]
      %v1789 = vld [vmem:[%s1750 + $0x68] sm:$0xf]
      %v1790 = vld [vmem:[%s1750 + $0x6c] sm:$0xf]
      %v1791 = vld [vmem:[%s1750 + $0x70] sm:$0xf]
      %v1792 = vld [vmem:[%s1750 + $0x74] sm:$0xf]
      %v1793 = vld [vmem:[%s1750 + $0x78] sm:$0xf]
      %v1794 = vld [vmem:[%s1750 + $0x7c] sm:$0xf]
      %v1795 = vpack.c.bf16 %v1772, %v1771
      %v1796 = vpack.c.bf16 %v1774, %v1773
      %v1797 = vpack.c.bf16 %v1776, %v1775
      %v1798 = vpack.c.bf16 %v1778, %v1777
      %v1815 = vunpack.c.l.b16 %v1779
      %v1816 = vunpack.c.l.b16 %v1780
      %v1817 = vunpack.c.l.b16 %v1781
      %v1818 = vunpack.c.l.b16 %v1782
      %v1819 = vunpack.c.l.b16 %v1783
      %v1820 = vunpack.c.l.b16 %v1784
      %v1821 = vunpack.c.l.b16 %v1785
      %v1822 = vunpack.c.l.b16 %v1786
      %v1823 = vunpack.c.l.b16 %v1787
      %v1824 = vunpack.c.l.b16 %v1788
      %v1825 = vunpack.c.l.b16 %v1789
      %v1826 = vunpack.c.l.b16 %v1790
      %v1827 = vunpack.c.l.b16 %v1791
      %v1828 = vunpack.c.l.b16 %v1792
      %v1829 = vunpack.c.l.b16 %v1793
      %v1830 = vunpack.c.l.b16 %v1794
      %v1831 = vpack.c.b16 %v1816, %v1815
      %v1832 = vpack.c.b16 %v1818, %v1817
      %v1833 = vpack.c.b16 %v1820, %v1819
      %v1834 = vpack.c.b16 %v1822, %v1821
      %v1835 = vpack.c.b16 %v1824, %v1823
      %v1836 = vpack.c.b16 %v1826, %v1825
      %v1837 = vpack.c.b16 %v1828, %v1827
      %v1838 = vpack.c.b16 %v1830, %v1829
      %1847 = vmatprep.subr.bf16.mxu0 0
      %1848 = vmatpush1.bf16.msra.mxu0 %v1838
      %1849 = vmatprep.subr.bf16.mxu0 0
      %1850 = vmatpush1.bf16.msra.mxu0 %v1837
      %1851 = vmatprep.subr.bf16.mxu0 0
      %1852 = vmatpush1.bf16.msra.mxu0 %v1836
      %1853 = vmatprep.subr.bf16.mxu0 0
      %1854 = vmatpush1.bf16.msra.mxu0 %v1835
      %1855 = vmatprep.subr.bf16.mxu0 0
      %1856 = vmatpush1.bf16.msra.mxu0 %v1834
      %1857 = vmatprep.subr.bf16.mxu0 0
      %1858 = vmatpush1.bf16.msra.mxu0 %v1833
      %1859 = vmatprep.subr.bf16.mxu0 0
      %1860 = vmatpush1.bf16.msra.mxu0 %v1832
      %1861 = vmatprep.subr.bf16.mxu0 0
      %1862 = vmatpush1.bf16.msra.mxu0 %v1831
      %1863 = vmatprep.subr.bf16.mxu0 0
      %1864 = vmatpush2.bf16.msra.mxu0 0
      %1865 = vmatprep.subr.bf16.mxu0 0
      %1866 = vmatpush2.bf16.msra.mxu0 0
      %1867 = vmatprep.subr.bf16.mxu0 0
      %1868 = vmatpush2.bf16.msra.mxu0 0
      %1869 = vmatprep.subr.bf16.mxu0 0
      %1870 = vmatpush2.bf16.msra.mxu0 0
      %1871 = vmatprep.subr.bf16.mxu0 0
      %1872 = vmatpush2.bf16.msra.mxu0 0
      %1873 = vmatprep.subr.bf16.mxu0 0
      %1874 = vmatpush2.bf16.msra.mxu0 0
      %1875 = vmatprep.subr.bf16.mxu0 0
      %1876 = vmatpush2.bf16.msra.mxu0 0
      %1877 = vmatprep.subr.bf16.mxu0 0
      %1878 = vmatpush2.bf16.msra.mxu0 0
      %1879 = vmatprep.mubr.bf16.mxu0 0
      %1880 = vmatmul.mubr.bf16.gmra.mxu0 %v1795
      %v1881 = vpop.f32.mrf.mxu0
      %v1882 = vadd.f32 0.0, %v1881
      %v1883 = vpop.f32.mrf.mxu0
      %v1884 = vpop.f32.mrf.mxu0
      %v1885 = vadd.f32 0.0, %v1884
      %v1886 = vpop.f32.mrf.mxu0
      %1887 = vmatprep.mubr.bf16.mxu0 0
      %1888 = vmatmul.mubr.bf16.gmra.mxu0 %v1796
      %v1889 = vpop.f32.mrf.mxu0
      %v1890 = vadd.f32 0.0, %v1889
      %v1891 = vpop.f32.mrf.mxu0
      %v1892 = vpop.f32.mrf.mxu0
      %v1893 = vadd.f32 0.0, %v1892
      %v1894 = vpop.f32.mrf.mxu0
      %1895 = vmatprep.mubr.bf16.mxu0 0
      %1896 = vmatmul.mubr.bf16.gmra.mxu0 %v1797
      %v1897 = vpop.f32.mrf.mxu0
      %v1898 = vadd.f32 0.0, %v1897
      %v1899 = vpop.f32.mrf.mxu0
      %v1900 = vpop.f32.mrf.mxu0
      %v1901 = vadd.f32 0.0, %v1900
      %v1902 = vpop.f32.mrf.mxu0
      %1903 = vmatprep.mubr.bf16.mxu0 0
      %1904 = vmatmul.mubr.bf16.gmra.mxu0 %v1798
      %v1905 = vpop.f32.mrf.mxu0
      %v1906 = vadd.f32 0.0, %v1905
      %v1907 = vpop.f32.mrf.mxu0
      %v1908 = vpop.f32.mrf.mxu0
      %v1909 = vadd.f32 0.0, %v1908
      %v1910 = vpop.f32.mrf.mxu0
      %1911 = vdwg.mxu0
      %v1928 = vunpack.c.l.b16 %v1751
      %v1929 = vunpack.c.l.b16 %v1752
      %v1930 = vunpack.c.l.b16 %v1753
      %v1931 = vunpack.c.l.b16 %v1754
      %v1932 = vunpack.c.l.b16 %v1755
      %v1933 = vunpack.c.l.b16 %v1756
      %v1934 = vunpack.c.l.b16 %v1757
      %v1935 = vunpack.c.l.b16 %v1758
      %v1936 = vunpack.c.l.b16 %v1759
      %v1937 = vunpack.c.l.b16 %v1760
      %v1938 = vunpack.c.l.b16 %v1761
      %v1939 = vunpack.c.l.b16 %v1762
      %v1940 = vunpack.c.l.b16 %v1763
      %v1941 = vunpack.c.l.b16 %v1764
      %v1942 = vunpack.c.l.b16 %v1765
      %v1943 = vunpack.c.l.b16 %v1766
      %v1944 = vpack.c.b16 %v1929, %v1928
      %v1945 = vpack.c.b16 %v1931, %v1930
      %v1946 = vpack.c.b16 %v1933, %v1932
      %v1947 = vpack.c.b16 %v1935, %v1934
      %v1948 = vpack.c.b16 %v1937, %v1936
      %v1949 = vpack.c.b16 %v1939, %v1938
      %v1950 = vpack.c.b16 %v1941, %v1940
      %v1951 = vpack.c.b16 %v1943, %v1942
      %1960 = vmatprep.subr.bf16.mxu0 0
      %1961 = vmatpush1.bf16.msra.mxu0 %v1951
      %1962 = vmatprep.subr.bf16.mxu0 0
      %1963 = vmatpush1.bf16.msra.mxu0 %v1950
      %1964 = vmatprep.subr.bf16.mxu0 0
      %1965 = vmatpush1.bf16.msra.mxu0 %v1949
      %1966 = vmatprep.subr.bf16.mxu0 0
      %1967 = vmatpush1.bf16.msra.mxu0 %v1948
      %1968 = vmatprep.subr.bf16.mxu0 0
      %1969 = vmatpush1.bf16.msra.mxu0 %v1947
      %1970 = vmatprep.subr.bf16.mxu0 0
      %1971 = vmatpush1.bf16.msra.mxu0 %v1946
      %1972 = vmatprep.subr.bf16.mxu0 0
      %1973 = vmatpush1.bf16.msra.mxu0 %v1945
      %1974 = vmatprep.subr.bf16.mxu0 0
      %1975 = vmatpush1.bf16.msra.mxu0 %v1944
      %1976 = vmatprep.subr.bf16.mxu0 0
      %1977 = vmatpush2.bf16.msra.mxu0 0
      %1978 = vmatprep.subr.bf16.mxu0 0
      %1979 = vmatpush2.bf16.msra.mxu0 0
      %1980 = vmatprep.subr.bf16.mxu0 0
      %1981 = vmatpush2.bf16.msra.mxu0 0
      %1982 = vmatprep.subr.bf16.mxu0 0
      %1983 = vmatpush2.bf16.msra.mxu0 0
      %1984 = vmatprep.subr.bf16.mxu0 0
      %1985 = vmatpush2.bf16.msra.mxu0 0
      %1986 = vmatprep.subr.bf16.mxu0 0
      %1987 = vmatpush2.bf16.msra.mxu0 0
      %1988 = vmatprep.subr.bf16.mxu0 0
      %1989 = vmatpush2.bf16.msra.mxu0 0
      %1990 = vmatprep.subr.bf16.mxu0 0
      %1991 = vmatpush2.bf16.msra.mxu0 0
      %1992 = vmatprep.mubr.bf16.mxu0 0
      %1993 = vmatmul.mubr.bf16.gmra.mxu0 %v1767
      %v1994 = vpop.f32.mrf.mxu0
      %v1995 = vadd.f32 %v1882, %v1994
      %v1996 = vpop.f32.mrf.mxu0
      %v1997 = vpop.f32.mrf.mxu0
      %v1998 = vadd.f32 %v1885, %v1997
      %v1999 = vpop.f32.mrf.mxu0
      %2000 = vmatprep.mubr.bf16.mxu0 0
      %2001 = vmatmul.mubr.bf16.gmra.mxu0 %v1768
      %v2002 = vpop.f32.mrf.mxu0
      %v2003 = vadd.f32 %v1890, %v2002
      %v2004 = vpop.f32.mrf.mxu0
      %v2005 = vpop.f32.mrf.mxu0
      %v2006 = vadd.f32 %v1893, %v2005
      %v2007 = vpop.f32.mrf.mxu0
      %2008 = vmatprep.mubr.bf16.mxu0 0
      %2009 = vmatmul.mubr.bf16.gmra.mxu0 %v1769
      %v2010 = vpop.f32.mrf.mxu0
      %v2011 = vadd.f32 %v1898, %v2010
      %v2012 = vpop.f32.mrf.mxu0
      %v2013 = vpop.f32.mrf.mxu0
      %v2014 = vadd.f32 %v1901, %v2013
      %v2015 = vpop.f32.mrf.mxu0
      %2016 = vmatprep.mubr.bf16.mxu0 0
      %2017 = vmatmul.mubr.bf16.gmra.mxu0 %v1770
      %v2018 = vpop.f32.mrf.mxu0
      %v2019 = vadd.f32 %v1906, %v2018
      %v2020 = vpop.f32.mrf.mxu0
      %v2021 = vpop.f32.mrf.mxu0
      %v2022 = vadd.f32 %v1909, %v2021
      %v2023 = vpop.f32.mrf.mxu0
      %2024 = vdwg.mxu0
      %v2025 = vld [vmem:[#allocation3 + $0x2] sm:$0xff]
      %v2026 = vld [vmem:[#allocation3 + $0x12] sm:$0xff]
      %v2027 = vld [vmem:[#allocation3 + $0x22] sm:$0xff]
      %v2028 = vld [vmem:[#allocation3 + $0x32] sm:$0xff]
      %v2029 = vld [vmem:[#allocation3 + $0x42] sm:$0xff]
      %v2030 = vld [vmem:[#allocation3 + $0x52] sm:$0xff]
      %v2031 = vld [vmem:[#allocation3 + $0x62] sm:$0xff]
      %v2032 = vld [vmem:[#allocation3 + $0x72] sm:$0xff]
      %v2033 = vld [vmem:[%s1750 + $0x80] sm:$0xf]
      %v2034 = vld [vmem:[%s1750 + $0x84] sm:$0xf]
      %v2035 = vld [vmem:[%s1750 + $0x88] sm:$0xf]
      %v2036 = vld [vmem:[%s1750 + $0x8c] sm:$0xf]
      %v2037 = vld [vmem:[%s1750 + $0x90] sm:$0xf]
      %v2038 = vld [vmem:[%s1750 + $0x94] sm:$0xf]
      %v2039 = vld [vmem:[%s1750 + $0x98] sm:$0xf]
      %v2040 = vld [vmem:[%s1750 + $0x9c] sm:$0xf]
      %v2041 = vld [vmem:[%s1750 + $0xa0] sm:$0xf]
      %v2042 = vld [vmem:[%s1750 + $0xa4] sm:$0xf]
      %v2043 = vld [vmem:[%s1750 + $0xa8] sm:$0xf]
      %v2044 = vld [vmem:[%s1750 + $0xac] sm:$0xf]
      %v2045 = vld [vmem:[%s1750 + $0xb0] sm:$0xf]
      %v2046 = vld [vmem:[%s1750 + $0xb4] sm:$0xf]
      %v2047 = vld [vmem:[%s1750 + $0xb8] sm:$0xf]
      %v2048 = vld [vmem:[%s1750 + $0xbc] sm:$0xf]
      %v2049 = vpack.c.bf16 %v2026, %v2025
      %v2050 = vpack.c.bf16 %v2028, %v2027
      %v2051 = vpack.c.bf16 %v2030, %v2029
      %v2052 = vpack.c.bf16 %v2032, %v2031
      %v2069 = vunpack.c.l.b16 %v2033
      %v2070 = vunpack.c.l.b16 %v2034
      %v2071 = vunpack.c.l.b16 %v2035
      %v2072 = vunpack.c.l.b16 %v2036
      %v2073 = vunpack.c.l.b16 %v2037
      %v2074 = vunpack.c.l.b16 %v2038
      %v2075 = vunpack.c.l.b16 %v2039
      %v2076 = vunpack.c.l.b16 %v2040
      %v2077 = vunpack.c.l.b16 %v2041
      %v2078 = vunpack.c.l.b16 %v2042
      %v2079 = vunpack.c.l.b16 %v2043
      %v2080 = vunpack.c.l.b16 %v2044
      %v2081 = vunpack.c.l.b16 %v2045
      %v2082 = vunpack.c.l.b16 %v2046
      %v2083 = vunpack.c.l.b16 %v2047
      %v2084 = vunpack.c.l.b16 %v2048
      %v2085 = vpack.c.b16 %v2070, %v2069
      %v2086 = vpack.c.b16 %v2072, %v2071
      %v2087 = vpack.c.b16 %v2074, %v2073
      %v2088 = vpack.c.b16 %v2076, %v2075
      %v2089 = vpack.c.b16 %v2078, %v2077
      %v2090 = vpack.c.b16 %v2080, %v2079
      %v2091 = vpack.c.b16 %v2082, %v2081
      %v2092 = vpack.c.b16 %v2084, %v2083
      %2101 = vmatprep.subr.bf16.mxu0 0
      %2102 = vmatpush1.bf16.msra.mxu0 %v2092
      %2103 = vmatprep.subr.bf16.mxu0 0
      %2104 = vmatpush1.bf16.msra.mxu0 %v2091
      %2105 = vmatprep.subr.bf16.mxu0 0
      %2106 = vmatpush1.bf16.msra.mxu0 %v2090
      %2107 = vmatprep.subr.bf16.mxu0 0
      %2108 = vmatpush1.bf16.msra.mxu0 %v2089
      %2109 = vmatprep.subr.bf16.mxu0 0
      %2110 = vmatpush1.bf16.msra.mxu0 %v2088
      %2111 = vmatprep.subr.bf16.mxu0 0
      %2112 = vmatpush1.bf16.msra.mxu0 %v2087
      %2113 = vmatprep.subr.bf16.mxu0 0
      %2114 = vmatpush1.bf16.msra.mxu0 %v2086
      %2115 = vmatprep.subr.bf16.mxu0 0
      %2116 = vmatpush1.bf16.msra.mxu0 %v2085
      %2117 = vmatprep.subr.bf16.mxu0 0
      %2118 = vmatpush2.bf16.msra.mxu0 0
      %2119 = vmatprep.subr.bf16.mxu0 0
      %2120 = vmatpush2.bf16.msra.mxu0 0
      %2121 = vmatprep.subr.bf16.mxu0 0
      %2122 = vmatpush2.bf16.msra.mxu0 0
      %2123 = vmatprep.subr.bf16.mxu0 0
      %2124 = vmatpush2.bf16.msra.mxu0 0
      %2125 = vmatprep.subr.bf16.mxu0 0
      %2126 = vmatpush2.bf16.msra.mxu0 0
      %2127 = vmatprep.subr.bf16.mxu0 0
      %2128 = vmatpush2.bf16.msra.mxu0 0
      %2129 = vmatprep.subr.bf16.mxu0 0
      %2130 = vmatpush2.bf16.msra.mxu0 0
      %2131 = vmatprep.subr.bf16.mxu0 0
      %2132 = vmatpush2.bf16.msra.mxu0 0
      %2133 = vmatprep.mubr.bf16.mxu0 0
      %2134 = vmatmul.mubr.bf16.gmra.mxu0 %v2049
      %v2135 = vpop.f32.mrf.mxu0
      %v2136 = vadd.f32 0.0, %v2135
      %v2137 = vpop.f32.mrf.mxu0
      %v2138 = vpop.f32.mrf.mxu0
      %v2139 = vadd.f32 0.0, %v2138
      %v2140 = vpop.f32.mrf.mxu0
      %2141 = vmatprep.mubr.bf16.mxu0 0
      %2142 = vmatmul.mubr.bf16.gmra.mxu0 %v2050
      %v2143 = vpop.f32.mrf.mxu0
      %v2144 = vadd.f32 0.0, %v2143
      %v2145 = vpop.f32.mrf.mxu0
      %v2146 = vpop.f32.mrf.mxu0
      %v2147 = vadd.f32 0.0, %v2146
      %v2148 = vpop.f32.mrf.mxu0
      %2149 = vmatprep.mubr.bf16.mxu0 0
      %2150 = vmatmul.mubr.bf16.gmra.mxu0 %v2051
      %v2151 = vpop.f32.mrf.mxu0
      %v2152 = vadd.f32 0.0, %v2151
      %v2153 = vpop.f32.mrf.mxu0
      %v2154 = vpop.f32.mrf.mxu0
      %v2155 = vadd.f32 0.0, %v2154
      %v2156 = vpop.f32.mrf.mxu0
      %2157 = vmatprep.mubr.bf16.mxu0 0
      %2158 = vmatmul.mubr.bf16.gmra.mxu0 %v2052
      %v2159 = vpop.f32.mrf.mxu0
      %v2160 = vadd.f32 0.0, %v2159
      %v2161 = vpop.f32.mrf.mxu0
      %v2162 = vpop.f32.mrf.mxu0
      %v2163 = vadd.f32 0.0, %v2162
      %v2164 = vpop.f32.mrf.mxu0
      %2165 = vdwg.mxu0
      %v2166 = vadd.f32 %v1995, %v2136
      %v2167 = vadd.f32 %v1998, %v2139
      %v2168 = vadd.f32 %v2003, %v2144
      %v2169 = vadd.f32 %v2006, %v2147
      %v2170 = vadd.f32 %v2011, %v2152
      %v2171 = vadd.f32 %v2014, %v2155
      %v2172 = vadd.f32 %v2019, %v2160
      %v2173 = vadd.f32 %v2022, %v2163
      %v2174 = vld [vmem:[%s1733] sm:$0xff]
      %v2175 = vld [vmem:[%s1733 + $0x10] sm:$0xff]
      %v2176 = vld [vmem:[%s1733 + $0x20] sm:$0xff]
      %v2177 = vld [vmem:[%s1733 + $0x30] sm:$0xff]
      %v2178 = vld [vmem:[%s1733 + $0x40] sm:$0xff]
      %v2179 = vld [vmem:[%s1733 + $0x50] sm:$0xff]
      %v2180 = vld [vmem:[%s1733 + $0x60] sm:$0xff]
      %v2181 = vld [vmem:[%s1733 + $0x70] sm:$0xff]
      %v2182 = vld [vmem:[%s1750 + $0xc0] sm:$0xf]
      %v2183 = vld [vmem:[%s1750 + $0xc4] sm:$0xf]
      %v2184 = vld [vmem:[%s1750 + $0xc8] sm:$0xf]
      %v2185 = vld [vmem:[%s1750 + $0xcc] sm:$0xf]
      %v2186 = vld [vmem:[%s1750 + $0xd0] sm:$0xf]
      %v2187 = vld [vmem:[%s1750 + $0xd4] sm:$0xf]
      %v2188 = vld [vmem:[%s1750 + $0xd8] sm:$0xf]
      %v2189 = vld [vmem:[%s1750 + $0xdc] sm:$0xf]
      %v2190 = vld [vmem:[%s1750 + $0xe0] sm:$0xf]
      %v2191 = vld [vmem:[%s1750 + $0xe4] sm:$0xf]
      %v2192 = vld [vmem:[%s1750 + $0xe8] sm:$0xf]
      %v2193 = vld [vmem:[%s1750 + $0xec] sm:$0xf]
      %v2194 = vld [vmem:[%s1750 + $0xf0] sm:$0xf]
      %v2195 = vld [vmem:[%s1750 + $0xf4] sm:$0xf]
      %v2196 = vld [vmem:[%s1750 + $0xf8] sm:$0xf]
      %v2197 = vld [vmem:[%s1750 + $0xfc] sm:$0xf]
      %v2198 = vpack.c.bf16 %v2175, %v2174
      %v2199 = vpack.c.bf16 %v2177, %v2176
      %v2200 = vpack.c.bf16 %v2179, %v2178
      %v2201 = vpack.c.bf16 %v2181, %v2180
      %v2218 = vunpack.c.l.b16 %v2182
      %v2219 = vunpack.c.l.b16 %v2183
      %v2220 = vunpack.c.l.b16 %v2184
      %v2221 = vunpack.c.l.b16 %v2185
      %v2222 = vunpack.c.l.b16 %v2186
      %v2223 = vunpack.c.l.b16 %v2187
      %v2224 = vunpack.c.l.b16 %v2188
      %v2225 = vunpack.c.l.b16 %v2189
      %v2226 = vunpack.c.l.b16 %v2190
      %v2227 = vunpack.c.l.b16 %v2191
      %v2228 = vunpack.c.l.b16 %v2192
      %v2229 = vunpack.c.l.b16 %v2193
      %v2230 = vunpack.c.l.b16 %v2194
      %v2231 = vunpack.c.l.b16 %v2195
      %v2232 = vunpack.c.l.b16 %v2196
      %v2233 = vunpack.c.l.b16 %v2197
      %v2234 = vpack.c.b16 %v2219, %v2218
      %v2235 = vpack.c.b16 %v2221, %v2220
      %v2236 = vpack.c.b16 %v2223, %v2222
      %v2237 = vpack.c.b16 %v2225, %v2224
      %v2238 = vpack.c.b16 %v2227, %v2226
      %v2239 = vpack.c.b16 %v2229, %v2228
      %v2240 = vpack.c.b16 %v2231, %v2230
      %v2241 = vpack.c.b16 %v2233, %v2232
      %2250 = vmatprep.subr.bf16.mxu0 0
      %2251 = vmatpush1.bf16.msra.mxu0 %v2241
      %2252 = vmatprep.subr.bf16.mxu0 0
      %2253 = vmatpush1.bf16.msra.mxu0 %v2240
      %2254 = vmatprep.subr.bf16.mxu0 0
      %2255 = vmatpush1.bf16.msra.mxu0 %v2239
      %2256 = vmatprep.subr.bf16.mxu0 0
      %2257 = vmatpush1.bf16.msra.mxu0 %v2238
      %2258 = vmatprep.subr.bf16.mxu0 0
      %2259 = vmatpush1.bf16.msra.mxu0 %v2237
      %2260 = vmatprep.subr.bf16.mxu0 0
      %2261 = vmatpush1.bf16.msra.mxu0 %v2236
      %2262 = vmatprep.subr.bf16.mxu0 0
      %2263 = vmatpush1.bf16.msra.mxu0 %v2235
      %2264 = vmatprep.subr.bf16.mxu0 0
      %2265 = vmatpush1.bf16.msra.mxu0 %v2234
      %2266 = vmatprep.subr.bf16.mxu0 0
      %2267 = vmatpush2.bf16.msra.mxu0 0
      %2268 = vmatprep.subr.bf16.mxu0 0
      %2269 = vmatpush2.bf16.msra.mxu0 0
      %2270 = vmatprep.subr.bf16.mxu0 0
      %2271 = vmatpush2.bf16.msra.mxu0 0
      %2272 = vmatprep.subr.bf16.mxu0 0
      %2273 = vmatpush2.bf16.msra.mxu0 0
      %2274 = vmatprep.subr.bf16.mxu0 0
      %2275 = vmatpush2.bf16.msra.mxu0 0
      %2276 = vmatprep.subr.bf16.mxu0 0
      %2277 = vmatpush2.bf16.msra.mxu0 0
      %2278 = vmatprep.subr.bf16.mxu0 0
      %2279 = vmatpush2.bf16.msra.mxu0 0
      %2280 = vmatprep.subr.bf16.mxu0 0
      %2281 = vmatpush2.bf16.msra.mxu0 0
      %2282 = vmatprep.mubr.bf16.mxu0 0
      %2283 = vmatmul.mubr.bf16.gmra.mxu0 %v2198
      %v2284 = vpop.f32.mrf.mxu0
      %v2285 = vadd.f32 0.0, %v2284
      %v2286 = vpop.f32.mrf.mxu0
      %v2287 = vpop.f32.mrf.mxu0
      %v2288 = vadd.f32 0.0, %v2287
      %v2289 = vpop.f32.mrf.mxu0
      %2290 = vmatprep.mubr.bf16.mxu0 0
      %2291 = vmatmul.mubr.bf16.gmra.mxu0 %v2199
      %v2292 = vpop.f32.mrf.mxu0
      %v2293 = vadd.f32 0.0, %v2292
      %v2294 = vpop.f32.mrf.mxu0
      %v2295 = vpop.f32.mrf.mxu0
      %v2296 = vadd.f32 0.0, %v2295
      %v2297 = vpop.f32.mrf.mxu0
      %2298 = vmatprep.mubr.bf16.mxu0 0
      %2299 = vmatmul.mubr.bf16.gmra.mxu0 %v2200
      %v2300 = vpop.f32.mrf.mxu0
      %v2301 = vadd.f32 0.0, %v2300
      %v2302 = vpop.f32.mrf.mxu0
      %v2303 = vpop.f32.mrf.mxu0
      %v2304 = vadd.f32 0.0, %v2303
      %v2305 = vpop.f32.mrf.mxu0
      %2306 = vmatprep.mubr.bf16.mxu0 0
      %2307 = vmatmul.mubr.bf16.gmra.mxu0 %v2201
      %v2308 = vpop.f32.mrf.mxu0
      %v2309 = vadd.f32 0.0, %v2308
      %v2310 = vpop.f32.mrf.mxu0
      %v2311 = vpop.f32.mrf.mxu0
      %v2312 = vadd.f32 0.0, %v2311
      %v2313 = vpop.f32.mrf.mxu0
      %2314 = vdwg.mxu0
      %v2315 = vadd.f32 %v2166, %v2285
      %v2316 = vadd.f32 %v2167, %v2288
      %v2317 = vadd.f32 %v2168, %v2293
      %v2318 = vadd.f32 %v2169, %v2296
      %v2319 = vadd.f32 %v2170, %v2301
      %v2320 = vadd.f32 %v2171, %v2304
      %v2321 = vadd.f32 %v2172, %v2309
      %v2322 = vadd.f32 %v2173, %v2312
      %v2323 = vld [vmem:[%s1733 + $0x1] sm:$0xff]
      %v2324 = vld [vmem:[%s1733 + $0x11] sm:$0xff]
      %v2325 = vld [vmem:[%s1733 + $0x21] sm:$0xff]
      %v2326 = vld [vmem:[%s1733 + $0x31] sm:$0xff]
      %v2327 = vld [vmem:[%s1733 + $0x41] sm:$0xff]
      %v2328 = vld [vmem:[%s1733 + $0x51] sm:$0xff]
      %v2329 = vld [vmem:[%s1733 + $0x61] sm:$0xff]
      %v2330 = vld [vmem:[%s1733 + $0x71] sm:$0xff]
      %v2331 = vld [vmem:[%s1750 + $0x100] sm:$0xf]
      %v2332 = vld [vmem:[%s1750 + $0x104] sm:$0xf]
      %v2333 = vld [vmem:[%s1750 + $0x108] sm:$0xf]
      %v2334 = vld [vmem:[%s1750 + $0x10c] sm:$0xf]
      %v2335 = vld [vmem:[%s1750 + $0x110] sm:$0xf]
      %v2336 = vld [vmem:[%s1750 + $0x114] sm:$0xf]
      %v2337 = vld [vmem:[%s1750 + $0x118] sm:$0xf]
      %v2338 = vld [vmem:[%s1750 + $0x11c] sm:$0xf]
      %v2339 = vld [vmem:[%s1750 + $0x120] sm:$0xf]
      %v2340 = vld [vmem:[%s1750 + $0x124] sm:$0xf]
      %v2341 = vld [vmem:[%s1750 + $0x128] sm:$0xf]
      %v2342 = vld [vmem:[%s1750 + $0x12c] sm:$0xf]
      %v2343 = vld [vmem:[%s1750 + $0x130] sm:$0xf]
      %v2344 = vld [vmem:[%s1750 + $0x134] sm:$0xf]
      %v2345 = vld [vmem:[%s1750 + $0x138] sm:$0xf]
      %v2346 = vld [vmem:[%s1750 + $0x13c] sm:$0xf]
      %v2347 = vpack.c.bf16 %v2324, %v2323
      %v2348 = vpack.c.bf16 %v2326, %v2325
      %v2349 = vpack.c.bf16 %v2328, %v2327
      %v2350 = vpack.c.bf16 %v2330, %v2329
      %v2367 = vunpack.c.l.b16 %v2331
      %v2368 = vunpack.c.l.b16 %v2332
      %v2369 = vunpack.c.l.b16 %v2333
      %v2370 = vunpack.c.l.b16 %v2334
      %v2371 = vunpack.c.l.b16 %v2335
      %v2372 = vunpack.c.l.b16 %v2336
      %v2373 = vunpack.c.l.b16 %v2337
      %v2374 = vunpack.c.l.b16 %v2338
      %v2375 = vunpack.c.l.b16 %v2339
      %v2376 = vunpack.c.l.b16 %v2340
      %v2377 = vunpack.c.l.b16 %v2341
      %v2378 = vunpack.c.l.b16 %v2342
      %v2379 = vunpack.c.l.b16 %v2343
      %v2380 = vunpack.c.l.b16 %v2344
      %v2381 = vunpack.c.l.b16 %v2345
      %v2382 = vunpack.c.l.b16 %v2346
      %v2383 = vpack.c.b16 %v2368, %v2367
      %v2384 = vpack.c.b16 %v2370, %v2369
      %v2385 = vpack.c.b16 %v2372, %v2371
      %v2386 = vpack.c.b16 %v2374, %v2373
      %v2387 = vpack.c.b16 %v2376, %v2375
      %v2388 = vpack.c.b16 %v2378, %v2377
      %v2389 = vpack.c.b16 %v2380, %v2379
      %v2390 = vpack.c.b16 %v2382, %v2381
      %2399 = vmatprep.subr.bf16.mxu0 0
      %2400 = vmatpush1.bf16.msra.mxu0 %v2390
      %2401 = vmatprep.subr.bf16.mxu0 0
      %2402 = vmatpush1.bf16.msra.mxu0 %v2389
      %2403 = vmatprep.subr.bf16.mxu0 0
      %2404 = vmatpush1.bf16.msra.mxu0 %v2388
      %2405 = vmatprep.subr.bf16.mxu0 0
      %2406 = vmatpush1.bf16.msra.mxu0 %v2387
      %2407 = vmatprep.subr.bf16.mxu0 0
      %2408 = vmatpush1.bf16.msra.mxu0 %v2386
      %2409 = vmatprep.subr.bf16.mxu0 0
      %2410 = vmatpush1.bf16.msra.mxu0 %v2385
      %2411 = vmatprep.subr.bf16.mxu0 0
      %2412 = vmatpush1.bf16.msra.mxu0 %v2384
      %2413 = vmatprep.subr.bf16.mxu0 0
      %2414 = vmatpush1.bf16.msra.mxu0 %v2383
      %2415 = vmatprep.subr.bf16.mxu0 0
      %2416 = vmatpush2.bf16.msra.mxu0 0
      %2417 = vmatprep.subr.bf16.mxu0 0
      %2418 = vmatpush2.bf16.msra.mxu0 0
      %2419 = vmatprep.subr.bf16.mxu0 0
      %2420 = vmatpush2.bf16.msra.mxu0 0
      %2421 = vmatprep.subr.bf16.mxu0 0
      %2422 = vmatpush2.bf16.msra.mxu0 0
      %2423 = vmatprep.subr.bf16.mxu0 0
      %2424 = vmatpush2.bf16.msra.mxu0 0
      %2425 = vmatprep.subr.bf16.mxu0 0
      %2426 = vmatpush2.bf16.msra.mxu0 0
      %2427 = vmatprep.subr.bf16.mxu0 0
      %2428 = vmatpush2.bf16.msra.mxu0 0
      %2429 = vmatprep.subr.bf16.mxu0 0
      %2430 = vmatpush2.bf16.msra.mxu0 0
      %2431 = vmatprep.mubr.bf16.mxu0 0
      %2432 = vmatmul.mubr.bf16.gmra.mxu0 %v2347
      %v2433 = vpop.f32.mrf.mxu0
      %v2434 = vadd.f32 0.0, %v2433
      %v2435 = vpop.f32.mrf.mxu0
      %v2436 = vpop.f32.mrf.mxu0
      %v2437 = vadd.f32 0.0, %v2436
      %v2438 = vpop.f32.mrf.mxu0
      %2439 = vmatprep.mubr.bf16.mxu0 0
      %2440 = vmatmul.mubr.bf16.gmra.mxu0 %v2348
      %v2441 = vpop.f32.mrf.mxu0
      %v2442 = vadd.f32 0.0, %v2441
      %v2443 = vpop.f32.mrf.mxu0
      %v2444 = vpop.f32.mrf.mxu0
      %v2445 = vadd.f32 0.0, %v2444
      %v2446 = vpop.f32.mrf.mxu0
      %2447 = vmatprep.mubr.bf16.mxu0 0
      %2448 = vmatmul.mubr.bf16.gmra.mxu0 %v2349
      %v2449 = vpop.f32.mrf.mxu0
      %v2450 = vadd.f32 0.0, %v2449
      %v2451 = vpop.f32.mrf.mxu0
      %v2452 = vpop.f32.mrf.mxu0
      %v2453 = vadd.f32 0.0, %v2452
      %v2454 = vpop.f32.mrf.mxu0
      %2455 = vmatprep.mubr.bf16.mxu0 0
      %2456 = vmatmul.mubr.bf16.gmra.mxu0 %v2350
      %v2457 = vpop.f32.mrf.mxu0
      %v2458 = vadd.f32 0.0, %v2457
      %v2459 = vpop.f32.mrf.mxu0
      %v2460 = vpop.f32.mrf.mxu0
      %v2461 = vadd.f32 0.0, %v2460
      %v2462 = vpop.f32.mrf.mxu0
      %2463 = vdwg.mxu0
      %v2464 = vadd.f32 %v2315, %v2434
      %v2465 = vadd.f32 %v2316, %v2437
      %v2466 = vadd.f32 %v2317, %v2442
      %v2467 = vadd.f32 %v2318, %v2445
      %v2468 = vadd.f32 %v2319, %v2450
      %v2469 = vadd.f32 %v2320, %v2453
      %v2470 = vadd.f32 %v2321, %v2458
      %v2471 = vadd.f32 %v2322, %v2461
      %v2472 = vld [vmem:[%s1733 + $0x2] sm:$0xff]
      %v2473 = vld [vmem:[%s1733 + $0x12] sm:$0xff]
      %v2474 = vld [vmem:[%s1733 + $0x22] sm:$0xff]
      %v2475 = vld [vmem:[%s1733 + $0x32] sm:$0xff]
      %v2476 = vld [vmem:[%s1733 + $0x42] sm:$0xff]
      %v2477 = vld [vmem:[%s1733 + $0x52] sm:$0xff]
      %v2478 = vld [vmem:[%s1733 + $0x62] sm:$0xff]
      %v2479 = vld [vmem:[%s1733 + $0x72] sm:$0xff]
      %v2480 = vld [vmem:[%s1750 + $0x140] sm:$0xf]
      %v2481 = vld [vmem:[%s1750 + $0x144] sm:$0xf]
      %v2482 = vld [vmem:[%s1750 + $0x148] sm:$0xf]
      %v2483 = vld [vmem:[%s1750 + $0x14c] sm:$0xf]
      %v2484 = vld [vmem:[%s1750 + $0x150] sm:$0xf]
      %v2485 = vld [vmem:[%s1750 + $0x154] sm:$0xf]
      %v2486 = vld [vmem:[%s1750 + $0x158] sm:$0xf]
      %v2487 = vld [vmem:[%s1750 + $0x15c] sm:$0xf]
      %v2488 = vld [vmem:[%s1750 + $0x160] sm:$0xf]
      %v2489 = vld [vmem:[%s1750 + $0x164] sm:$0xf]
      %v2490 = vld [vmem:[%s1750 + $0x168] sm:$0xf]
      %v2491 = vld [vmem:[%s1750 + $0x16c] sm:$0xf]
      %v2492 = vld [vmem:[%s1750 + $0x170] sm:$0xf]
      %v2493 = vld [vmem:[%s1750 + $0x174] sm:$0xf]
      %v2494 = vld [vmem:[%s1750 + $0x178] sm:$0xf]
      %v2495 = vld [vmem:[%s1750 + $0x17c] sm:$0xf]
      %v2496 = vpack.c.bf16 %v2473, %v2472
      %v2497 = vpack.c.bf16 %v2475, %v2474
      %v2498 = vpack.c.bf16 %v2477, %v2476
      %v2499 = vpack.c.bf16 %v2479, %v2478
      %v2516 = vunpack.c.l.b16 %v2480
      %v2517 = vunpack.c.l.b16 %v2481
      %v2518 = vunpack.c.l.b16 %v2482
      %v2519 = vunpack.c.l.b16 %v2483
      %v2520 = vunpack.c.l.b16 %v2484
      %v2521 = vunpack.c.l.b16 %v2485
      %v2522 = vunpack.c.l.b16 %v2486
      %v2523 = vunpack.c.l.b16 %v2487
      %v2524 = vunpack.c.l.b16 %v2488
      %v2525 = vunpack.c.l.b16 %v2489
      %v2526 = vunpack.c.l.b16 %v2490
      %v2527 = vunpack.c.l.b16 %v2491
      %v2528 = vunpack.c.l.b16 %v2492
      %v2529 = vunpack.c.l.b16 %v2493
      %v2530 = vunpack.c.l.b16 %v2494
      %v2531 = vunpack.c.l.b16 %v2495
      %v2532 = vpack.c.b16 %v2517, %v2516
      %v2533 = vpack.c.b16 %v2519, %v2518
      %v2534 = vpack.c.b16 %v2521, %v2520
      %v2535 = vpack.c.b16 %v2523, %v2522
      %v2536 = vpack.c.b16 %v2525, %v2524
      %v2537 = vpack.c.b16 %v2527, %v2526
      %v2538 = vpack.c.b16 %v2529, %v2528
      %v2539 = vpack.c.b16 %v2531, %v2530
      %2548 = vmatprep.subr.bf16.mxu0 0
      %2549 = vmatpush1.bf16.msra.mxu0 %v2539
      %2550 = vmatprep.subr.bf16.mxu0 0
      %2551 = vmatpush1.bf16.msra.mxu0 %v2538
      %2552 = vmatprep.subr.bf16.mxu0 0
      %2553 = vmatpush1.bf16.msra.mxu0 %v2537
      %2554 = vmatprep.subr.bf16.mxu0 0
      %2555 = vmatpush1.bf16.msra.mxu0 %v2536
      %2556 = vmatprep.subr.bf16.mxu0 0
      %2557 = vmatpush1.bf16.msra.mxu0 %v2535
      %2558 = vmatprep.subr.bf16.mxu0 0
      %2559 = vmatpush1.bf16.msra.mxu0 %v2534
      %2560 = vmatprep.subr.bf16.mxu0 0
      %2561 = vmatpush1.bf16.msra.mxu0 %v2533
      %2562 = vmatprep.subr.bf16.mxu0 0
      %2563 = vmatpush1.bf16.msra.mxu0 %v2532
      %2564 = vmatprep.subr.bf16.mxu0 0
      %2565 = vmatpush2.bf16.msra.mxu0 0
      %2566 = vmatprep.subr.bf16.mxu0 0
      %2567 = vmatpush2.bf16.msra.mxu0 0
      %2568 = vmatprep.subr.bf16.mxu0 0
      %2569 = vmatpush2.bf16.msra.mxu0 0
      %2570 = vmatprep.subr.bf16.mxu0 0
      %2571 = vmatpush2.bf16.msra.mxu0 0
      %2572 = vmatprep.subr.bf16.mxu0 0
      %2573 = vmatpush2.bf16.msra.mxu0 0
      %2574 = vmatprep.subr.bf16.mxu0 0
      %2575 = vmatpush2.bf16.msra.mxu0 0
      %2576 = vmatprep.subr.bf16.mxu0 0
      %2577 = vmatpush2.bf16.msra.mxu0 0
      %2578 = vmatprep.subr.bf16.mxu0 0
      %2579 = vmatpush2.bf16.msra.mxu0 0
      %2580 = vmatprep.mubr.bf16.mxu0 0
      %2581 = vmatmul.mubr.bf16.gmra.mxu0 %v2496
      %v2582 = vpop.f32.mrf.mxu0
      %v2583 = vadd.f32 0.0, %v2582
      %v2584 = vpop.f32.mrf.mxu0
      %v2585 = vpop.f32.mrf.mxu0
      %v2586 = vadd.f32 0.0, %v2585
      %v2587 = vpop.f32.mrf.mxu0
      %2588 = vmatprep.mubr.bf16.mxu0 0
      %2589 = vmatmul.mubr.bf16.gmra.mxu0 %v2497
      %v2590 = vpop.f32.mrf.mxu0
      %v2591 = vadd.f32 0.0, %v2590
      %v2592 = vpop.f32.mrf.mxu0
      %v2593 = vpop.f32.mrf.mxu0
      %v2594 = vadd.f32 0.0, %v2593
      %v2595 = vpop.f32.mrf.mxu0
      %2596 = vmatprep.mubr.bf16.mxu0 0
      %2597 = vmatmul.mubr.bf16.gmra.mxu0 %v2498
      %v2598 = vpop.f32.mrf.mxu0
      %v2599 = vadd.f32 0.0, %v2598
      %v2600 = vpop.f32.mrf.mxu0
      %v2601 = vpop.f32.mrf.mxu0
      %v2602 = vadd.f32 0.0, %v2601
      %v2603 = vpop.f32.mrf.mxu0
      %2604 = vmatprep.mubr.bf16.mxu0 0
      %2605 = vmatmul.mubr.bf16.gmra.mxu0 %v2499
      %v2606 = vpop.f32.mrf.mxu0
      %v2607 = vadd.f32 0.0, %v2606
      %v2608 = vpop.f32.mrf.mxu0
      %v2609 = vpop.f32.mrf.mxu0
      %v2610 = vadd.f32 0.0, %v2609
      %v2611 = vpop.f32.mrf.mxu0
      %2612 = vdwg.mxu0
      %v2613 = vadd.f32 %v2464, %v2583
      %v2614 = vadd.f32 %v2465, %v2586
      %v2615 = vadd.f32 %v2466, %v2591
      %v2616 = vadd.f32 %v2467, %v2594
      %v2617 = vadd.f32 %v2468, %v2599
      %v2618 = vadd.f32 %v2469, %v2602
      %v2619 = vadd.f32 %v2470, %v2607
      %v2620 = vadd.f32 %v2471, %v2610
      %s2621 = scalar_lea.vmem [#allocation3], 32
      %v2622 = vld [vmem:[%s2621] sm:$0xff]
      %v2623 = vld [vmem:[%s2621 + $0x10] sm:$0xff]
      %v2624 = vld [vmem:[%s2621 + $0x20] sm:$0xff]
      %v2625 = vld [vmem:[%s2621 + $0x30] sm:$0xff]
      %v2626 = vld [vmem:[%s2621 + $0x40] sm:$0xff]
      %v2627 = vld [vmem:[%s2621 + $0x50] sm:$0xff]
      %v2628 = vld [vmem:[%s2621 + $0x60] sm:$0xff]
      %v2629 = vld [vmem:[%s2621 + $0x70] sm:$0xff]
      %v2630 = vld [vmem:[%s1750 + $0x180] sm:$0xf]
      %v2631 = vld [vmem:[%s1750 + $0x184] sm:$0xf]
      %v2632 = vld [vmem:[%s1750 + $0x188] sm:$0xf]
      %v2633 = vld [vmem:[%s1750 + $0x18c] sm:$0xf]
      %v2634 = vld [vmem:[%s1750 + $0x190] sm:$0xf]
      %v2635 = vld [vmem:[%s1750 + $0x194] sm:$0xf]
      %v2636 = vld [vmem:[%s1750 + $0x198] sm:$0xf]
      %v2637 = vld [vmem:[%s1750 + $0x19c] sm:$0xf]
      %v2638 = vld [vmem:[%s1750 + $0x1a0] sm:$0xf]
      %v2639 = vld [vmem:[%s1750 + $0x1a4] sm:$0xf]
      %v2640 = vld [vmem:[%s1750 + $0x1a8] sm:$0xf]
      %v2641 = vld [vmem:[%s1750 + $0x1ac] sm:$0xf]
      %v2642 = vld [vmem:[%s1750 + $0x1b0] sm:$0xf]
      %v2643 = vld [vmem:[%s1750 + $0x1b4] sm:$0xf]
      %v2644 = vld [vmem:[%s1750 + $0x1b8] sm:$0xf]
      %v2645 = vld [vmem:[%s1750 + $0x1bc] sm:$0xf]
      %v2646 = vpack.c.bf16 %v2623, %v2622
      %v2647 = vpack.c.bf16 %v2625, %v2624
      %v2648 = vpack.c.bf16 %v2627, %v2626
      %v2649 = vpack.c.bf16 %v2629, %v2628
      %v2666 = vunpack.c.l.b16 %v2630
      %v2667 = vunpack.c.l.b16 %v2631
      %v2668 = vunpack.c.l.b16 %v2632
      %v2669 = vunpack.c.l.b16 %v2633
      %v2670 = vunpack.c.l.b16 %v2634
      %v2671 = vunpack.c.l.b16 %v2635
      %v2672 = vunpack.c.l.b16 %v2636
      %v2673 = vunpack.c.l.b16 %v2637
      %v2674 = vunpack.c.l.b16 %v2638
      %v2675 = vunpack.c.l.b16 %v2639
      %v2676 = vunpack.c.l.b16 %v2640
      %v2677 = vunpack.c.l.b16 %v2641
      %v2678 = vunpack.c.l.b16 %v2642
      %v2679 = vunpack.c.l.b16 %v2643
      %v2680 = vunpack.c.l.b16 %v2644
      %v2681 = vunpack.c.l.b16 %v2645
      %v2682 = vpack.c.b16 %v2667, %v2666
      %v2683 = vpack.c.b16 %v2669, %v2668
      %v2684 = vpack.c.b16 %v2671, %v2670
      %v2685 = vpack.c.b16 %v2673, %v2672
      %v2686 = vpack.c.b16 %v2675, %v2674
      %v2687 = vpack.c.b16 %v2677, %v2676
      %v2688 = vpack.c.b16 %v2679, %v2678
      %v2689 = vpack.c.b16 %v2681, %v2680
      %2698 = vmatprep.subr.bf16.mxu0 0
      %2699 = vmatpush1.bf16.msra.mxu0 %v2689
      %2700 = vmatprep.subr.bf16.mxu0 0
      %2701 = vmatpush1.bf16.msra.mxu0 %v2688
      %2702 = vmatprep.subr.bf16.mxu0 0
      %2703 = vmatpush1.bf16.msra.mxu0 %v2687
      %2704 = vmatprep.subr.bf16.mxu0 0
      %2705 = vmatpush1.bf16.msra.mxu0 %v2686
      %2706 = vmatprep.subr.bf16.mxu0 0
      %2707 = vmatpush1.bf16.msra.mxu0 %v2685
      %2708 = vmatprep.subr.bf16.mxu0 0
      %2709 = vmatpush1.bf16.msra.mxu0 %v2684
      %2710 = vmatprep.subr.bf16.mxu0 0
      %2711 = vmatpush1.bf16.msra.mxu0 %v2683
      %2712 = vmatprep.subr.bf16.mxu0 0
      %2713 = vmatpush1.bf16.msra.mxu0 %v2682
      %2714 = vmatprep.subr.bf16.mxu0 0
      %2715 = vmatpush2.bf16.msra.mxu0 0
      %2716 = vmatprep.subr.bf16.mxu0 0
      %2717 = vmatpush2.bf16.msra.mxu0 0
      %2718 = vmatprep.subr.bf16.mxu0 0
      %2719 = vmatpush2.bf16.msra.mxu0 0
      %2720 = vmatprep.subr.bf16.mxu0 0
      %2721 = vmatpush2.bf16.msra.mxu0 0
      %2722 = vmatprep.subr.bf16.mxu0 0
      %2723 = vmatpush2.bf16.msra.mxu0 0
      %2724 = vmatprep.subr.bf16.mxu0 0
      %2725 = vmatpush2.bf16.msra.mxu0 0
      %2726 = vmatprep.subr.bf16.mxu0 0
      %2727 = vmatpush2.bf16.msra.mxu0 0
      %2728 = vmatprep.subr.bf16.mxu0 0
      %2729 = vmatpush2.bf16.msra.mxu0 0
      %2730 = vmatprep.mubr.bf16.mxu0 0
      %2731 = vmatmul.mubr.bf16.gmra.mxu0 %v2646
      %v2732 = vpop.f32.mrf.mxu0
      %v2733 = vadd.f32 0.0, %v2732
      %v2734 = vpop.f32.mrf.mxu0
      %v2735 = vpop.f32.mrf.mxu0
      %v2736 = vadd.f32 0.0, %v2735
      %v2737 = vpop.f32.mrf.mxu0
      %2738 = vmatprep.mubr.bf16.mxu0 0
      %2739 = vmatmul.mubr.bf16.gmra.mxu0 %v2647
      %v2740 = vpop.f32.mrf.mxu0
      %v2741 = vadd.f32 0.0, %v2740
      %v2742 = vpop.f32.mrf.mxu0
      %v2743 = vpop.f32.mrf.mxu0
      %v2744 = vadd.f32 0.0, %v2743
      %v2745 = vpop.f32.mrf.mxu0
      %2746 = vmatprep.mubr.bf16.mxu0 0
      %2747 = vmatmul.mubr.bf16.gmra.mxu0 %v2648
      %v2748 = vpop.f32.mrf.mxu0
      %v2749 = vadd.f32 0.0, %v2748
      %v2750 = vpop.f32.mrf.mxu0
      %v2751 = vpop.f32.mrf.mxu0
      %v2752 = vadd.f32 0.0, %v2751
      %v2753 = vpop.f32.mrf.mxu0
      %2754 = vmatprep.mubr.bf16.mxu0 0
      %2755 = vmatmul.mubr.bf16.gmra.mxu0 %v2649
      %v2756 = vpop.f32.mrf.mxu0
      %v2757 = vadd.f32 0.0, %v2756
      %v2758 = vpop.f32.mrf.mxu0
      %v2759 = vpop.f32.mrf.mxu0
      %v2760 = vadd.f32 0.0, %v2759
      %v2761 = vpop.f32.mrf.mxu0
      %2762 = vdwg.mxu0
      %v2763 = vadd.f32 %v2613, %v2733
      %v2764 = vadd.f32 %v2614, %v2736
      %v2765 = vadd.f32 %v2615, %v2741
      %v2766 = vadd.f32 %v2616, %v2744
      %v2767 = vadd.f32 %v2617, %v2749
      %v2768 = vadd.f32 %v2618, %v2752
      %v2769 = vadd.f32 %v2619, %v2757
      %v2770 = vadd.f32 %v2620, %v2760
      %v2771 = vld [vmem:[%s2621 + $0x1] sm:$0xff]
      %v2772 = vld [vmem:[%s2621 + $0x11] sm:$0xff]
      %v2773 = vld [vmem:[%s2621 + $0x21] sm:$0xff]
      %v2774 = vld [vmem:[%s2621 + $0x31] sm:$0xff]
      %v2775 = vld [vmem:[%s2621 + $0x41] sm:$0xff]
      %v2776 = vld [vmem:[%s2621 + $0x51] sm:$0xff]
      %v2777 = vld [vmem:[%s2621 + $0x61] sm:$0xff]
      %v2778 = vld [vmem:[%s2621 + $0x71] sm:$0xff]
      %v2779 = vld [vmem:[%s1750 + $0x1c0] sm:$0xf]
      %v2780 = vld [vmem:[%s1750 + $0x1c4] sm:$0xf]
      %v2781 = vld [vmem:[%s1750 + $0x1c8] sm:$0xf]
      %v2782 = vld [vmem:[%s1750 + $0x1cc] sm:$0xf]
      %v2783 = vld [vmem:[%s1750 + $0x1d0] sm:$0xf]
      %v2784 = vld [vmem:[%s1750 + $0x1d4] sm:$0xf]
      %v2785 = vld [vmem:[%s1750 + $0x1d8] sm:$0xf]
      %v2786 = vld [vmem:[%s1750 + $0x1dc] sm:$0xf]
      %v2787 = vld [vmem:[%s1750 + $0x1e0] sm:$0xf]
      %v2788 = vld [vmem:[%s1750 + $0x1e4] sm:$0xf]
      %v2789 = vld [vmem:[%s1750 + $0x1e8] sm:$0xf]
      %v2790 = vld [vmem:[%s1750 + $0x1ec] sm:$0xf]
      %v2791 = vld [vmem:[%s1750 + $0x1f0] sm:$0xf]
      %v2792 = vld [vmem:[%s1750 + $0x1f4] sm:$0xf]
      %v2793 = vld [vmem:[%s1750 + $0x1f8] sm:$0xf]
      %v2794 = vld [vmem:[%s1750 + $0x1fc] sm:$0xf]
      %v2795 = vpack.c.bf16 %v2772, %v2771
      %v2796 = vpack.c.bf16 %v2774, %v2773
      %v2797 = vpack.c.bf16 %v2776, %v2775
      %v2798 = vpack.c.bf16 %v2778, %v2777
      %v2815 = vunpack.c.l.b16 %v2779
      %v2816 = vunpack.c.l.b16 %v2780
      %v2817 = vunpack.c.l.b16 %v2781
      %v2818 = vunpack.c.l.b16 %v2782
      %v2819 = vunpack.c.l.b16 %v2783
      %v2820 = vunpack.c.l.b16 %v2784
      %v2821 = vunpack.c.l.b16 %v2785
      %v2822 = vunpack.c.l.b16 %v2786
      %v2823 = vunpack.c.l.b16 %v2787
      %v2824 = vunpack.c.l.b16 %v2788
      %v2825 = vunpack.c.l.b16 %v2789
      %v2826 = vunpack.c.l.b16 %v2790
      %v2827 = vunpack.c.l.b16 %v2791
      %v2828 = vunpack.c.l.b16 %v2792
      %v2829 = vunpack.c.l.b16 %v2793
      %v2830 = vunpack.c.l.b16 %v2794
      %v2831 = vpack.c.b16 %v2816, %v2815
      %v2832 = vpack.c.b16 %v2818, %v2817
      %v2833 = vpack.c.b16 %v2820, %v2819
      %v2834 = vpack.c.b16 %v2822, %v2821
      %v2835 = vpack.c.b16 %v2824, %v2823
      %v2836 = vpack.c.b16 %v2826, %v2825
      %v2837 = vpack.c.b16 %v2828, %v2827
      %v2838 = vpack.c.b16 %v2830, %v2829
      %2847 = vmatprep.subr.bf16.mxu0 0
      %2848 = vmatpush1.bf16.msra.mxu0 %v2838
      %2849 = vmatprep.subr.bf16.mxu0 0
      %2850 = vmatpush1.bf16.msra.mxu0 %v2837
      %2851 = vmatprep.subr.bf16.mxu0 0
      %2852 = vmatpush1.bf16.msra.mxu0 %v2836
      %2853 = vmatprep.subr.bf16.mxu0 0
      %2854 = vmatpush1.bf16.msra.mxu0 %v2835
      %2855 = vmatprep.subr.bf16.mxu0 0
      %2856 = vmatpush1.bf16.msra.mxu0 %v2834
      %2857 = vmatprep.subr.bf16.mxu0 0
      %2858 = vmatpush1.bf16.msra.mxu0 %v2833
      %2859 = vmatprep.subr.bf16.mxu0 0
      %2860 = vmatpush1.bf16.msra.mxu0 %v2832
      %2861 = vmatprep.subr.bf16.mxu0 0
      %2862 = vmatpush1.bf16.msra.mxu0 %v2831
      %2863 = vmatprep.subr.bf16.mxu0 0
      %2864 = vmatpush2.bf16.msra.mxu0 0
      %2865 = vmatprep.subr.bf16.mxu0 0
      %2866 = vmatpush2.bf16.msra.mxu0 0
      %2867 = vmatprep.subr.bf16.mxu0 0
      %2868 = vmatpush2.bf16.msra.mxu0 0
      %2869 = vmatprep.subr.bf16.mxu0 0
      %2870 = vmatpush2.bf16.msra.mxu0 0
      %2871 = vmatprep.subr.bf16.mxu0 0
      %2872 = vmatpush2.bf16.msra.mxu0 0
      %2873 = vmatprep.subr.bf16.mxu0 0
      %2874 = vmatpush2.bf16.msra.mxu0 0
      %2875 = vmatprep.subr.bf16.mxu0 0
      %2876 = vmatpush2.bf16.msra.mxu0 0
      %2877 = vmatprep.subr.bf16.mxu0 0
      %2878 = vmatpush2.bf16.msra.mxu0 0
      %2879 = vmatprep.mubr.bf16.mxu0 0
      %2880 = vmatmul.mubr.bf16.gmra.mxu0 %v2795
      %v2881 = vpop.f32.mrf.mxu0
      %v2882 = vadd.f32 0.0, %v2881
      %v2883 = vpop.f32.mrf.mxu0
      %v2884 = vpop.f32.mrf.mxu0
      %v2885 = vadd.f32 0.0, %v2884
      %v2886 = vpop.f32.mrf.mxu0
      %2887 = vmatprep.mubr.bf16.mxu0 0
      %2888 = vmatmul.mubr.bf16.gmra.mxu0 %v2796
      %v2889 = vpop.f32.mrf.mxu0
      %v2890 = vadd.f32 0.0, %v2889
      %v2891 = vpop.f32.mrf.mxu0
      %v2892 = vpop.f32.mrf.mxu0
      %v2893 = vadd.f32 0.0, %v2892
      %v2894 = vpop.f32.mrf.mxu0
      %2895 = vmatprep.mubr.bf16.mxu0 0
      %2896 = vmatmul.mubr.bf16.gmra.mxu0 %v2797
      %v2897 = vpop.f32.mrf.mxu0
      %v2898 = vadd.f32 0.0, %v2897
      %v2899 = vpop.f32.mrf.mxu0
      %v2900 = vpop.f32.mrf.mxu0
      %v2901 = vadd.f32 0.0, %v2900
      %v2902 = vpop.f32.mrf.mxu0
      %2903 = vmatprep.mubr.bf16.mxu0 0
      %2904 = vmatmul.mubr.bf16.gmra.mxu0 %v2798
      %v2905 = vpop.f32.mrf.mxu0
      %v2906 = vadd.f32 0.0, %v2905
      %v2907 = vpop.f32.mrf.mxu0
      %v2908 = vpop.f32.mrf.mxu0
      %v2909 = vadd.f32 0.0, %v2908
      %v2910 = vpop.f32.mrf.mxu0
      %2911 = vdwg.mxu0
      %v2912 = vadd.f32 %v2763, %v2882
      %v2913 = vadd.f32 %v2764, %v2885
      %v2914 = vadd.f32 %v2765, %v2890
      %v2915 = vadd.f32 %v2766, %v2893
      %v2916 = vadd.f32 %v2767, %v2898
      %v2917 = vadd.f32 %v2768, %v2901
      %v2918 = vadd.f32 %v2769, %v2906
      %v2919 = vadd.f32 %v2770, %v2909
      %v2920 = vld [vmem:[%s2621 + $0x2] sm:$0xff]
      %v2921 = vld [vmem:[%s2621 + $0x12] sm:$0xff]
      %v2922 = vld [vmem:[%s2621 + $0x22] sm:$0xff]
      %v2923 = vld [vmem:[%s2621 + $0x32] sm:$0xff]
      %v2924 = vld [vmem:[%s2621 + $0x42] sm:$0xff]
      %v2925 = vld [vmem:[%s2621 + $0x52] sm:$0xff]
      %v2926 = vld [vmem:[%s2621 + $0x62] sm:$0xff]
      %v2927 = vld [vmem:[%s2621 + $0x72] sm:$0xff]
      %v2928 = vld [vmem:[%s1750 + $0x200] sm:$0xf]
      %v2929 = vld [vmem:[%s1750 + $0x204] sm:$0xf]
      %v2930 = vld [vmem:[%s1750 + $0x208] sm:$0xf]
      %v2931 = vld [vmem:[%s1750 + $0x20c] sm:$0xf]
      %v2932 = vld [vmem:[%s1750 + $0x210] sm:$0xf]
      %v2933 = vld [vmem:[%s1750 + $0x214] sm:$0xf]
      %v2934 = vld [vmem:[%s1750 + $0x218] sm:$0xf]
      %v2935 = vld [vmem:[%s1750 + $0x21c] sm:$0xf]
      %v2936 = vld [vmem:[%s1750 + $0x220] sm:$0xf]
      %v2937 = vld [vmem:[%s1750 + $0x224] sm:$0xf]
      %v2938 = vld [vmem:[%s1750 + $0x228] sm:$0xf]
      %v2939 = vld [vmem:[%s1750 + $0x22c] sm:$0xf]
      %v2940 = vld [vmem:[%s1750 + $0x230] sm:$0xf]
      %v2941 = vld [vmem:[%s1750 + $0x234] sm:$0xf]
      %v2942 = vld [vmem:[%s1750 + $0x238] sm:$0xf]
      %v2943 = vld [vmem:[%s1750 + $0x23c] sm:$0xf]
      %v2944 = vpack.c.bf16 %v2921, %v2920
      %v2945 = vpack.c.bf16 %v2923, %v2922
      %v2946 = vpack.c.bf16 %v2925, %v2924
      %v2947 = vpack.c.bf16 %v2927, %v2926
      %v2964 = vunpack.c.l.b16 %v2928
      %v2965 = vunpack.c.l.b16 %v2929
      %v2966 = vunpack.c.l.b16 %v2930
      %v2967 = vunpack.c.l.b16 %v2931
      %v2968 = vunpack.c.l.b16 %v2932
      %v2969 = vunpack.c.l.b16 %v2933
      %v2970 = vunpack.c.l.b16 %v2934
      %v2971 = vunpack.c.l.b16 %v2935
      %v2972 = vunpack.c.l.b16 %v2936
      %v2973 = vunpack.c.l.b16 %v2937
      %v2974 = vunpack.c.l.b16 %v2938
      %v2975 = vunpack.c.l.b16 %v2939
      %v2976 = vunpack.c.l.b16 %v2940
      %v2977 = vunpack.c.l.b16 %v2941
      %v2978 = vunpack.c.l.b16 %v2942
      %v2979 = vunpack.c.l.b16 %v2943
      %v2980 = vpack.c.b16 %v2965, %v2964
      %v2981 = vpack.c.b16 %v2967, %v2966
      %v2982 = vpack.c.b16 %v2969, %v2968
      %v2983 = vpack.c.b16 %v2971, %v2970
      %v2984 = vpack.c.b16 %v2973, %v2972
      %v2985 = vpack.c.b16 %v2975, %v2974
      %v2986 = vpack.c.b16 %v2977, %v2976
      %v2987 = vpack.c.b16 %v2979, %v2978
      %2996 = vmatprep.subr.bf16.mxu0 0
      %2997 = vmatpush1.bf16.msra.mxu0 %v2987
      %2998 = vmatprep.subr.bf16.mxu0 0
      %2999 = vmatpush1.bf16.msra.mxu0 %v2986
      %3000 = vmatprep.subr.bf16.mxu0 0
      %3001 = vmatpush1.bf16.msra.mxu0 %v2985
      %3002 = vmatprep.subr.bf16.mxu0 0
      %3003 = vmatpush1.bf16.msra.mxu0 %v2984
      %3004 = vmatprep.subr.bf16.mxu0 0
      %3005 = vmatpush1.bf16.msra.mxu0 %v2983
      %3006 = vmatprep.subr.bf16.mxu0 0
      %3007 = vmatpush1.bf16.msra.mxu0 %v2982
      %3008 = vmatprep.subr.bf16.mxu0 0
      %3009 = vmatpush1.bf16.msra.mxu0 %v2981
      %3010 = vmatprep.subr.bf16.mxu0 0
      %3011 = vmatpush1.bf16.msra.mxu0 %v2980
      %3012 = vmatprep.subr.bf16.mxu0 0
      %3013 = vmatpush2.bf16.msra.mxu0 0
      %3014 = vmatprep.subr.bf16.mxu0 0
      %3015 = vmatpush2.bf16.msra.mxu0 0
      %3016 = vmatprep.subr.bf16.mxu0 0
      %3017 = vmatpush2.bf16.msra.mxu0 0
      %3018 = vmatprep.subr.bf16.mxu0 0
      %3019 = vmatpush2.bf16.msra.mxu0 0
      %3020 = vmatprep.subr.bf16.mxu0 0
      %3021 = vmatpush2.bf16.msra.mxu0 0
      %3022 = vmatprep.subr.bf16.mxu0 0
      %3023 = vmatpush2.bf16.msra.mxu0 0
      %3024 = vmatprep.subr.bf16.mxu0 0
      %3025 = vmatpush2.bf16.msra.mxu0 0
      %3026 = vmatprep.subr.bf16.mxu0 0
      %3027 = vmatpush2.bf16.msra.mxu0 0
      %3028 = vmatprep.mubr.bf16.mxu0 0
      %3029 = vmatmul.mubr.bf16.gmra.mxu0 %v2944
      %v3030 = vpop.f32.mrf.mxu0
      %v3031 = vadd.f32 0.0, %v3030
      %v3032 = vpop.f32.mrf.mxu0
      %v3033 = vpop.f32.mrf.mxu0
      %v3034 = vadd.f32 0.0, %v3033
      %v3035 = vpop.f32.mrf.mxu0
      %3036 = vmatprep.mubr.bf16.mxu0 0
      %3037 = vmatmul.mubr.bf16.gmra.mxu0 %v2945
      %v3038 = vpop.f32.mrf.mxu0
      %v3039 = vadd.f32 0.0, %v3038
      %v3040 = vpop.f32.mrf.mxu0
      %v3041 = vpop.f32.mrf.mxu0
      %v3042 = vadd.f32 0.0, %v3041
      %v3043 = vpop.f32.mrf.mxu0
      %3044 = vmatprep.mubr.bf16.mxu0 0
      %3045 = vmatmul.mubr.bf16.gmra.mxu0 %v2946
      %v3046 = vpop.f32.mrf.mxu0
      %v3047 = vadd.f32 0.0, %v3046
      %v3048 = vpop.f32.mrf.mxu0
      %v3049 = vpop.f32.mrf.mxu0
      %v3050 = vadd.f32 0.0, %v3049
      %v3051 = vpop.f32.mrf.mxu0
      %3052 = vmatprep.mubr.bf16.mxu0 0
      %3053 = vmatmul.mubr.bf16.gmra.mxu0 %v2947
      %v3054 = vpop.f32.mrf.mxu0
      %v3055 = vadd.f32 0.0, %v3054
      %v3056 = vpop.f32.mrf.mxu0
      %v3057 = vpop.f32.mrf.mxu0
      %v3058 = vadd.f32 0.0, %v3057
      %v3059 = vpop.f32.mrf.mxu0
      %3060 = vdwg.mxu0
      %v3061 = vadd.f32 %v2912, %v3031
      %v3062 = vadd.f32 %v2913, %v3034
      %v3063 = vadd.f32 %v2914, %v3039
      %v3064 = vadd.f32 %v2915, %v3042
      %v3065 = vadd.f32 %v2916, %v3047
      %v3066 = vadd.f32 %v2917, %v3050
      %v3067 = vadd.f32 %v2918, %v3055
      %v3068 = vadd.f32 %v2919, %v3058
      %s3069 = scalar_lea.vmem %s2, 1
      %v3070 = vld [vmem:[%s3069] sm:$0x1]
      %v3072 = vlaneseq
      %v3073 = vshrl.u32 %v3072, 7
      %v3074 = vsub.s32 0, %v3073
      %v3075 = vrot.slane %v3070, %v3074
      %v3077 = vmul.f32 %v3061, %v3075
      %v3078 = vmul.f32 %v3062, %v3075
      %v3079 = vmul.f32 %v3063, %v3075
      %v3080 = vmul.f32 %v3064, %v3075
      %v3081 = vmul.f32 %v3065, %v3075
      %v3082 = vmul.f32 %v3066, %v3075
      %v3083 = vmul.f32 %v3067, %v3075
      %v3084 = vmul.f32 %v3068, %v3075
      %s3085 = scalar_lea.vmem %s3, 1
      %v3086 = vld [vmem:[%s3085] sm:$0x1]
      %v3088 = vlaneseq
      %v3089 = vshrl.u32 %v3088, 7
      %v3090 = vsub.s32 0, %v3089
      %v3091 = vrot.slane %v3086, %v3090
      %v3093 = vadd.f32 %v3077, %v3091
      %v3094 = vadd.f32 %v3078, %v3091
      %v3095 = vadd.f32 %v3079, %v3091
      %v3096 = vadd.f32 %v3080, %v3091
      %v3097 = vadd.f32 %v3081, %v3091
      %v3098 = vadd.f32 %v3082, %v3091
      %v3099 = vadd.f32 %v3083, %v3091
      %v3100 = vadd.f32 %v3084, %v3091
      %v3101 = vmax.f32 %v3093, 0.0
      %v3102 = vmax.f32 %v3094, 0.0
      %v3103 = vmax.f32 %v3095, 0.0
      %v3104 = vmax.f32 %v3096, 0.0
      %v3105 = vmax.f32 %v3097, 0.0
      %v3106 = vmax.f32 %v3098, 0.0
      %v3107 = vmax.f32 %v3099, 0.0
      %v3108 = vmax.f32 %v3100, 0.0
      %3109 = vst [vmem:[%s197] sm:$0xff] %v3101
      %3110 = vst [vmem:[%s197 + $0x8] sm:$0xff] %v3102
      %3111 = vst [vmem:[%s197 + $0x10] sm:$0xff] %v3103
      %3112 = vst [vmem:[%s197 + $0x18] sm:$0xff] %v3104
      %3113 = vst [vmem:[%s197 + $0x20] sm:$0xff] %v3105
      %3114 = vst [vmem:[%s197 + $0x28] sm:$0xff] %v3106
      %3115 = vst [vmem:[%s197 + $0x30] sm:$0xff] %v3107
      %3116 = vst [vmem:[%s197 + $0x38] sm:$0xff] %v3108
      %p3117 = scmp.lt.s32.totalorder %s15, 1
      %s3118 = scalar_select %p3117, %s15, 1
      %s3119 = smul.addr %s3118, 8
      %s3120 = smul.addr %s3119, 8
      %s3121 = scalar_lea.vmem %s4, %s3120
      // Predicated region
      $region37: #{down_block_forward.1} parent=35 // pred_check
        %p3122 = pneg %p122
      $region38: #{down_block_forward.1} parent=35 // pred_check_branch
        %3124 = sbr.rel (%p3122) target = $region40
      $region39: #{down_block_forward.1} parent=35 // pred_region
        _
      $region40: #{down_block_forward.1} parent=35 // pred_fallthru
        _
    $region36: #{down_block_forward.1} parent=5 // pred_fallthru
      _
    %p3125 = scmp.le.s32.totalorder 2, %s10
    // Predicated region
    $region41: #{down_block_forward.1} parent=5 // pred_check
      %p3126 = pneg %p3125
    $region42: #{down_block_forward.1} parent=5 // pred_check_branch
      %3128 = sbr.rel (%p3126) target = $region44
    $region43: #{down_block_forward.1} parent=5 // pred_region
      %s3129 = ssub.s32 %s10, 2
      // Predicated region
      $region45: #{down_block_forward.1} parent=43 // pred_check
        %p3130 = pneg %p128
      $region46: #{down_block_forward.1} parent=43 // pred_check_branch
        %3132 = sbr.rel (%p3130) target = $region48
      $region47: #{down_block_forward.1} parent=43 // pred_region
        %p3133 = scmp.lt.s32.totalorder %s16, 1
        %s3134 = scalar_select %p3133, %s16, 1
        %s3135 = smul.addr %s3134, 8
        %s3136 = smul.addr %s3135, 8
        %s3137 = scalar_lea.vmem %s4, %s3136
      $region48: #{down_block_forward.1} parent=43 // pred_fallthru
        _
    $region44: #{down_block_forward.1} parent=5 // pred_fallthru
      _
  $region6: #{down_block_forward.1} parent=0 // loop_footer
    %s14 = sadd.s32 1, %s10
  $region7: #{down_block_forward.1} parent=0 // loop_footer_branch
    %9 = sbr.rel target = $region3
  $region8: #{down_block_forward.1} parent=0 // loop_exit
    _

</llo_original>
